<compile_context>
chip_gen: v5e
topology: v5e:2x2
jax: 0.10.0
libtpu: 0.0.40
codegen_flags: <defaults>
</compile_context>

<pallas_src>
import numpy as np
import jax
import jax.numpy as jnp
from jax import lax
from jax.experimental import pallas as pl
from jax.experimental.pallas import tpu as pltpu

WORD_DIMS = 100          # logical embedding dim
OUT_CHANNEL = 100        # logical conv out channels
D_PAD = 128              # lane-padded embedding dim
C_PAD = 128              # lane-padded out channels (per filter)
FILTER_SIZES = (2, 3, 4)
NF = len(FILTER_SIZES)
MAX_FS = max(FILTER_SIZES)
NC = NF * C_PAD          # 384 = fused output width


def _round_up(x, m):
    return ((x + m - 1) // m) * m


def _make_cnn_kernel(pack_k256):
    def kernel(x_ref, w_ref, b_ref, o_ref):
        # x_ref: (Bt, Tp, D_PAD)     bf16 embeddings (time zero-padded by MAX_FS-2)
        # w_ref: (MAX_FS*D_PAD, NC)  bf16 fused filters (zero-padded per segment)
        # b_ref: (1, NC)             f32 bias
        # o_ref: (Bt, NC)            f32 max-pooled relu(conv), final concat layout
        Bt, Tp, Dp = x_ref.shape
        T = Tp - (MAX_FS - 1)        # = sent_len - 1 conv positions computed
        dn = (((2,), (0,)), ((), ()))

        # Shifted bf16 windows, built once (the only unaligned-time copies).
        x0 = x_ref[:, 0:T, :]
        x1 = x_ref[:, 1:1 + T, :]
        x2 = x_ref[:, 2:2 + T, :]
        x3 = x_ref[:, 3:3 + T, :]

        if pack_k256:
            # v6e / v7x: MXU contracts 256-deep -> lane-concat tap pairs in VMEM.
            x01 = jnp.concatenate([x0, x1], axis=-1)                    # (Bt, T, 256)
            x23 = jnp.concatenate([x2, x3], axis=-1)                    # (Bt, T, 256)
            y01 = lax.dot_general(x01, w_ref[0:2 * Dp, :], dn,
                                  preferred_element_type=jnp.float32)   # (Bt, T, 384)
            # taps 2,3 only feed the fs=3 / fs=4 segments -> skip the zero 0:128 cols
            y23 = lax.dot_general(x23, w_ref[2 * Dp:4 * Dp, C_PAD:], dn,
                                  preferred_element_type=jnp.float32)   # (Bt, T, 256)
            acc0 = y01[:, :, 0:C_PAD]
            acc1 = y01[:, :, C_PAD:2 * C_PAD] + y23[:, :, 0:C_PAD]
            acc2 = y01[:, :, 2 * C_PAD:] + y23[:, :, C_PAD:]
        else:
            # v5e: K=128 already fills the 128-deep MXU; only skip zero column blocks.
            y0 = lax.dot_general(x0, w_ref[0:Dp, :], dn,
                                 preferred_element_type=jnp.float32)            # N=384
            y1 = lax.dot_general(x1, w_ref[Dp:2 * Dp, :], dn,
                                 preferred_element_type=jnp.float32)            # N=384
            y2 = lax.dot_general(x2, w_ref[2 * Dp:3 * Dp, C_PAD:], dn,
                                 preferred_element_type=jnp.float32)            # N=256
            y3 = lax.dot_general(x3, w_ref[3 * Dp:4 * Dp, 2 * C_PAD:], dn,
                                 preferred_element_type=jnp.float32)            # N=128
            s01 = y0 + y1
            acc0 = s01[:, :, 0:C_PAD]
            acc1 = s01[:, :, C_PAD:2 * C_PAD] + y2[:, :, 0:C_PAD]
            acc2 = s01[:, :, 2 * C_PAD:] + y2[:, :, C_PAD:] + y3

        # Segment-wise max over the statically-known valid extents (no iota/where),
        # then bias + ReLU hoisted past the max (both are monotone in the conv value).
        m0 = jnp.max(acc0, axis=1)                  # fs=2: T   = L-1 valid positions
        m1 = jnp.max(acc1[:, :T - 1, :], axis=1)    # fs=3: T-1 = L-2 valid positions
        m2 = jnp.max(acc2[:, :T - 2, :], axis=1)    # fs=4: T-2 = L-3 valid positions
        pooled = jnp.concatenate([m0, m1, m2], axis=-1)                  # (Bt, 384)
        o_ref[...] = jnp.maximum(pooled + b_ref[...], 0.0).astype(o_ref.dtype)

    return kernel


def _should_pack_k256():
    # v6e / v7x MXUs contract 256-deep; v2-v5 are 128-deep (don't pack there).
    try:
        kind = jax.devices()[0].device_kind.lower()
    except Exception:
        return True
    return not any(v in kind for v in ("v2", "v3", "v4", "v5"))


def _pick_batch_tile(B, L):
    Tp = L + MAX_FS - 2
    T = L - 1
    # rough per-batch-row VMEM footprint: f32 segment accumulators + bf16 shifted
    # copies + double-buffered bf16 input block; keep well under v5e's 16 MiB
    # default scoped VMEM (also bounds v7x's 64 MiB total VMEM).
    per_row = T * (NF * C_PAD * 4 + MAX_FS * D_PAD * 2) + 2 * Tp * D_PAD * 2
    budget = 8 * 1024 * 1024
    bt = min(128, max(8, (budget // max(per_row, 1)) // 8 * 8))
    # keep >=2 grid steps when the batch allows it so the "parallel" axis can
    # feed both TensorCores on v7x; harmless sequential loop on v5e/v6e.
    bt = min(bt, max(8, _round_up((B + 1) // 2, 8)))
    return bt


def word_cnn_encoder(word_ids, extword_ids, params):
    """Forward pass of WordCNNEncoder (eval mode: dropout is identity)."""
    # TODO(synk): training-mode nn.Dropout omitted (module evaluated in eval mode);
    #             the embedding gather is left to XLA and fused into the cast/pad.
    B, L = word_ids.shape
    assert L >= MAX_FS, "sent_len must be >= max filter size (4) to match PyTorch"

    emb = params["word_embed"][word_ids] + params["extword_embed"][extword_ids]  # f32

    Bt = _pick_batch_tile(B, L)
    nB = (B + Bt - 1) // Bt
    B_pad = nB * Bt
    Tp = L + MAX_FS - 2
    T = L - 1

    # cast + (2 time rows, batch remainder) pad in one fused XLA epilogue of the gather
    x = jnp.pad(emb.astype(jnp.bfloat16),
                ((0, B_pad - B), (0, MAX_FS - 2), (0, 0)))         # (B_pad, Tp, 128)

    pack_k256 = _should_pack_k256()
    if pack_k256:
        mxu_work = 2 * B_pad * T * (2 * D_PAD) * (NC + (NC - C_PAD))
    else:
        mxu_work = 2 * B_pad * T * D_PAD * (NC + NC + (NC - C_PAD) + (NC - 2 * C_PAD))
    bytes_accessed = (x.size * 2 + params["conv_w"].size * 2
                      + params["conv_b"].size * 4 + B_pad * NC * 4)
    cost = pl.CostEstimate(flops=int(mxu_work), transcendentals=0,
                           bytes_accessed=int(bytes_accessed))

    out = pl.pallas_call(
        _make_cnn_kernel(pack_k256),
        out_shape=jax.ShapeDtypeStruct((B_pad, NC), jnp.float32),
        grid_spec=pltpu.PrefetchScalarGridSpec(
            num_scalar_prefetch=0,
            grid=(nB,),
            in_specs=[
                pl.BlockSpec((Bt, Tp, D_PAD), lambda b: (b, 0, 0)),
                pl.BlockSpec((MAX_FS * D_PAD, NC), lambda b: (0, 0)),
                pl.BlockSpec((1, NC), lambda b: (0, 0)),
            ],
            out_specs=pl.BlockSpec((Bt, NC), lambda b: (b, 0)),
        ),
        compiler_params=pltpu.CompilerParams(
            dimension_semantics=("parallel",)),       # disjoint output blocks per step
        cost_estimate=cost,
    )(x, params["conv_w"], params["conv_b"])          # (B_pad, 384)

    # kernel already emitted the torch.cat([f2, f3, f4], dim=1) layout; drop padding
    reps = out[:B].reshape(B, NF, C_PAD)[:, :, :OUT_CHANNEL].reshape(B, NF * OUT_CHANNEL)
    return reps


def init_params(key, word_vocab, ext_vocab):
    keys = jax.random.split(key, 2 + 2 * NF)
    D, C = WORD_DIMS, OUT_CHANNEL

    word_embed = 0.1 * jax.random.normal(keys[0], (word_vocab, D), jnp.float32)
    word_embed = word_embed.at[0].set(0.0)            # padding_idx=0
    ext_embed = 0.1 * jax.random.normal(keys[1], (ext_vocab, D), jnp.float32)
    ext_embed = ext_embed.at[0].set(0.0)              # padding_idx=0 (pretrained, frozen)

    # lane-pad embedding tables D -> D_PAD (zero columns)
    word_embed_pad = jnp.pad(word_embed, ((0, 0), (0, D_PAD - D)))
    ext_embed_pad = jnp.pad(ext_embed, ((0, 0), (0, D_PAD - D)))

    conv_ws, conv_bs = [], []
    w_all = np.zeros((MAX_FS * D_PAD, NC), np.float32)
    b_all = np.zeros((1, NC), np.float32)
    for i, fs in enumerate(FILTER_SIZES):
        w = 0.1 * jax.random.normal(keys[2 + 2 * i], (C, 1, fs, D), jnp.float32)
        b = 0.1 * jax.random.normal(keys[3 + 2 * i], (C,), jnp.float32)
        conv_ws.append(w)
        conv_bs.append(b)
        w_np = np.asarray(w)
        for k in range(fs):
            # (C, D) -> (D, C), into row-block k and channel-segment i (zero elsewhere)
            w_all[k * D_PAD:k * D_PAD + D, i * C_PAD:i * C_PAD + C] = w_np[:, 0, k, :].T
        b_all[0, i * C_PAD:i * C_PAD + C] = np.asarray(b)

    params = {
        "word_embed": word_embed_pad,                       # (vocab, 128) f32
        "extword_embed": ext_embed_pad,                     # (vocab, 128) f32
        "conv_w": jnp.asarray(w_all, dtype=jnp.bfloat16),   # (512, 384) bf16 MXU operand
        "conv_b": jnp.asarray(b_all),                       # (1, 384)   f32
    }
    return params, conv_ws, conv_bs


def reference_forward(word_ids, extword_ids, params, conv_ws, conv_bs):
    """Pure-JAX f32 reference matching the PyTorch forward (eval mode)."""
    B, L = word_ids.shape
    D = WORD_DIMS
    emb = (params["word_embed"][word_ids] + params["extword_embed"][extword_ids])[:, :, :D]
    pooled = []
    for i, fs in enumerate(FILTER_SIZES):
        w = conv_ws[i]                    # (C, 1, fs, D)
        b = conv_bs[i]                    # (C,)
        fh = L - fs + 1
        conv = jnp.zeros((B, fh, OUT_CHANNEL), jnp.float32)
        for k in range(fs):
            conv = conv + jnp.einsum("bld,cd->blc", emb[:, k:k + fh, :], w[:, 0, k, :])
        h = jnp.maximum(conv + b[None, None, :], 0.0)
        pooled.append(jnp.max(h, axis=1))
    return jnp.concatenate(pooled, axis=1)


if __name__ == "__main__":
    key = jax.random.PRNGKey(0)
    k_param, k_wid, k_eid = jax.random.split(key, 3)

    SEN_NUM, SENT_LEN = 8, 16
    WORD_VOCAB, EXT_VOCAB = 50, 60

    params, conv_ws, conv_bs = init_params(k_param, WORD_VOCAB, EXT_VOCAB)

    word_ids = jax.random.randint(k_wid, (SEN_NUM, SENT_LEN), 0, WORD_VOCAB, jnp.int32)
    extword_ids = jax.random.randint(k_eid, (SEN_NUM, SENT_LEN), 0, EXT_VOCAB, jnp.int32)

    reps = jax.block_until_ready(word_cnn_encoder(word_ids, extword_ids, params))
    assert reps.shape == (SEN_NUM, NF * OUT_CHANNEL)

    ref = jax.block_until_ready(
        reference_forward(word_ids, extword_ids, params, conv_ws, conv_bs))
    # bf16 MXU inputs + f32 accumulation -> slightly relaxed tolerance vs pure f32
    np.testing.assert_allclose(np.asarray(reps), np.asarray(ref), rtol=5e-3, atol=5e-3)

    print("KERNEL_OK")
</pallas_src>

<mosaic_0001>
module attributes {stable_mosaic.version = 11 : i64} {
  func.func @kernel(%arg0: i32, %arg1: memref<8x18x128xbf16, #tpu.memory_space<vmem>>, %arg2: memref<512x384xbf16, #tpu.memory_space<vmem>>, %arg3: memref<1x384xf32, #tpu.memory_space<vmem>>, %arg4: memref<8x384xf32, #tpu.memory_space<vmem>>) attributes {dimension_semantics = [#tpu.dimension_semantics<parallel>], iteration_bounds = array<i64: 1>, scalar_prefetch = 0 : i64, scratch_operands = 0 : i64, tpu.core_type = #tpu.core_type<tc>, window_params = [{transform_indices = @transform_0, window_bounds = array<i64: 8, 18, 128>}, {pipeline_mode = #tpu.pipeline_mode<synchronous>, transform_indices = @transform_1, window_bounds = array<i64: 512, 384>}, {pipeline_mode = #tpu.pipeline_mode<synchronous>, transform_indices = @transform_2, window_bounds = array<i64: 1, 384>}, {transform_indices = @transform_3, window_bounds = array<i64: 8, 384>}]} {
    %c0 = arith.constant 0 : index
    %c0_0 = arith.constant 0 : index
    %c0_1 = arith.constant 0 : index
    %0 = vector.load %arg1[%c0, %c0_0, %c0_1] : memref<8x18x128xbf16, #tpu.memory_space<vmem>>, vector<8x15x128xbf16>
    %c0_2 = arith.constant 0 : index
    %c1 = arith.constant 1 : index
    %c0_3 = arith.constant 0 : index
    %1 = vector.load %arg1[%c0_2, %c1, %c0_3] : memref<8x18x128xbf16, #tpu.memory_space<vmem>>, vector<8x15x128xbf16>
    %c0_4 = arith.constant 0 : index
    %c2 = arith.constant 2 : index
    %c0_5 = arith.constant 0 : index
    %2 = vector.load %arg1[%c0_4, %c2, %c0_5] : memref<8x18x128xbf16, #tpu.memory_space<vmem>>, vector<8x15x128xbf16>
    %c0_6 = arith.constant 0 : index
    %c3 = arith.constant 3 : index
    %c0_7 = arith.constant 0 : index
    %3 = vector.load %arg1[%c0_6, %c3, %c0_7] : memref<8x18x128xbf16, #tpu.memory_space<vmem>>, vector<8x15x128xbf16>
    %4 = tpu.concatenate %0, %1 in 2 : vector<8x15x128xbf16>, vector<8x15x128xbf16> -> vector<8x15x256xbf16>
    %5 = tpu.concatenate %2, %3 in 2 : vector<8x15x128xbf16>, vector<8x15x128xbf16> -> vector<8x15x256xbf16>
    %c0_8 = arith.constant 0 : index
    %c0_9 = arith.constant 0 : index
    %6 = vector.load %arg2[%c0_8, %c0_9] : memref<512x384xbf16, #tpu.memory_space<vmem>>, vector<256x384xbf16>
    %cst = arith.constant dense<0.000000e+00> : vector<8x15x384xf32>
    %7 = tpu.matmul %4, %6, %cst {dimension_numbers = #tpu.dot_dimension_numbers<[2], [0], [0, 1], [1], [0, 0, 0, 1, 1, 1], [], []>} : vector<8x15x256xbf16>, vector<256x384xbf16>, vector<8x15x384xf32> -> vector<8x15x384xf32>
    %c256 = arith.constant 256 : index
    %c128 = arith.constant 128 : index
    %8 = vector.load %arg2[%c256, %c128] : memref<512x384xbf16, #tpu.memory_space<vmem>>, vector<256x256xbf16>
    %cst_10 = arith.constant dense<0.000000e+00> : vector<8x15x256xf32>
    %9 = tpu.matmul %5, %8, %cst_10 {dimension_numbers = #tpu.dot_dimension_numbers<[2], [0], [0, 1], [1], [0, 0, 0, 1, 1, 1], [], []>} : vector<8x15x256xbf16>, vector<256x256xbf16>, vector<8x15x256xf32> -> vector<8x15x256xf32>
    %10 = vector.extract_strided_slice %7 {offsets = [0, 0, 0], sizes = [8, 15, 128], strides = [1, 1, 1]} : vector<8x15x384xf32> to vector<8x15x128xf32>
    %11 = vector.extract_strided_slice %7 {offsets = [0, 0, 128], sizes = [8, 15, 128], strides = [1, 1, 1]} : vector<8x15x384xf32> to vector<8x15x128xf32>
    %12 = vector.extract_strided_slice %9 {offsets = [0, 0, 0], sizes = [8, 15, 128], strides = [1, 1, 1]} : vector<8x15x256xf32> to vector<8x15x128xf32>
    %13 = arith.addf %11, %12 : vector<8x15x128xf32>
    %14 = vector.extract_strided_slice %7 {offsets = [0, 0, 256], sizes = [8, 15, 128], strides = [1, 1, 1]} : vector<8x15x384xf32> to vector<8x15x128xf32>
    %15 = vector.extract_strided_slice %9 {offsets = [0, 0, 128], sizes = [8, 15, 128], strides = [1, 1, 1]} : vector<8x15x256xf32> to vector<8x15x128xf32>
    %16 = arith.addf %14, %15 : vector<8x15x128xf32>
    %cst_11 = arith.constant dense<0xFF800000> : vector<8x128xf32>
    %17 = vector.multi_reduction <maximumf>, %10, %cst_11 [1] : vector<8x15x128xf32> to vector<8x128xf32>
    %18 = vector.extract_strided_slice %13 {offsets = [0, 0, 0], sizes = [8, 14, 128], strides = [1, 1, 1]} : vector<8x15x128xf32> to vector<8x14x128xf32>
    %cst_12 = arith.constant dense<0xFF800000> : vector<8x128xf32>
    %19 = vector.multi_reduction <maximumf>, %18, %cst_12 [1] : vector<8x14x128xf32> to vector<8x128xf32>
    %20 = vector.extract_strided_slice %16 {offsets = [0, 0, 0], sizes = [8, 13, 128], strides = [1, 1, 1]} : vector<8x15x128xf32> to vector<8x13x128xf32>
    %cst_13 = arith.constant dense<0xFF800000> : vector<8x128xf32>
    %21 = vector.multi_reduction <maximumf>, %20, %cst_13 [1] : vector<8x13x128xf32> to vector<8x128xf32>
    %22 = tpu.concatenate %17, %19, %21 in 1 : vector<8x128xf32>, vector<8x128xf32>, vector<8x128xf32> -> vector<8x384xf32>
    %c0_14 = arith.constant 0 : index
    %c0_15 = arith.constant 0 : index
    %23 = vector.load %arg3[%c0_14, %c0_15] : memref<1x384xf32, #tpu.memory_space<vmem>>, vector<1x384xf32>
    %24 = vector.broadcast %23 : vector<1x384xf32> to vector<8x384xf32>
    %25 = arith.addf %22, %24 : vector<8x384xf32>
    %cst_16 = arith.constant 0.000000e+00 : f32
    %26 = vector.broadcast %cst_16 : f32 to vector<8x384xf32>
    %27 = arith.maximumf %25, %26 : vector<8x384xf32>
    %c0_17 = arith.constant 0 : index
    %c0_18 = arith.constant 0 : index
    %28 = vector.load %arg4[%c0_17, %c0_18] : memref<8x384xf32, #tpu.memory_space<vmem>>, vector<8x384xf32>
    tpu.vector_store %arg4[%c0_17, %c0_18], %27 {strides = array<i32>} : memref<8x384xf32, #tpu.memory_space<vmem>>, vector<8x384xf32>,
    return
  }
  func.func @transform_0(%arg0: i32) -> (i32, i32, i32) {
    %c0_i32 = arith.constant 0 : i32
    %c0_i32_0 = arith.constant 0 : i32
    %c0_i32_1 = arith.constant 0 : i32
    return %arg0, %c0_i32, %c0_i32_0 : i32, i32, i32
  }
  func.func @transform_1(%arg0: i32) -> (i32, i32) {
    %c0_i32 = arith.constant 0 : i32
    %c0_i32_0 = arith.constant 0 : i32
    %c0_i32_1 = arith.constant 0 : i32
    return %c0_i32, %c0_i32_0 : i32, i32
  }
  func.func @transform_2(%arg0: i32) -> (i32, i32) {
    %c0_i32 = arith.constant 0 : i32
    %c0_i32_0 = arith.constant 0 : i32
    %c0_i32_1 = arith.constant 0 : i32
    return %c0_i32, %c0_i32_0 : i32, i32
  }
  func.func @transform_3(%arg0: i32) -> (i32, i32) {
    %c0_i32 = arith.constant 0 : i32
    %c0_i32_0 = arith.constant 0 : i32
    return %arg0, %c0_i32 : i32, i32
  }
}

</mosaic_0001>

<llo_original>
// kernel: tpu_custom_call.1
$region0: #{tpu_custom_call.1}
  #allocation0 [shape = 'u32[]', space=smem, size = 0x4, offset = 0x4, fixed_abs, tag = 'smem constant byte address 0x4 - core index']
  #allocation1 [shape = 'u32[72,128]{1,0:T(1,128)}', space=vmem, size = 0x9000, scoped, tag = 'internal scratch']
  %s0 = inlined_call_operand.vmem [shape: bf16[8,18,128], index: 0, kind: input, shape index: {}]
  %s1 = inlined_call_operand.hbm [shape: bf16[512,384], index: 1, kind: input, shape index: {}]
  %s2 = inlined_call_operand.vmem [shape: f32[1,384], index: 2, kind: input, shape index: {}]
  %s3 = inlined_call_operand.hbm [shape: f32[8,384], index: 3, kind: output, shape index: {}]
  %s4 = sld [smem:[#allocation0]]
  $region26: #{tpu_custom_call.1} parent=0
    _
  %s6 = ssub.s32 1, %s4
  %s7 = scalar_select 0, %s6, %s4
  $region1: #{tpu_custom_call.1} parent=0
    #allocation2 [shape = 'u8[393216]{0}', space=vmem, size = 0x60000, scoped, tag = 'input window, operand 1, single buffered']
    #allocation3 [shape = 's32[1]{0}', space=sflag, size = 0x4, scoped, tag = 'scoped memory for tpu_custom_call.1']
    #allocation4 [shape = 's32[1]{0}', space=sflag, size = 0x4, scoped, tag = 'scoped memory for tpu_custom_call.1']
    #allocation5 [shape = 'u8[12288]{0}', space=vmem, size = 0x3000, scoped, tag = 'output window, operand 0, single buffered']
    %8 = vsyncpa [#allocation3], 0
    %9 = vsyncpa [#allocation4], 0
    // Predicated region
    $region2: #{tpu_custom_call.1} parent=1 // pred_check
      _
    $region3: #{tpu_custom_call.1} parent=1 // pred_check_branch
      %11 = sbr.rel (0) target = $region5
    $region4: #{tpu_custom_call.1} parent=1 // pred_region
      _
    $region5: #{tpu_custom_call.1} parent=1 // pred_fallthru
      _
    // Predicated region
    $region6: #{tpu_custom_call.1} parent=1 // pred_check
      _
    $region7: #{tpu_custom_call.1} parent=1 // pred_check_branch
      %13 = sbr.rel (0) target = $region9
    $region8: #{tpu_custom_call.1} parent=1 // pred_region
      %15 = vsyncadd [#allocation3], 0
      %s16 = sshll.u32 %s1, 4
      %s17 = int_to_ptr.hbm [resolvable:$true] %s16
      %s18 = sshll.u32 [#allocation2], 4
      %s19 = int_to_ptr.vmem [resolvable:$true] %s18
      %24 = dma.hbm_to_vmem [thread:$0]  %s17, 12288, %s19, [#allocation3], 192, 192, 12
    $region9: #{tpu_custom_call.1} parent=1 // pred_fallthru
      _
    // Predicated region
    $region10: #{tpu_custom_call.1} parent=1 // pred_check
      _
    $region11: #{tpu_custom_call.1} parent=1 // pred_check_branch
      %26 = sbr.rel (0) target = $region13
    $region12: #{tpu_custom_call.1} parent=1 // pred_region
      _
    $region13: #{tpu_custom_call.1} parent=1 // pred_fallthru
      _
    // Predicated region
    $region14: #{tpu_custom_call.1} parent=1 // pred_check
      _
    $region15: #{tpu_custom_call.1} parent=1 // pred_check_branch
      %28 = sbr.rel (0) target = $region17
    $region16: #{tpu_custom_call.1} parent=1 // pred_region
      %30 = dma.done [#allocation3], 12288
    $region17: #{tpu_custom_call.1} parent=1 // pred_fallthru
      _
    %v31 = vld [vmem:[%s0] sm:$0xf]
    %v32 = vld [vmem:[%s0 + $0x4] sm:$0xf]
    %v33 = vld [vmem:[%s0 + $0xc] sm:$0xf]
    %v34 = vld [vmem:[%s0 + $0x10] sm:$0xf]
    %v35 = vld [vmem:[%s0 + $0x18] sm:$0xf]
    %v36 = vld [vmem:[%s0 + $0x1c] sm:$0xf]
    %v37 = vld [vmem:[%s0 + $0x24] sm:$0xf]
    %v38 = vld [vmem:[%s0 + $0x28] sm:$0xf]
    %v39 = vld [vmem:[%s0 + $0x30] sm:$0xf]
    %v40 = vld [vmem:[%s0 + $0x34] sm:$0xf]
    %v41 = vld [vmem:[%s0 + $0x3c] sm:$0xf]
    %v42 = vld [vmem:[%s0 + $0x40] sm:$0xf]
    %v43 = vld [vmem:[%s0 + $0x48] sm:$0xf]
    %v44 = vld [vmem:[%s0 + $0x4c] sm:$0xf]
    %v45 = vld [vmem:[%s0 + $0x54] sm:$0xf]
    %v46 = vld [vmem:[%s0 + $0x58] sm:$0xf]
    %v47 = vld [vmem:[%s0] sm:$0xe]
    %v48 = vld [vmem:[%s0 + $0x8] sm:$0x1]
    %v49 = vld [vmem:[%s0 + $0xc] sm:$0xe]
    %v50 = vld [vmem:[%s0 + $0x14] sm:$0x1]
    %v51 = vld [vmem:[%s0 + $0x18] sm:$0xe]
    %v52 = vld [vmem:[%s0 + $0x20] sm:$0x1]
    %v53 = vld [vmem:[%s0 + $0x24] sm:$0xe]
    %v54 = vld [vmem:[%s0 + $0x2c] sm:$0x1]
    %v55 = vld [vmem:[%s0 + $0x30] sm:$0xe]
    %v56 = vld [vmem:[%s0 + $0x38] sm:$0x1]
    %v57 = vld [vmem:[%s0 + $0x3c] sm:$0xe]
    %v58 = vld [vmem:[%s0 + $0x44] sm:$0x1]
    %v59 = vld [vmem:[%s0 + $0x48] sm:$0xe]
    %v60 = vld [vmem:[%s0 + $0x50] sm:$0x1]
    %v61 = vld [vmem:[%s0 + $0x54] sm:$0xe]
    %v62 = vld [vmem:[%s0 + $0x5c] sm:$0x1]
    %v79 = vunpack.c.l.b16 %v31
    %v80 = vunpack.c.l.b16 %v32
    %v81 = vunpack.c.l.b16 %v33
    %v82 = vunpack.c.l.b16 %v34
    %v83 = vunpack.c.l.b16 %v35
    %v84 = vunpack.c.l.b16 %v36
    %v85 = vunpack.c.l.b16 %v37
    %v86 = vunpack.c.l.b16 %v38
    %v87 = vunpack.c.l.b16 %v39
    %v88 = vunpack.c.l.b16 %v40
    %v89 = vunpack.c.l.b16 %v41
    %v90 = vunpack.c.l.b16 %v42
    %v91 = vunpack.c.l.b16 %v43
    %v92 = vunpack.c.l.b16 %v44
    %v93 = vunpack.c.l.b16 %v45
    %v94 = vunpack.c.l.b16 %v46
    %v95 = vpack.c.b16 %v80, %v79
    %v96 = vpack.c.b16 %v82, %v81
    %v97 = vpack.c.b16 %v84, %v83
    %v98 = vpack.c.b16 %v86, %v85
    %v99 = vpack.c.b16 %v88, %v87
    %v100 = vpack.c.b16 %v90, %v89
    %v101 = vpack.c.b16 %v92, %v91
    %v102 = vpack.c.b16 %v94, %v93
    %v104 = vshrl.u32 %v95, 16
    %v106 = vshll.u32 %v95, 16
    %v108 = vrot.slane %v106, 1
    %v109 = vor.u32 %v104, %v108
    %v111 = vshrl.u32 %v96, 16
    %v113 = vshll.u32 %v96, 16
    %v115 = vrot.slane %v113, 1
    %v116 = vor.u32 %v111, %v115
    %v118 = vshrl.u32 %v97, 16
    %v120 = vshll.u32 %v97, 16
    %v122 = vrot.slane %v120, 1
    %v123 = vor.u32 %v118, %v122
    %v125 = vshrl.u32 %v98, 16
    %v127 = vshll.u32 %v98, 16
    %v129 = vrot.slane %v127, 1
    %v130 = vor.u32 %v125, %v129
    %v132 = vshrl.u32 %v99, 16
    %v134 = vshll.u32 %v99, 16
    %v136 = vrot.slane %v134, 1
    %v137 = vor.u32 %v132, %v136
    %v139 = vshrl.u32 %v100, 16
    %v141 = vshll.u32 %v100, 16
    %v143 = vrot.slane %v141, 1
    %v144 = vor.u32 %v139, %v143
    %v146 = vshrl.u32 %v101, 16
    %v148 = vshll.u32 %v101, 16
    %v150 = vrot.slane %v148, 1
    %v151 = vor.u32 %v146, %v150
    %v153 = vshrl.u32 %v102, 16
    %v155 = vshll.u32 %v102, 16
    %v157 = vrot.slane %v155, 1
    %v158 = vor.u32 %v153, %v157
    %v175 = vunpack.c.l.b16 %v47
    %v176 = vunpack.c.l.b16 %v48
    %v177 = vunpack.c.l.b16 %v49
    %v178 = vunpack.c.l.b16 %v50
    %v179 = vunpack.c.l.b16 %v51
    %v180 = vunpack.c.l.b16 %v52
    %v181 = vunpack.c.l.b16 %v53
    %v182 = vunpack.c.l.b16 %v54
    %v183 = vunpack.c.l.b16 %v55
    %v184 = vunpack.c.l.b16 %v56
    %v185 = vunpack.c.l.b16 %v57
    %v186 = vunpack.c.l.b16 %v58
    %v187 = vunpack.c.l.b16 %v59
    %v188 = vunpack.c.l.b16 %v60
    %v189 = vunpack.c.l.b16 %v61
    %v190 = vunpack.c.l.b16 %v62
    %v191 = vpack.c.b16 %v80, %v175
    %v192 = vpack.c.b16 %v176, %v176
    %v193 = vpack.c.b16 %v82, %v177
    %v194 = vpack.c.b16 %v178, %v178
    %v195 = vpack.c.b16 %v84, %v179
    %v196 = vpack.c.b16 %v180, %v180
    %v197 = vpack.c.b16 %v86, %v181
    %v198 = vpack.c.b16 %v182, %v182
    %v199 = vpack.c.b16 %v88, %v183
    %v200 = vpack.c.b16 %v184, %v184
    %v201 = vpack.c.b16 %v90, %v185
    %v202 = vpack.c.b16 %v186, %v186
    %v203 = vpack.c.b16 %v92, %v187
    %v204 = vpack.c.b16 %v188, %v188
    %v205 = vpack.c.b16 %v94, %v189
    %v206 = vpack.c.b16 %v190, %v190
    %vm207 = vsmask.f32 7424
    %v209 = vshrl.u32 %v191, 16
    %v211 = vshll.u32 %v191, 16
    %v213 = vrot.slane %v211, 1
    %v214 = vor.u32 %v209, %v213
    %v216 = vshll.u32 %v192, 16
    %v218 = vrot.slane %v216, 1
    %v219 = vsel %vm207, %v214, %v218
    %v220 = vshrl.u32 %v192, 16
    %v223 = vshrl.u32 %v193, 16
    %v225 = vshll.u32 %v193, 16
    %v227 = vrot.slane %v225, 1
    %v228 = vor.u32 %v223, %v227
    %v230 = vshll.u32 %v194, 16
    %v232 = vrot.slane %v230, 1
    %v233 = vsel %vm207, %v228, %v232
    %v234 = vshrl.u32 %v194, 16
    %v237 = vshrl.u32 %v195, 16
    %v239 = vshll.u32 %v195, 16
    %v241 = vrot.slane %v239, 1
    %v242 = vor.u32 %v237, %v241
    %v244 = vshll.u32 %v196, 16
    %v246 = vrot.slane %v244, 1
    %v247 = vsel %vm207, %v242, %v246
    %v248 = vshrl.u32 %v196, 16
    %v251 = vshrl.u32 %v197, 16
    %v253 = vshll.u32 %v197, 16
    %v255 = vrot.slane %v253, 1
    %v256 = vor.u32 %v251, %v255
    %v258 = vshll.u32 %v198, 16
    %v260 = vrot.slane %v258, 1
    %v261 = vsel %vm207, %v256, %v260
    %v262 = vshrl.u32 %v198, 16
    %v265 = vshrl.u32 %v199, 16
    %v267 = vshll.u32 %v199, 16
    %v269 = vrot.slane %v267, 1
    %v270 = vor.u32 %v265, %v269
    %v272 = vshll.u32 %v200, 16
    %v274 = vrot.slane %v272, 1
    %v275 = vsel %vm207, %v270, %v274
    %v276 = vshrl.u32 %v200, 16
    %v279 = vshrl.u32 %v201, 16
    %v281 = vshll.u32 %v201, 16
    %v283 = vrot.slane %v281, 1
    %v284 = vor.u32 %v279, %v283
    %v286 = vshll.u32 %v202, 16
    %v288 = vrot.slane %v286, 1
    %v289 = vsel %vm207, %v284, %v288
    %v290 = vshrl.u32 %v202, 16
    %v293 = vshrl.u32 %v203, 16
    %v295 = vshll.u32 %v203, 16
    %v297 = vrot.slane %v295, 1
    %v298 = vor.u32 %v293, %v297
    %v300 = vshll.u32 %v204, 16
    %v302 = vrot.slane %v300, 1
    %v303 = vsel %vm207, %v298, %v302
    %v304 = vshrl.u32 %v204, 16
    %v307 = vshrl.u32 %v205, 16
    %v309 = vshll.u32 %v205, 16
    %v311 = vrot.slane %v309, 1
    %v312 = vor.u32 %v307, %v311
    %v314 = vshll.u32 %v206, 16
    %v316 = vrot.slane %v314, 1
    %v317 = vsel %vm207, %v312, %v316
    %v318 = vshrl.u32 %v206, 16
    %v320 = vld [vmem:[#allocation2] sm:$0xff]
    %v321 = vld [vmem:[#allocation2 + $0x8] sm:$0xf]
    %v322 = vld [vmem:[#allocation2 + $0xc] sm:$0xff]
    %v323 = vld [vmem:[#allocation2 + $0x14] sm:$0xf]
    %v324 = vld [vmem:[#allocation2 + $0x18] sm:$0xff]
    %v325 = vld [vmem:[#allocation2 + $0x20] sm:$0xf]
    %v326 = vld [vmem:[#allocation2 + $0x24] sm:$0xff]
    %v327 = vld [vmem:[#allocation2 + $0x2c] sm:$0xf]
    %v328 = vld [vmem:[#allocation2 + $0x30] sm:$0xff]
    %v329 = vld [vmem:[#allocation2 + $0x38] sm:$0xf]
    %v330 = vld [vmem:[#allocation2 + $0x3c] sm:$0xff]
    %v331 = vld [vmem:[#allocation2 + $0x44] sm:$0xf]
    %v332 = vld [vmem:[#allocation2 + $0x48] sm:$0xff]
    %v333 = vld [vmem:[#allocation2 + $0x50] sm:$0xf]
    %v334 = vld [vmem:[#allocation2 + $0x54] sm:$0xff]
    %v335 = vld [vmem:[#allocation2 + $0x5c] sm:$0xf]
    %v336 = vld [vmem:[#allocation2 + $0x60] sm:$0xff]
    %v337 = vld [vmem:[#allocation2 + $0x68] sm:$0xf]
    %v338 = vld [vmem:[#allocation2 + $0x6c] sm:$0xff]
    %v339 = vld [vmem:[#allocation2 + $0x74] sm:$0xf]
    %v340 = vld [vmem:[#allocation2 + $0x78] sm:$0xff]
    %v341 = vld [vmem:[#allocation2 + $0x80] sm:$0xf]
    %v342 = vld [vmem:[#allocation2 + $0x84] sm:$0xff]
    %v343 = vld [vmem:[#allocation2 + $0x8c] sm:$0xf]
    %v344 = vld [vmem:[#allocation2 + $0x90] sm:$0xff]
    %v345 = vld [vmem:[#allocation2 + $0x98] sm:$0xf]
    %v346 = vld [vmem:[#allocation2 + $0x9c] sm:$0xff]
    %v347 = vld [vmem:[#allocation2 + $0xa4] sm:$0xf]
    %v348 = vld [vmem:[#allocation2 + $0xa8] sm:$0xff]
    %v349 = vld [vmem:[#allocation2 + $0xb0] sm:$0xf]
    %v350 = vld [vmem:[#allocation2 + $0xb4] sm:$0xff]
    %v351 = vld [vmem:[#allocation2 + $0xbc] sm:$0xf]
    %v352 = vld [vmem:[#allocation2 + $0xc0] sm:$0xff]
    %v353 = vld [vmem:[#allocation2 + $0xc8] sm:$0xf]
    %v354 = vld [vmem:[#allocation2 + $0xcc] sm:$0xff]
    %v355 = vld [vmem:[#allocation2 + $0xd4] sm:$0xf]
    %v356 = vld [vmem:[#allocation2 + $0xd8] sm:$0xff]
    %v357 = vld [vmem:[#allocation2 + $0xe0] sm:$0xf]
    %v358 = vld [vmem:[#allocation2 + $0xe4] sm:$0xff]
    %v359 = vld [vmem:[#allocation2 + $0xec] sm:$0xf]
    %v360 = vld [vmem:[#allocation2 + $0xf0] sm:$0xff]
    %v361 = vld [vmem:[#allocation2 + $0xf8] sm:$0xf]
    %v362 = vld [vmem:[#allocation2 + $0xfc] sm:$0xff]
    %v363 = vld [vmem:[#allocation2 + $0x104] sm:$0xf]
    %v364 = vld [vmem:[#allocation2 + $0x108] sm:$0xff]
    %v365 = vld [vmem:[#allocation2 + $0x110] sm:$0xf]
    %v366 = vld [vmem:[#allocation2 + $0x114] sm:$0xff]
    %v367 = vld [vmem:[#allocation2 + $0x11c] sm:$0xf]
    %v368 = vld [vmem:[#allocation2 + $0x120] sm:$0xff]
    %v369 = vld [vmem:[#allocation2 + $0x128] sm:$0xf]
    %v370 = vld [vmem:[#allocation2 + $0x12c] sm:$0xff]
    %v371 = vld [vmem:[#allocation2 + $0x134] sm:$0xf]
    %v372 = vld [vmem:[#allocation2 + $0x138] sm:$0xff]
    %v373 = vld [vmem:[#allocation2 + $0x140] sm:$0xf]
    %v374 = vld [vmem:[#allocation2 + $0x144] sm:$0xff]
    %v375 = vld [vmem:[#allocation2 + $0x14c] sm:$0xf]
    %v376 = vld [vmem:[#allocation2 + $0x150] sm:$0xff]
    %v377 = vld [vmem:[#allocation2 + $0x158] sm:$0xf]
    %v378 = vld [vmem:[#allocation2 + $0x15c] sm:$0xff]
    %v379 = vld [vmem:[#allocation2 + $0x164] sm:$0xf]
    %v380 = vld [vmem:[#allocation2 + $0x168] sm:$0xff]
    %v381 = vld [vmem:[#allocation2 + $0x170] sm:$0xf]
    %v382 = vld [vmem:[#allocation2 + $0x174] sm:$0xff]
    %v383 = vld [vmem:[#allocation2 + $0x17c] sm:$0xf]
    %v384 = vrot.slane %v109, 7
    %v385 = vrot.slane %v116, 7
    %v386 = vrot.slane %v123, 7
    %v387 = vrot.slane %v130, 7
    %v388 = vrot.slane %v137, 7
    %v389 = vrot.slane %v144, 7
    %v390 = vrot.slane %v151, 7
    %v391 = vrot.slane %v158, 7
    %vm392 = vcmask 1040384
    %v394 = vsel %vm392, %v95, %v384
    %vm396 = vcmask 1041409
    %v397 = vsel %vm396, %v95, %v384
    %v399 = vrot.slane %v397, 1
    %vm400 = vcmask 1042434
    %v401 = vsel %vm400, %v95, %v384
    %v403 = vrot.slane %v401, 2
    %vm404 = vcmask 1043459
    %v405 = vsel %vm404, %v95, %v384
    %v407 = vrot.slane %v405, 3
    %vm408 = vcmask 1044484
    %v409 = vsel %vm408, %v95, %v384
    %v411 = vrot.slane %v409, 4
    %vm412 = vcmask 1045509
    %v413 = vsel %vm412, %v95, %v384
    %v415 = vrot.slane %v413, 5
    %vm416 = vcmask 1046534
    %v417 = vsel %vm416, %v95, %v384
    %v419 = vrot.slane %v417, 6
    %vm420 = vcmask 1046528
    %v421 = vsel %vm420, %v384, %v95
    %v423 = vrot.slane %v421, 7
    %v425 = vsel %vm392, %v96, %v385
    %v427 = vsel %vm396, %v96, %v385
    %v429 = vrot.slane %v427, 1
    %v430 = vsel %vm400, %v96, %v385
    %v432 = vrot.slane %v430, 2
    %v433 = vsel %vm404, %v96, %v385
    %v435 = vrot.slane %v433, 3
    %v436 = vsel %vm408, %v96, %v385
    %v438 = vrot.slane %v436, 4
    %v439 = vsel %vm412, %v96, %v385
    %v441 = vrot.slane %v439, 5
    %v442 = vsel %vm416, %v96, %v385
    %v444 = vrot.slane %v442, 6
    %v445 = vsel %vm420, %v385, %v96
    %v447 = vrot.slane %v445, 7
    %v449 = vsel %vm392, %v97, %v386
    %v451 = vsel %vm396, %v97, %v386
    %v453 = vrot.slane %v451, 1
    %v454 = vsel %vm400, %v97, %v386
    %v456 = vrot.slane %v454, 2
    %v457 = vsel %vm404, %v97, %v386
    %v459 = vrot.slane %v457, 3
    %v460 = vsel %vm408, %v97, %v386
    %v462 = vrot.slane %v460, 4
    %v463 = vsel %vm412, %v97, %v386
    %v465 = vrot.slane %v463, 5
    %v466 = vsel %vm416, %v97, %v386
    %v468 = vrot.slane %v466, 6
    %v469 = vsel %vm420, %v386, %v97
    %v471 = vrot.slane %v469, 7
    %v473 = vsel %vm392, %v98, %v387
    %v475 = vsel %vm396, %v98, %v387
    %v477 = vrot.slane %v475, 1
    %v478 = vsel %vm400, %v98, %v387
    %v480 = vrot.slane %v478, 2
    %v481 = vsel %vm404, %v98, %v387
    %v483 = vrot.slane %v481, 3
    %v484 = vsel %vm408, %v98, %v387
    %v486 = vrot.slane %v484, 4
    %v487 = vsel %vm412, %v98, %v387
    %v489 = vrot.slane %v487, 5
    %v490 = vsel %vm416, %v98, %v387
    %v492 = vrot.slane %v490, 6
    %v493 = vsel %vm420, %v387, %v98
    %v495 = vrot.slane %v493, 7
    %v497 = vsel %vm392, %v99, %v388
    %v499 = vsel %vm396, %v99, %v388
    %v501 = vrot.slane %v499, 1
    %v502 = vsel %vm400, %v99, %v388
    %v504 = vrot.slane %v502, 2
    %v505 = vsel %vm404, %v99, %v388
    %v507 = vrot.slane %v505, 3
    %v508 = vsel %vm408, %v99, %v388
    %v510 = vrot.slane %v508, 4
    %v511 = vsel %vm412, %v99, %v388
    %v513 = vrot.slane %v511, 5
    %v514 = vsel %vm416, %v99, %v388
    %v516 = vrot.slane %v514, 6
    %v517 = vsel %vm420, %v388, %v99
    %v519 = vrot.slane %v517, 7
    %v521 = vsel %vm392, %v100, %v389
    %v523 = vsel %vm396, %v100, %v389
    %v525 = vrot.slane %v523, 1
    %v526 = vsel %vm400, %v100, %v389
    %v528 = vrot.slane %v526, 2
    %v529 = vsel %vm404, %v100, %v389
    %v531 = vrot.slane %v529, 3
    %v532 = vsel %vm408, %v100, %v389
    %v534 = vrot.slane %v532, 4
    %v535 = vsel %vm412, %v100, %v389
    %v537 = vrot.slane %v535, 5
    %v538 = vsel %vm416, %v100, %v389
    %v540 = vrot.slane %v538, 6
    %v541 = vsel %vm420, %v389, %v100
    %v543 = vrot.slane %v541, 7
    %v545 = vsel %vm392, %v101, %v390
    %v547 = vsel %vm396, %v101, %v390
    %v549 = vrot.slane %v547, 1
    %v550 = vsel %vm400, %v101, %v390
    %v552 = vrot.slane %v550, 2
    %v553 = vsel %vm404, %v101, %v390
    %v555 = vrot.slane %v553, 3
    %v556 = vsel %vm408, %v101, %v390
    %v558 = vrot.slane %v556, 4
    %v559 = vsel %vm412, %v101, %v390
    %v561 = vrot.slane %v559, 5
    %v562 = vsel %vm416, %v101, %v390
    %v564 = vrot.slane %v562, 6
    %v565 = vsel %vm420, %v390, %v101
    %v567 = vrot.slane %v565, 7
    %v569 = vsel %vm392, %v102, %v391
    %v571 = vsel %vm396, %v102, %v391
    %v573 = vrot.slane %v571, 1
    %v574 = vsel %vm400, %v102, %v391
    %v576 = vrot.slane %v574, 2
    %v577 = vsel %vm404, %v102, %v391
    %v579 = vrot.slane %v577, 3
    %v580 = vsel %vm408, %v102, %v391
    %v582 = vrot.slane %v580, 4
    %v583 = vsel %vm412, %v102, %v391
    %v585 = vrot.slane %v583, 5
    %v586 = vsel %vm416, %v102, %v391
    %v588 = vrot.slane %v586, 6
    %v589 = vsel %vm420, %v391, %v102
    %v591 = vrot.slane %v589, 7
    %v592 = vunpack.i.l.s16 %v394
    %v593 = vunpack.i.h.s16 %v394
    %v594 = vunpack.i.l.s16 %v399
    %v595 = vunpack.i.h.s16 %v399
    %v596 = vunpack.i.l.s16 %v403
    %v597 = vunpack.i.h.s16 %v403
    %v598 = vunpack.i.l.s16 %v407
    %v599 = vunpack.i.h.s16 %v407
    %v600 = vunpack.i.l.s16 %v411
    %v601 = vunpack.i.h.s16 %v411
    %v602 = vunpack.i.l.s16 %v415
    %v603 = vunpack.i.h.s16 %v415
    %v604 = vunpack.i.l.s16 %v419
    %v605 = vunpack.i.h.s16 %v419
    %v606 = vunpack.i.l.s16 %v423
    %v607 = vunpack.i.l.s16 %v425
    %v608 = vunpack.i.h.s16 %v425
    %v609 = vunpack.i.l.s16 %v429
    %v610 = vunpack.i.h.s16 %v429
    %v611 = vunpack.i.l.s16 %v432
    %v612 = vunpack.i.h.s16 %v432
    %v613 = vunpack.i.l.s16 %v435
    %v614 = vunpack.i.h.s16 %v435
    %v615 = vunpack.i.l.s16 %v438
    %v616 = vunpack.i.h.s16 %v438
    %v617 = vunpack.i.l.s16 %v441
    %v618 = vunpack.i.h.s16 %v441
    %v619 = vunpack.i.l.s16 %v444
    %v620 = vunpack.i.h.s16 %v444
    %v621 = vunpack.i.l.s16 %v447
    %v622 = vunpack.i.l.s16 %v449
    %v623 = vunpack.i.h.s16 %v449
    %v624 = vunpack.i.l.s16 %v453
    %v625 = vunpack.i.h.s16 %v453
    %v626 = vunpack.i.l.s16 %v456
    %v627 = vunpack.i.h.s16 %v456
    %v628 = vunpack.i.l.s16 %v459
    %v629 = vunpack.i.h.s16 %v459
    %v630 = vunpack.i.l.s16 %v462
    %v631 = vunpack.i.h.s16 %v462
    %v632 = vunpack.i.l.s16 %v465
    %v633 = vunpack.i.h.s16 %v465
    %v634 = vunpack.i.l.s16 %v468
    %v635 = vunpack.i.h.s16 %v468
    %v636 = vunpack.i.l.s16 %v471
    %v637 = vunpack.i.l.s16 %v473
    %v638 = vunpack.i.h.s16 %v473
    %v639 = vunpack.i.l.s16 %v477
    %v640 = vunpack.i.h.s16 %v477
    %v641 = vunpack.i.l.s16 %v480
    %v642 = vunpack.i.h.s16 %v480
    %v643 = vunpack.i.l.s16 %v483
    %v644 = vunpack.i.h.s16 %v483
    %v645 = vunpack.i.l.s16 %v486
    %v646 = vunpack.i.h.s16 %v486
    %v647 = vunpack.i.l.s16 %v489
    %v648 = vunpack.i.h.s16 %v489
    %v649 = vunpack.i.l.s16 %v492
    %v650 = vunpack.i.h.s16 %v492
    %v651 = vunpack.i.l.s16 %v495
    %v652 = vunpack.i.l.s16 %v497
    %v653 = vunpack.i.h.s16 %v497
    %v654 = vunpack.i.l.s16 %v501
    %v655 = vunpack.i.h.s16 %v501
    %v656 = vunpack.i.l.s16 %v504
    %v657 = vunpack.i.h.s16 %v504
    %v658 = vunpack.i.l.s16 %v507
    %v659 = vunpack.i.h.s16 %v507
    %v660 = vunpack.i.l.s16 %v510
    %v661 = vunpack.i.h.s16 %v510
    %v662 = vunpack.i.l.s16 %v513
    %v663 = vunpack.i.h.s16 %v513
    %v664 = vunpack.i.l.s16 %v516
    %v665 = vunpack.i.h.s16 %v516
    %v666 = vunpack.i.l.s16 %v519
    %v667 = vunpack.i.l.s16 %v521
    %v668 = vunpack.i.h.s16 %v521
    %v669 = vunpack.i.l.s16 %v525
    %v670 = vunpack.i.h.s16 %v525
    %v671 = vunpack.i.l.s16 %v528
    %v672 = vunpack.i.h.s16 %v528
    %v673 = vunpack.i.l.s16 %v531
    %v674 = vunpack.i.h.s16 %v531
    %v675 = vunpack.i.l.s16 %v534
    %v676 = vunpack.i.h.s16 %v534
    %v677 = vunpack.i.l.s16 %v537
    %v678 = vunpack.i.h.s16 %v537
    %v679 = vunpack.i.l.s16 %v540
    %v680 = vunpack.i.h.s16 %v540
    %v681 = vunpack.i.l.s16 %v543
    %v682 = vunpack.i.l.s16 %v545
    %v683 = vunpack.i.h.s16 %v545
    %v684 = vunpack.i.l.s16 %v549
    %v685 = vunpack.i.h.s16 %v549
    %v686 = vunpack.i.l.s16 %v552
    %v687 = vunpack.i.h.s16 %v552
    %v688 = vunpack.i.l.s16 %v555
    %v689 = vunpack.i.h.s16 %v555
    %v690 = vunpack.i.l.s16 %v558
    %v691 = vunpack.i.h.s16 %v558
    %v692 = vunpack.i.l.s16 %v561
    %v693 = vunpack.i.h.s16 %v561
    %v694 = vunpack.i.l.s16 %v564
    %v695 = vunpack.i.h.s16 %v564
    %v696 = vunpack.i.l.s16 %v567
    %v697 = vunpack.i.l.s16 %v569
    %v698 = vunpack.i.h.s16 %v569
    %v699 = vunpack.i.l.s16 %v573
    %v700 = vunpack.i.h.s16 %v573
    %v701 = vunpack.i.l.s16 %v576
    %v702 = vunpack.i.h.s16 %v576
    %v703 = vunpack.i.l.s16 %v579
    %v704 = vunpack.i.h.s16 %v579
    %v705 = vunpack.i.l.s16 %v582
    %v706 = vunpack.i.h.s16 %v582
    %v707 = vunpack.i.l.s16 %v585
    %v708 = vunpack.i.h.s16 %v585
    %v709 = vunpack.i.l.s16 %v588
    %v710 = vunpack.i.h.s16 %v588
    %v711 = vunpack.i.l.s16 %v591
    %v712 = vpack.i.b16 %v593, %v592
    %v713 = vpack.i.b16 %v595, %v594
    %v714 = vpack.i.b16 %v597, %v596
    %v715 = vpack.i.b16 %v599, %v598
    %v716 = vpack.i.b16 %v601, %v600
    %v717 = vpack.i.b16 %v603, %v602
    %v718 = vpack.i.b16 %v605, %v604
    %v719 = vpack.i.b16 %v607, %v606
    %v720 = vpack.i.b16 %v609, %v608
    %v721 = vpack.i.b16 %v611, %v610
    %v722 = vpack.i.b16 %v613, %v612
    %v723 = vpack.i.b16 %v615, %v614
    %v724 = vpack.i.b16 %v617, %v616
    %v725 = vpack.i.b16 %v619, %v618
    %v726 = vpack.i.b16 %v621, %v620
    %v727 = vpack.i.b16 %v623, %v622
    %v728 = vpack.i.b16 %v625, %v624
    %v729 = vpack.i.b16 %v627, %v626
    %v730 = vpack.i.b16 %v629, %v628
    %v731 = vpack.i.b16 %v631, %v630
    %v732 = vpack.i.b16 %v633, %v632
    %v733 = vpack.i.b16 %v635, %v634
    %v734 = vpack.i.b16 %v637, %v636
    %v735 = vpack.i.b16 %v639, %v638
    %v736 = vpack.i.b16 %v641, %v640
    %v737 = vpack.i.b16 %v643, %v642
    %v738 = vpack.i.b16 %v645, %v644
    %v739 = vpack.i.b16 %v647, %v646
    %v740 = vpack.i.b16 %v649, %v648
    %v741 = vpack.i.b16 %v651, %v650
    %v742 = vpack.i.b16 %v653, %v652
    %v743 = vpack.i.b16 %v655, %v654
    %v744 = vpack.i.b16 %v657, %v656
    %v745 = vpack.i.b16 %v659, %v658
    %v746 = vpack.i.b16 %v661, %v660
    %v747 = vpack.i.b16 %v663, %v662
    %v748 = vpack.i.b16 %v665, %v664
    %v749 = vpack.i.b16 %v667, %v666
    %v750 = vpack.i.b16 %v669, %v668
    %v751 = vpack.i.b16 %v671, %v670
    %v752 = vpack.i.b16 %v673, %v672
    %v753 = vpack.i.b16 %v675, %v674
    %v754 = vpack.i.b16 %v677, %v676
    %v755 = vpack.i.b16 %v679, %v678
    %v756 = vpack.i.b16 %v681, %v680
    %v757 = vpack.i.b16 %v683, %v682
    %v758 = vpack.i.b16 %v685, %v684
    %v759 = vpack.i.b16 %v687, %v686
    %v760 = vpack.i.b16 %v689, %v688
    %v761 = vpack.i.b16 %v691, %v690
    %v762 = vpack.i.b16 %v693, %v692
    %v763 = vpack.i.b16 %v695, %v694
    %v764 = vpack.i.b16 %v697, %v696
    %v765 = vpack.i.b16 %v699, %v698
    %v766 = vpack.i.b16 %v701, %v700
    %v767 = vpack.i.b16 %v703, %v702
    %v768 = vpack.i.b16 %v705, %v704
    %v769 = vpack.i.b16 %v707, %v706
    %v770 = vpack.i.b16 %v709, %v708
    %v771 = vpack.i.b16 %v711, %v710
    %773 = vst [vmem:[#allocation1] ss:$9 sm:$0xff] %v712
    %s775 = scalar_lea.vmem [#allocation1], 1
    %776 = vst [vmem:[%s775] ss:$9 sm:$0xff] %v713
    %s778 = scalar_lea.vmem [#allocation1], 2
    %779 = vst [vmem:[%s778] ss:$9 sm:$0xff] %v714
    %s781 = scalar_lea.vmem [#allocation1], 3
    %782 = vst [vmem:[%s781] ss:$9 sm:$0xff] %v715
    %s784 = scalar_lea.vmem [#allocation1], 4
    %785 = vst [vmem:[%s784] ss:$9 sm:$0xff] %v716
    %s787 = scalar_lea.vmem [#allocation1], 5
    %788 = vst [vmem:[%s787] ss:$9 sm:$0xff] %v717
    %s790 = scalar_lea.vmem [#allocation1], 6
    %791 = vst [vmem:[%s790] ss:$9 sm:$0xff] %v718
    %s793 = scalar_lea.vmem [#allocation1], 7
    %794 = vst [vmem:[%s793] ss:$9 sm:$0xff] %v719
    %v795 = vld [vmem:[#allocation1] sm:$0xff]
    %v796 = vld [vmem:[#allocation1 + $0x9] sm:$0xff]
    %798 = vst [vmem:[#allocation1] ss:$9 sm:$0xff] %v720
    %800 = vst [vmem:[%s775] ss:$9 sm:$0xff] %v721
    %802 = vst [vmem:[%s778] ss:$9 sm:$0xff] %v722
    %804 = vst [vmem:[%s781] ss:$9 sm:$0xff] %v723
    %806 = vst [vmem:[%s784] ss:$9 sm:$0xff] %v724
    %808 = vst [vmem:[%s787] ss:$9 sm:$0xff] %v725
    %810 = vst [vmem:[%s790] ss:$9 sm:$0xff] %v726
    %812 = vst [vmem:[%s793] ss:$9 sm:$0xff] %v727
    %v813 = vld [vmem:[#allocation1] sm:$0xff]
    %v814 = vld [vmem:[#allocation1 + $0x9] sm:$0xff]
    %816 = vst [vmem:[#allocation1] ss:$9 sm:$0xff] %v728
    %818 = vst [vmem:[%s775] ss:$9 sm:$0xff] %v729
    %820 = vst [vmem:[%s778] ss:$9 sm:$0xff] %v730
    %822 = vst [vmem:[%s781] ss:$9 sm:$0xff] %v731
    %824 = vst [vmem:[%s784] ss:$9 sm:$0xff] %v732
    %826 = vst [vmem:[%s787] ss:$9 sm:$0xff] %v733
    %828 = vst [vmem:[%s790] ss:$9 sm:$0xff] %v734
    %830 = vst [vmem:[%s793] ss:$9 sm:$0xff] %v735
    %v831 = vld [vmem:[#allocation1] sm:$0xff]
    %v832 = vld [vmem:[#allocation1 + $0x9] sm:$0xff]
    %834 = vst [vmem:[#allocation1] ss:$9 sm:$0xff] %v736
    %836 = vst [vmem:[%s775] ss:$9 sm:$0xff] %v737
    %838 = vst [vmem:[%s778] ss:$9 sm:$0xff] %v738
    %840 = vst [vmem:[%s781] ss:$9 sm:$0xff] %v739
    %842 = vst [vmem:[%s784] ss:$9 sm:$0xff] %v740
    %844 = vst [vmem:[%s787] ss:$9 sm:$0xff] %v741
    %846 = vst [vmem:[%s790] ss:$9 sm:$0xff] %v742
    %848 = vst [vmem:[%s793] ss:$9 sm:$0xff] %v743
    %v849 = vld [vmem:[#allocation1] sm:$0xff]
    %v850 = vld [vmem:[#allocation1 + $0x9] sm:$0xff]
    %852 = vst [vmem:[#allocation1] ss:$9 sm:$0xff] %v744
    %854 = vst [vmem:[%s775] ss:$9 sm:$0xff] %v745
    %856 = vst [vmem:[%s778] ss:$9 sm:$0xff] %v746
    %858 = vst [vmem:[%s781] ss:$9 sm:$0xff] %v747
    %860 = vst [vmem:[%s784] ss:$9 sm:$0xff] %v748
    %862 = vst [vmem:[%s787] ss:$9 sm:$0xff] %v749
    %864 = vst [vmem:[%s790] ss:$9 sm:$0xff] %v750
    %866 = vst [vmem:[%s793] ss:$9 sm:$0xff] %v751
    %v867 = vld [vmem:[#allocation1] sm:$0xff]
    %v868 = vld [vmem:[#allocation1 + $0x9] sm:$0xff]
    %870 = vst [vmem:[#allocation1] ss:$9 sm:$0xff] %v752
    %872 = vst [vmem:[%s775] ss:$9 sm:$0xff] %v753
    %874 = vst [vmem:[%s778] ss:$9 sm:$0xff] %v754
    %876 = vst [vmem:[%s781] ss:$9 sm:$0xff] %v755
    %878 = vst [vmem:[%s784] ss:$9 sm:$0xff] %v756
    %880 = vst [vmem:[%s787] ss:$9 sm:$0xff] %v757
    %882 = vst [vmem:[%s790] ss:$9 sm:$0xff] %v758
    %884 = vst [vmem:[%s793] ss:$9 sm:$0xff] %v759
    %v885 = vld [vmem:[#allocation1] sm:$0xff]
    %v886 = vld [vmem:[#allocation1 + $0x9] sm:$0xff]
    %888 = vst [vmem:[#allocation1] ss:$9 sm:$0xff] %v760
    %890 = vst [vmem:[%s775] ss:$9 sm:$0xff] %v761
    %892 = vst [vmem:[%s778] ss:$9 sm:$0xff] %v762
    %894 = vst [vmem:[%s781] ss:$9 sm:$0xff] %v763
    %896 = vst [vmem:[%s784] ss:$9 sm:$0xff] %v764
    %898 = vst [vmem:[%s787] ss:$9 sm:$0xff] %v765
    %900 = vst [vmem:[%s790] ss:$9 sm:$0xff] %v766
    %902 = vst [vmem:[%s793] ss:$9 sm:$0xff] %v767
    %v903 = vld [vmem:[#allocation1] sm:$0xff]
    %v904 = vld [vmem:[#allocation1 + $0x9] sm:$0xff]
    %906 = vst [vmem:[#allocation1] ss:$9 sm:$0xff] %v768
    %908 = vst [vmem:[%s775] ss:$9 sm:$0xff] %v769
    %910 = vst [vmem:[%s778] ss:$9 sm:$0xff] %v770
    %912 = vst [vmem:[%s781] ss:$9 sm:$0xff] %v771
    %v913 = vld [vmem:[#allocation1] sm:$0xff]
    %v914 = vld [vmem:[#allocation1 + $0x9] sm:$0xff]
    %v995 = vunpack.c.l.b16 %v320
    %v996 = vunpack.c.h.b16 %v320
    %v997 = vunpack.c.l.b16 %v321
    %v998 = vunpack.c.l.b16 %v322
    %v999 = vunpack.c.h.b16 %v322
    %v1000 = vunpack.c.l.b16 %v323
    %v1001 = vunpack.c.l.b16 %v324
    %v1002 = vunpack.c.h.b16 %v324
    %v1003 = vunpack.c.l.b16 %v325
    %v1004 = vunpack.c.l.b16 %v326
    %v1005 = vunpack.c.h.b16 %v326
    %v1006 = vunpack.c.l.b16 %v327
    %v1007 = vunpack.c.l.b16 %v328
    %v1008 = vunpack.c.h.b16 %v328
    %v1009 = vunpack.c.l.b16 %v329
    %v1010 = vunpack.c.l.b16 %v330
    %v1011 = vunpack.c.h.b16 %v330
    %v1012 = vunpack.c.l.b16 %v331
    %v1013 = vunpack.c.l.b16 %v332
    %v1014 = vunpack.c.h.b16 %v332
    %v1015 = vunpack.c.l.b16 %v333
    %v1016 = vunpack.c.l.b16 %v334
    %v1017 = vunpack.c.h.b16 %v334
    %v1018 = vunpack.c.l.b16 %v335
    %v1019 = vunpack.c.l.b16 %v336
    %v1020 = vunpack.c.h.b16 %v336
    %v1021 = vunpack.c.l.b16 %v337
    %v1022 = vunpack.c.l.b16 %v338
    %v1023 = vunpack.c.h.b16 %v338
    %v1024 = vunpack.c.l.b16 %v339
    %v1025 = vunpack.c.l.b16 %v340
    %v1026 = vunpack.c.h.b16 %v340
    %v1027 = vunpack.c.l.b16 %v341
    %v1028 = vunpack.c.l.b16 %v342
    %v1029 = vunpack.c.h.b16 %v342
    %v1030 = vunpack.c.l.b16 %v343
    %v1031 = vunpack.c.l.b16 %v344
    %v1032 = vunpack.c.h.b16 %v344
    %v1033 = vunpack.c.l.b16 %v345
    %v1034 = vunpack.c.l.b16 %v346
    %v1035 = vunpack.c.h.b16 %v346
    %v1036 = vunpack.c.l.b16 %v347
    %v1037 = vunpack.c.l.b16 %v348
    %v1038 = vunpack.c.h.b16 %v348
    %v1039 = vunpack.c.l.b16 %v349
    %v1040 = vunpack.c.l.b16 %v350
    %v1041 = vunpack.c.h.b16 %v350
    %v1042 = vunpack.c.l.b16 %v351
    %v1043 = vunpack.c.l.b16 %v352
    %v1044 = vunpack.c.h.b16 %v352
    %v1045 = vunpack.c.l.b16 %v353
    %v1046 = vunpack.c.l.b16 %v354
    %v1047 = vunpack.c.h.b16 %v354
    %v1048 = vunpack.c.l.b16 %v355
    %v1049 = vunpack.c.l.b16 %v356
    %v1050 = vunpack.c.h.b16 %v356
    %v1051 = vunpack.c.l.b16 %v357
    %v1052 = vunpack.c.l.b16 %v358
    %v1053 = vunpack.c.h.b16 %v358
    %v1054 = vunpack.c.l.b16 %v359
    %v1055 = vunpack.c.l.b16 %v360
    %v1056 = vunpack.c.h.b16 %v360
    %v1057 = vunpack.c.l.b16 %v361
    %v1058 = vunpack.c.l.b16 %v362
    %v1059 = vunpack.c.h.b16 %v362
    %v1060 = vunpack.c.l.b16 %v363
    %v1061 = vunpack.c.l.b16 %v364
    %v1062 = vunpack.c.h.b16 %v364
    %v1063 = vunpack.c.l.b16 %v365
    %v1064 = vunpack.c.l.b16 %v366
    %v1065 = vunpack.c.h.b16 %v366
    %v1066 = vunpack.c.l.b16 %v367
    %v1067 = vunpack.c.l.b16 %v368
    %v1068 = vunpack.c.h.b16 %v368
    %v1069 = vunpack.c.l.b16 %v369
    %v1070 = vunpack.c.l.b16 %v370
    %v1071 = vunpack.c.h.b16 %v370
    %v1072 = vunpack.c.l.b16 %v371
    %v1073 = vunpack.c.l.b16 %v372
    %v1074 = vunpack.c.h.b16 %v372
    %v1075 = vunpack.c.l.b16 %v373
    %v1076 = vunpack.c.l.b16 %v374
    %v1077 = vunpack.c.h.b16 %v374
    %v1078 = vunpack.c.l.b16 %v375
    %v1079 = vunpack.c.l.b16 %v376
    %v1080 = vunpack.c.h.b16 %v376
    %v1081 = vunpack.c.l.b16 %v377
    %v1082 = vunpack.c.l.b16 %v378
    %v1083 = vunpack.c.h.b16 %v378
    %v1084 = vunpack.c.l.b16 %v379
    %v1085 = vunpack.c.l.b16 %v380
    %v1086 = vunpack.c.h.b16 %v380
    %v1087 = vunpack.c.l.b16 %v381
    %v1088 = vunpack.c.l.b16 %v382
    %v1089 = vunpack.c.h.b16 %v382
    %v1090 = vunpack.c.l.b16 %v383
    %v1091 = vpack.c.b16 %v998, %v995
    %v1092 = vpack.c.b16 %v999, %v996
    %v1093 = vpack.c.b16 %v1000, %v997
    %v1094 = vpack.c.b16 %v1004, %v1001
    %v1095 = vpack.c.b16 %v1005, %v1002
    %v1096 = vpack.c.b16 %v1006, %v1003
    %v1097 = vpack.c.b16 %v1010, %v1007
    %v1098 = vpack.c.b16 %v1011, %v1008
    %v1099 = vpack.c.b16 %v1012, %v1009
    %v1100 = vpack.c.b16 %v1016, %v1013
    %v1101 = vpack.c.b16 %v1017, %v1014
    %v1102 = vpack.c.b16 %v1018, %v1015
    %v1103 = vpack.c.b16 %v1022, %v1019
    %v1104 = vpack.c.b16 %v1023, %v1020
    %v1105 = vpack.c.b16 %v1024, %v1021
    %v1106 = vpack.c.b16 %v1028, %v1025
    %v1107 = vpack.c.b16 %v1029, %v1026
    %v1108 = vpack.c.b16 %v1030, %v1027
    %v1109 = vpack.c.b16 %v1034, %v1031
    %v1110 = vpack.c.b16 %v1035, %v1032
    %v1111 = vpack.c.b16 %v1036, %v1033
    %v1112 = vpack.c.b16 %v1040, %v1037
    %v1113 = vpack.c.b16 %v1041, %v1038
    %v1114 = vpack.c.b16 %v1042, %v1039
    %v1115 = vpack.c.b16 %v1046, %v1043
    %v1116 = vpack.c.b16 %v1047, %v1044
    %v1117 = vpack.c.b16 %v1048, %v1045
    %v1118 = vpack.c.b16 %v1052, %v1049
    %v1119 = vpack.c.b16 %v1053, %v1050
    %v1120 = vpack.c.b16 %v1054, %v1051
    %v1121 = vpack.c.b16 %v1058, %v1055
    %v1122 = vpack.c.b16 %v1059, %v1056
    %v1123 = vpack.c.b16 %v1060, %v1057
    %v1124 = vpack.c.b16 %v1064, %v1061
    %v1125 = vpack.c.b16 %v1065, %v1062
    %v1126 = vpack.c.b16 %v1066, %v1063
    %v1127 = vpack.c.b16 %v1070, %v1067
    %v1128 = vpack.c.b16 %v1071, %v1068
    %v1129 = vpack.c.b16 %v1072, %v1069
    %v1130 = vpack.c.b16 %v1076, %v1073
    %v1131 = vpack.c.b16 %v1077, %v1074
    %v1132 = vpack.c.b16 %v1078, %v1075
    %v1133 = vpack.c.b16 %v1082, %v1079
    %v1134 = vpack.c.b16 %v1083, %v1080
    %v1135 = vpack.c.b16 %v1084, %v1081
    %v1136 = vpack.c.b16 %v1088, %v1085
    %v1137 = vpack.c.b16 %v1089, %v1086
    %v1138 = vpack.c.b16 %v1090, %v1087
    %1187 = vmatpush.bf16.msra.mxu0 %v1112
    %1188 = vmatpush.bf16.msra.mxu0 %v1109
    %1189 = vmatpush.bf16.msra.mxu0 %v1106
    %1190 = vmatpush.bf16.msra.mxu0 %v1103
    %1191 = vmatpush.bf16.msra.mxu0 %v1100
    %1192 = vmatpush.bf16.msra.mxu0 %v1097
    %1193 = vmatpush.bf16.msra.mxu0 %v1094
    %1194 = vmatpush.bf16.msra.mxu0 %v1091
    %1195 = vmatmul.bf16.gmra.mxu0 %v795
    %v1196 = vpop.f32.mrf.mxu0
    %v1197 = vadd.f32 0.0, %v1196
    %v1198 = vpop.f32.mrf.mxu0
    %v1199 = vadd.f32 0.0, %v1198
    %1200 = vmatmul.bf16.gmra.mxu0 %v813
    %v1201 = vpop.f32.mrf.mxu0
    %v1202 = vadd.f32 0.0, %v1201
    %v1203 = vpop.f32.mrf.mxu0
    %v1204 = vadd.f32 0.0, %v1203
    %1205 = vmatmul.bf16.gmra.mxu0 %v831
    %v1206 = vpop.f32.mrf.mxu0
    %v1207 = vadd.f32 0.0, %v1206
    %v1208 = vpop.f32.mrf.mxu0
    %v1209 = vadd.f32 0.0, %v1208
    %1210 = vmatmul.bf16.gmra.mxu0 %v849
    %v1211 = vpop.f32.mrf.mxu0
    %v1212 = vadd.f32 0.0, %v1211
    %v1213 = vpop.f32.mrf.mxu0
    %v1214 = vadd.f32 0.0, %v1213
    %1215 = vmatmul.bf16.gmra.mxu0 %v867
    %v1216 = vpop.f32.mrf.mxu0
    %v1217 = vadd.f32 0.0, %v1216
    %v1218 = vpop.f32.mrf.mxu0
    %v1219 = vadd.f32 0.0, %v1218
    %1220 = vmatmul.bf16.gmra.mxu0 %v885
    %v1221 = vpop.f32.mrf.mxu0
    %v1222 = vadd.f32 0.0, %v1221
    %v1223 = vpop.f32.mrf.mxu0
    %v1224 = vadd.f32 0.0, %v1223
    %1225 = vmatmul.bf16.gmra.mxu0 %v903
    %v1226 = vpop.f32.mrf.mxu0
    %v1227 = vadd.f32 0.0, %v1226
    %v1228 = vpop.f32.mrf.mxu0
    %v1229 = vadd.f32 0.0, %v1228
    %1230 = vmatmul.bf16.gmra.mxu0 %v913
    %v1231 = vpop.f32.mrf.mxu0
    %v1232 = vadd.f32 0.0, %v1231
    %v1233 = vpop.f32.mrf.mxu0
    %1234 = vdwg.mxu0
    %1235 = vmatpush.bf16.msra.mxu0 %v1136
    %1236 = vmatpush.bf16.msra.mxu0 %v1133
    %1237 = vmatpush.bf16.msra.mxu0 %v1130
    %1238 = vmatpush.bf16.msra.mxu0 %v1127
    %1239 = vmatpush.bf16.msra.mxu0 %v1124
    %1240 = vmatpush.bf16.msra.mxu0 %v1121
    %1241 = vmatpush.bf16.msra.mxu0 %v1118
    %1242 = vmatpush.bf16.msra.mxu0 %v1115
    %1243 = vmatmul.bf16.gmra.mxu0 %v796
    %v1244 = vpop.f32.mrf.mxu0
    %v1245 = vadd.f32 %v1197, %v1244
    %v1246 = vpop.f32.mrf.mxu0
    %v1247 = vadd.f32 %v1199, %v1246
    %1248 = vmatmul.bf16.gmra.mxu0 %v814
    %v1249 = vpop.f32.mrf.mxu0
    %v1250 = vadd.f32 %v1202, %v1249
    %v1251 = vpop.f32.mrf.mxu0
    %v1252 = vadd.f32 %v1204, %v1251
    %1253 = vmatmul.bf16.gmra.mxu0 %v832
    %v1254 = vpop.f32.mrf.mxu0
    %v1255 = vadd.f32 %v1207, %v1254
    %v1256 = vpop.f32.mrf.mxu0
    %v1257 = vadd.f32 %v1209, %v1256
    %1258 = vmatmul.bf16.gmra.mxu0 %v850
    %v1259 = vpop.f32.mrf.mxu0
    %v1260 = vadd.f32 %v1212, %v1259
    %v1261 = vpop.f32.mrf.mxu0
    %v1262 = vadd.f32 %v1214, %v1261
    %1263 = vmatmul.bf16.gmra.mxu0 %v868
    %v1264 = vpop.f32.mrf.mxu0
    %v1265 = vadd.f32 %v1217, %v1264
    %v1266 = vpop.f32.mrf.mxu0
    %v1267 = vadd.f32 %v1219, %v1266
    %1268 = vmatmul.bf16.gmra.mxu0 %v886
    %v1269 = vpop.f32.mrf.mxu0
    %v1270 = vadd.f32 %v1222, %v1269
    %v1271 = vpop.f32.mrf.mxu0
    %v1272 = vadd.f32 %v1224, %v1271
    %1273 = vmatmul.bf16.gmra.mxu0 %v904
    %v1274 = vpop.f32.mrf.mxu0
    %v1275 = vadd.f32 %v1227, %v1274
    %v1276 = vpop.f32.mrf.mxu0
    %v1277 = vadd.f32 %v1229, %v1276
    %1278 = vmatmul.bf16.gmra.mxu0 %v914
    %v1279 = vpop.f32.mrf.mxu0
    %v1280 = vadd.f32 %v1232, %v1279
    %v1281 = vpop.f32.mrf.mxu0
    %1282 = vdwg.mxu0
    %1283 = vmatpush.bf16.msra.mxu0 %v1113
    %1284 = vmatpush.bf16.msra.mxu0 %v1110
    %1285 = vmatpush.bf16.msra.mxu0 %v1107
    %1286 = vmatpush.bf16.msra.mxu0 %v1104
    %1287 = vmatpush.bf16.msra.mxu0 %v1101
    %1288 = vmatpush.bf16.msra.mxu0 %v1098
    %1289 = vmatpush.bf16.msra.mxu0 %v1095
    %1290 = vmatpush.bf16.msra.mxu0 %v1092
    %1291 = vmatmul.bf16.gmra.mxu0 %v795
    %v1292 = vpop.f32.mrf.mxu0
    %v1293 = vadd.f32 0.0, %v1292
    %v1294 = vpop.f32.mrf.mxu0
    %v1295 = vadd.f32 0.0, %v1294
    %1296 = vmatmul.bf16.gmra.mxu0 %v813
    %v1297 = vpop.f32.mrf.mxu0
    %v1298 = vadd.f32 0.0, %v1297
    %v1299 = vpop.f32.mrf.mxu0
    %v1300 = vadd.f32 0.0, %v1299
    %1301 = vmatmul.bf16.gmra.mxu0 %v831
    %v1302 = vpop.f32.mrf.mxu0
    %v1303 = vadd.f32 0.0, %v1302
    %v1304 = vpop.f32.mrf.mxu0
    %v1305 = vadd.f32 0.0, %v1304
    %1306 = vmatmul.bf16.gmra.mxu0 %v849
    %v1307 = vpop.f32.mrf.mxu0
    %v1308 = vadd.f32 0.0, %v1307
    %v1309 = vpop.f32.mrf.mxu0
    %v1310 = vadd.f32 0.0, %v1309
    %1311 = vmatmul.bf16.gmra.mxu0 %v867
    %v1312 = vpop.f32.mrf.mxu0
    %v1313 = vadd.f32 0.0, %v1312
    %v1314 = vpop.f32.mrf.mxu0
    %v1315 = vadd.f32 0.0, %v1314
    %1316 = vmatmul.bf16.gmra.mxu0 %v885
    %v1317 = vpop.f32.mrf.mxu0
    %v1318 = vadd.f32 0.0, %v1317
    %v1319 = vpop.f32.mrf.mxu0
    %v1320 = vadd.f32 0.0, %v1319
    %1321 = vmatmul.bf16.gmra.mxu0 %v903
    %v1322 = vpop.f32.mrf.mxu0
    %v1323 = vadd.f32 0.0, %v1322
    %v1324 = vpop.f32.mrf.mxu0
    %v1325 = vadd.f32 0.0, %v1324
    %1326 = vmatmul.bf16.gmra.mxu0 %v913
    %v1327 = vpop.f32.mrf.mxu0
    %v1328 = vadd.f32 0.0, %v1327
    %v1329 = vpop.f32.mrf.mxu0
    %1330 = vdwg.mxu0
    %1331 = vmatpush.bf16.msra.mxu0 %v1137
    %1332 = vmatpush.bf16.msra.mxu0 %v1134
    %1333 = vmatpush.bf16.msra.mxu0 %v1131
    %1334 = vmatpush.bf16.msra.mxu0 %v1128
    %1335 = vmatpush.bf16.msra.mxu0 %v1125
    %1336 = vmatpush.bf16.msra.mxu0 %v1122
    %1337 = vmatpush.bf16.msra.mxu0 %v1119
    %1338 = vmatpush.bf16.msra.mxu0 %v1116
    %1339 = vmatmul.bf16.gmra.mxu0 %v796
    %v1340 = vpop.f32.mrf.mxu0
    %v1341 = vadd.f32 %v1293, %v1340
    %v1342 = vpop.f32.mrf.mxu0
    %v1343 = vadd.f32 %v1295, %v1342
    %1344 = vmatmul.bf16.gmra.mxu0 %v814
    %v1345 = vpop.f32.mrf.mxu0
    %v1346 = vadd.f32 %v1298, %v1345
    %v1347 = vpop.f32.mrf.mxu0
    %v1348 = vadd.f32 %v1300, %v1347
    %1349 = vmatmul.bf16.gmra.mxu0 %v832
    %v1350 = vpop.f32.mrf.mxu0
    %v1351 = vadd.f32 %v1303, %v1350
    %v1352 = vpop.f32.mrf.mxu0
    %v1353 = vadd.f32 %v1305, %v1352
    %1354 = vmatmul.bf16.gmra.mxu0 %v850
    %v1355 = vpop.f32.mrf.mxu0
    %v1356 = vadd.f32 %v1308, %v1355
    %v1357 = vpop.f32.mrf.mxu0
    %v1358 = vadd.f32 %v1310, %v1357
    %1359 = vmatmul.bf16.gmra.mxu0 %v868
    %v1360 = vpop.f32.mrf.mxu0
    %v1361 = vadd.f32 %v1313, %v1360
    %v1362 = vpop.f32.mrf.mxu0
    %v1363 = vadd.f32 %v1315, %v1362
    %1364 = vmatmul.bf16.gmra.mxu0 %v886
    %v1365 = vpop.f32.mrf.mxu0
    %v1366 = vadd.f32 %v1318, %v1365
    %v1367 = vpop.f32.mrf.mxu0
    %v1368 = vadd.f32 %v1320, %v1367
    %1369 = vmatmul.bf16.gmra.mxu0 %v904
    %v1370 = vpop.f32.mrf.mxu0
    %v1371 = vadd.f32 %v1323, %v1370
    %v1372 = vpop.f32.mrf.mxu0
    %v1373 = vadd.f32 %v1325, %v1372
    %1374 = vmatmul.bf16.gmra.mxu0 %v914
    %v1375 = vpop.f32.mrf.mxu0
    %v1376 = vadd.f32 %v1328, %v1375
    %v1377 = vpop.f32.mrf.mxu0
    %1378 = vdwg.mxu0
    %1379 = vmatpush.bf16.msra.mxu0 %v1114
    %1380 = vmatpush.bf16.msra.mxu0 %v1111
    %1381 = vmatpush.bf16.msra.mxu0 %v1108
    %1382 = vmatpush.bf16.msra.mxu0 %v1105
    %1383 = vmatpush.bf16.msra.mxu0 %v1102
    %1384 = vmatpush.bf16.msra.mxu0 %v1099
    %1385 = vmatpush.bf16.msra.mxu0 %v1096
    %1386 = vmatpush.bf16.msra.mxu0 %v1093
    %1387 = vmatmul.bf16.gmra.mxu0 %v795
    %v1388 = vpop.f32.mrf.mxu0
    %v1389 = vadd.f32 0.0, %v1388
    %v1390 = vpop.f32.mrf.mxu0
    %v1391 = vadd.f32 0.0, %v1390
    %1392 = vmatmul.bf16.gmra.mxu0 %v813
    %v1393 = vpop.f32.mrf.mxu0
    %v1394 = vadd.f32 0.0, %v1393
    %v1395 = vpop.f32.mrf.mxu0
    %v1396 = vadd.f32 0.0, %v1395
    %1397 = vmatmul.bf16.gmra.mxu0 %v831
    %v1398 = vpop.f32.mrf.mxu0
    %v1399 = vadd.f32 0.0, %v1398
    %v1400 = vpop.f32.mrf.mxu0
    %v1401 = vadd.f32 0.0, %v1400
    %1402 = vmatmul.bf16.gmra.mxu0 %v849
    %v1403 = vpop.f32.mrf.mxu0
    %v1404 = vadd.f32 0.0, %v1403
    %v1405 = vpop.f32.mrf.mxu0
    %v1406 = vadd.f32 0.0, %v1405
    %1407 = vmatmul.bf16.gmra.mxu0 %v867
    %v1408 = vpop.f32.mrf.mxu0
    %v1409 = vadd.f32 0.0, %v1408
    %v1410 = vpop.f32.mrf.mxu0
    %v1411 = vadd.f32 0.0, %v1410
    %1412 = vmatmul.bf16.gmra.mxu0 %v885
    %v1413 = vpop.f32.mrf.mxu0
    %v1414 = vadd.f32 0.0, %v1413
    %v1415 = vpop.f32.mrf.mxu0
    %v1416 = vadd.f32 0.0, %v1415
    %1417 = vmatmul.bf16.gmra.mxu0 %v903
    %v1418 = vpop.f32.mrf.mxu0
    %v1419 = vadd.f32 0.0, %v1418
    %v1420 = vpop.f32.mrf.mxu0
    %v1421 = vadd.f32 0.0, %v1420
    %1422 = vmatmul.bf16.gmra.mxu0 %v913
    %v1423 = vpop.f32.mrf.mxu0
    %v1424 = vadd.f32 0.0, %v1423
    %v1425 = vpop.f32.mrf.mxu0
    %1426 = vdwg.mxu0
    %1427 = vmatpush.bf16.msra.mxu0 %v1138
    %1428 = vmatpush.bf16.msra.mxu0 %v1135
    %1429 = vmatpush.bf16.msra.mxu0 %v1132
    %1430 = vmatpush.bf16.msra.mxu0 %v1129
    %1431 = vmatpush.bf16.msra.mxu0 %v1126
    %1432 = vmatpush.bf16.msra.mxu0 %v1123
    %1433 = vmatpush.bf16.msra.mxu0 %v1120
    %1434 = vmatpush.bf16.msra.mxu0 %v1117
    %1435 = vmatmul.bf16.gmra.mxu0 %v796
    %v1436 = vpop.f32.mrf.mxu0
    %v1437 = vadd.f32 %v1389, %v1436
    %v1438 = vpop.f32.mrf.mxu0
    %v1439 = vadd.f32 %v1391, %v1438
    %1440 = vmatmul.bf16.gmra.mxu0 %v814
    %v1441 = vpop.f32.mrf.mxu0
    %v1442 = vadd.f32 %v1394, %v1441
    %v1443 = vpop.f32.mrf.mxu0
    %v1444 = vadd.f32 %v1396, %v1443
    %1445 = vmatmul.bf16.gmra.mxu0 %v832
    %v1446 = vpop.f32.mrf.mxu0
    %v1447 = vadd.f32 %v1399, %v1446
    %v1448 = vpop.f32.mrf.mxu0
    %v1449 = vadd.f32 %v1401, %v1448
    %1450 = vmatmul.bf16.gmra.mxu0 %v850
    %v1451 = vpop.f32.mrf.mxu0
    %v1452 = vadd.f32 %v1404, %v1451
    %v1453 = vpop.f32.mrf.mxu0
    %v1454 = vadd.f32 %v1406, %v1453
    %1455 = vmatmul.bf16.gmra.mxu0 %v868
    %v1456 = vpop.f32.mrf.mxu0
    %v1457 = vadd.f32 %v1409, %v1456
    %v1458 = vpop.f32.mrf.mxu0
    %v1459 = vadd.f32 %v1411, %v1458
    %1460 = vmatmul.bf16.gmra.mxu0 %v886
    %v1461 = vpop.f32.mrf.mxu0
    %v1462 = vadd.f32 %v1414, %v1461
    %v1463 = vpop.f32.mrf.mxu0
    %v1464 = vadd.f32 %v1416, %v1463
    %1465 = vmatmul.bf16.gmra.mxu0 %v904
    %v1466 = vpop.f32.mrf.mxu0
    %v1467 = vadd.f32 %v1419, %v1466
    %v1468 = vpop.f32.mrf.mxu0
    %v1469 = vadd.f32 %v1421, %v1468
    %1470 = vmatmul.bf16.gmra.mxu0 %v914
    %v1471 = vpop.f32.mrf.mxu0
    %v1472 = vadd.f32 %v1424, %v1471
    %v1473 = vpop.f32.mrf.mxu0
    %1474 = vdwg.mxu0
    %v1520 = vrot.slane %v1341, 7
    %v1521 = vrot.slane %v1437, 6
    %v1522 = vrot.slane %v1343, 7
    %v1523 = vrot.slane %v1439, 6
    %v1524 = vrot.slane %v1346, 7
    %v1525 = vrot.slane %v1442, 6
    %v1526 = vrot.slane %v1348, 7
    %v1527 = vrot.slane %v1444, 6
    %v1528 = vrot.slane %v1351, 7
    %v1529 = vrot.slane %v1447, 6
    %v1530 = vrot.slane %v1353, 7
    %v1531 = vrot.slane %v1449, 6
    %v1532 = vrot.slane %v1356, 7
    %v1533 = vrot.slane %v1452, 6
    %v1534 = vrot.slane %v1358, 7
    %v1535 = vrot.slane %v1454, 6
    %v1536 = vrot.slane %v1361, 7
    %v1537 = vrot.slane %v1457, 6
    %v1538 = vrot.slane %v1363, 7
    %v1539 = vrot.slane %v1459, 6
    %v1540 = vrot.slane %v1366, 7
    %v1541 = vrot.slane %v1462, 6
    %v1542 = vrot.slane %v1368, 7
    %v1543 = vrot.slane %v1464, 6
    %v1544 = vrot.slane %v1371, 7
    %v1545 = vrot.slane %v1467, 6
    %v1546 = vrot.slane %v1373, 7
    %v1547 = vrot.slane %v1469, 6
    %v1548 = vrot.slane %v1376, 7
    %v1549 = vrot.slane %v1472, 6
    %v1550 = vsel %vm392, %v1245, %v1520
    %vm1551 = vcmask 1041408
    %v1552 = vsel %vm1551, %v1550, %v1521
    %v1553 = vsel %vm396, %v1245, %v1520
    %vm1554 = vcmask 1042433
    %v1555 = vsel %vm1554, %v1553, %v1521
    %v1556 = vrot.slane %v1555, 1
    %v1557 = vsel %vm400, %v1245, %v1520
    %vm1558 = vcmask 1043458
    %v1559 = vsel %vm1558, %v1557, %v1521
    %v1560 = vrot.slane %v1559, 2
    %v1561 = vsel %vm404, %v1245, %v1520
    %vm1562 = vcmask 1044483
    %v1563 = vsel %vm1562, %v1561, %v1521
    %v1564 = vrot.slane %v1563, 3
    %v1565 = vsel %vm408, %v1245, %v1520
    %vm1566 = vcmask 1045508
    %v1567 = vsel %vm1566, %v1565, %v1521
    %v1568 = vrot.slane %v1567, 4
    %v1569 = vsel %vm412, %v1245, %v1520
    %vm1570 = vcmask 1046533
    %v1571 = vsel %vm1570, %v1569, %v1521
    %v1572 = vrot.slane %v1571, 5
    %v1573 = vsel %vm416, %v1245, %v1520
    %vm1574 = vcmask 1045504
    %v1575 = vsel %vm1574, %v1521, %v1573
    %v1576 = vrot.slane %v1575, 6
    %v1577 = vsel %vm420, %v1520, %v1245
    %vm1578 = vcmask 1046529
    %v1579 = vsel %vm1578, %v1521, %v1577
    %v1580 = vrot.slane %v1579, 7
    %v1581 = vsel %vm392, %v1247, %v1522
    %v1582 = vsel %vm1551, %v1581, %v1523
    %v1583 = vsel %vm396, %v1247, %v1522
    %v1584 = vsel %vm1554, %v1583, %v1523
    %v1585 = vrot.slane %v1584, 1
    %v1586 = vsel %vm400, %v1247, %v1522
    %v1587 = vsel %vm1558, %v1586, %v1523
    %v1588 = vrot.slane %v1587, 2
    %v1589 = vsel %vm404, %v1247, %v1522
    %v1590 = vsel %vm1562, %v1589, %v1523
    %v1591 = vrot.slane %v1590, 3
    %v1592 = vsel %vm408, %v1247, %v1522
    %v1593 = vsel %vm1566, %v1592, %v1523
    %v1594 = vrot.slane %v1593, 4
    %v1595 = vsel %vm412, %v1247, %v1522
    %v1596 = vsel %vm1570, %v1595, %v1523
    %v1597 = vrot.slane %v1596, 5
    %v1598 = vsel %vm416, %v1247, %v1522
    %v1599 = vsel %vm1574, %v1523, %v1598
    %v1600 = vrot.slane %v1599, 6
    %v1601 = vsel %vm420, %v1522, %v1247
    %v1602 = vsel %vm1578, %v1523, %v1601
    %v1603 = vrot.slane %v1602, 7
    %v1604 = vsel %vm392, %v1250, %v1524
    %v1605 = vsel %vm1551, %v1604, %v1525
    %v1606 = vsel %vm396, %v1250, %v1524
    %v1607 = vsel %vm1554, %v1606, %v1525
    %v1608 = vrot.slane %v1607, 1
    %v1609 = vsel %vm400, %v1250, %v1524
    %v1610 = vsel %vm1558, %v1609, %v1525
    %v1611 = vrot.slane %v1610, 2
    %v1612 = vsel %vm404, %v1250, %v1524
    %v1613 = vsel %vm1562, %v1612, %v1525
    %v1614 = vrot.slane %v1613, 3
    %v1615 = vsel %vm408, %v1250, %v1524
    %v1616 = vsel %vm1566, %v1615, %v1525
    %v1617 = vrot.slane %v1616, 4
    %v1618 = vsel %vm412, %v1250, %v1524
    %v1619 = vsel %vm1570, %v1618, %v1525
    %v1620 = vrot.slane %v1619, 5
    %v1621 = vsel %vm416, %v1250, %v1524
    %v1622 = vsel %vm1574, %v1525, %v1621
    %v1623 = vrot.slane %v1622, 6
    %v1624 = vsel %vm420, %v1524, %v1250
    %v1625 = vsel %vm1578, %v1525, %v1624
    %v1626 = vrot.slane %v1625, 7
    %v1627 = vsel %vm392, %v1252, %v1526
    %v1628 = vsel %vm1551, %v1627, %v1527
    %v1629 = vsel %vm396, %v1252, %v1526
    %v1630 = vsel %vm1554, %v1629, %v1527
    %v1631 = vrot.slane %v1630, 1
    %v1632 = vsel %vm400, %v1252, %v1526
    %v1633 = vsel %vm1558, %v1632, %v1527
    %v1634 = vrot.slane %v1633, 2
    %v1635 = vsel %vm404, %v1252, %v1526
    %v1636 = vsel %vm1562, %v1635, %v1527
    %v1637 = vrot.slane %v1636, 3
    %v1638 = vsel %vm408, %v1252, %v1526
    %v1639 = vsel %vm1566, %v1638, %v1527
    %v1640 = vrot.slane %v1639, 4
    %v1641 = vsel %vm412, %v1252, %v1526
    %v1642 = vsel %vm1570, %v1641, %v1527
    %v1643 = vrot.slane %v1642, 5
    %v1644 = vsel %vm416, %v1252, %v1526
    %v1645 = vsel %vm1574, %v1527, %v1644
    %v1646 = vrot.slane %v1645, 6
    %v1647 = vsel %vm420, %v1526, %v1252
    %v1648 = vsel %vm1578, %v1527, %v1647
    %v1649 = vrot.slane %v1648, 7
    %v1650 = vsel %vm392, %v1255, %v1528
    %v1651 = vsel %vm1551, %v1650, %v1529
    %v1652 = vsel %vm396, %v1255, %v1528
    %v1653 = vsel %vm1554, %v1652, %v1529
    %v1654 = vrot.slane %v1653, 1
    %v1655 = vsel %vm400, %v1255, %v1528
    %v1656 = vsel %vm1558, %v1655, %v1529
    %v1657 = vrot.slane %v1656, 2
    %v1658 = vsel %vm404, %v1255, %v1528
    %v1659 = vsel %vm1562, %v1658, %v1529
    %v1660 = vrot.slane %v1659, 3
    %v1661 = vsel %vm408, %v1255, %v1528
    %v1662 = vsel %vm1566, %v1661, %v1529
    %v1663 = vrot.slane %v1662, 4
    %v1664 = vsel %vm412, %v1255, %v1528
    %v1665 = vsel %vm1570, %v1664, %v1529
    %v1666 = vrot.slane %v1665, 5
    %v1667 = vsel %vm416, %v1255, %v1528
    %v1668 = vsel %vm1574, %v1529, %v1667
    %v1669 = vrot.slane %v1668, 6
    %v1670 = vsel %vm420, %v1528, %v1255
    %v1671 = vsel %vm1578, %v1529, %v1670
    %v1672 = vrot.slane %v1671, 7
    %v1673 = vsel %vm392, %v1257, %v1530
    %v1674 = vsel %vm1551, %v1673, %v1531
    %v1675 = vsel %vm396, %v1257, %v1530
    %v1676 = vsel %vm1554, %v1675, %v1531
    %v1677 = vrot.slane %v1676, 1
    %v1678 = vsel %vm400, %v1257, %v1530
    %v1679 = vsel %vm1558, %v1678, %v1531
    %v1680 = vrot.slane %v1679, 2
    %v1681 = vsel %vm404, %v1257, %v1530
    %v1682 = vsel %vm1562, %v1681, %v1531
    %v1683 = vrot.slane %v1682, 3
    %v1684 = vsel %vm408, %v1257, %v1530
    %v1685 = vsel %vm1566, %v1684, %v1531
    %v1686 = vrot.slane %v1685, 4
    %v1687 = vsel %vm412, %v1257, %v1530
    %v1688 = vsel %vm1570, %v1687, %v1531
    %v1689 = vrot.slane %v1688, 5
    %v1690 = vsel %vm416, %v1257, %v1530
    %v1691 = vsel %vm1574, %v1531, %v1690
    %v1692 = vrot.slane %v1691, 6
    %v1693 = vsel %vm420, %v1530, %v1257
    %v1694 = vsel %vm1578, %v1531, %v1693
    %v1695 = vrot.slane %v1694, 7
    %v1696 = vsel %vm392, %v1260, %v1532
    %v1697 = vsel %vm1551, %v1696, %v1533
    %v1698 = vsel %vm396, %v1260, %v1532
    %v1699 = vsel %vm1554, %v1698, %v1533
    %v1700 = vrot.slane %v1699, 1
    %v1701 = vsel %vm400, %v1260, %v1532
    %v1702 = vsel %vm1558, %v1701, %v1533
    %v1703 = vrot.slane %v1702, 2
    %v1704 = vsel %vm404, %v1260, %v1532
    %v1705 = vsel %vm1562, %v1704, %v1533
    %v1706 = vrot.slane %v1705, 3
    %v1707 = vsel %vm408, %v1260, %v1532
    %v1708 = vsel %vm1566, %v1707, %v1533
    %v1709 = vrot.slane %v1708, 4
    %v1710 = vsel %vm412, %v1260, %v1532
    %v1711 = vsel %vm1570, %v1710, %v1533
    %v1712 = vrot.slane %v1711, 5
    %v1713 = vsel %vm416, %v1260, %v1532
    %v1714 = vsel %vm1574, %v1533, %v1713
    %v1715 = vrot.slane %v1714, 6
    %v1716 = vsel %vm420, %v1532, %v1260
    %v1717 = vsel %vm1578, %v1533, %v1716
    %v1718 = vrot.slane %v1717, 7
    %v1719 = vsel %vm392, %v1262, %v1534
    %v1720 = vsel %vm1551, %v1719, %v1535
    %v1721 = vsel %vm396, %v1262, %v1534
    %v1722 = vsel %vm1554, %v1721, %v1535
    %v1723 = vrot.slane %v1722, 1
    %v1724 = vsel %vm400, %v1262, %v1534
    %v1725 = vsel %vm1558, %v1724, %v1535
    %v1726 = vrot.slane %v1725, 2
    %v1727 = vsel %vm404, %v1262, %v1534
    %v1728 = vsel %vm1562, %v1727, %v1535
    %v1729 = vrot.slane %v1728, 3
    %v1730 = vsel %vm408, %v1262, %v1534
    %v1731 = vsel %vm1566, %v1730, %v1535
    %v1732 = vrot.slane %v1731, 4
    %v1733 = vsel %vm412, %v1262, %v1534
    %v1734 = vsel %vm1570, %v1733, %v1535
    %v1735 = vrot.slane %v1734, 5
    %v1736 = vsel %vm416, %v1262, %v1534
    %v1737 = vsel %vm1574, %v1535, %v1736
    %v1738 = vrot.slane %v1737, 6
    %v1739 = vsel %vm420, %v1534, %v1262
    %v1740 = vsel %vm1578, %v1535, %v1739
    %v1741 = vrot.slane %v1740, 7
    %v1742 = vsel %vm392, %v1265, %v1536
    %v1743 = vsel %vm1551, %v1742, %v1537
    %v1744 = vsel %vm396, %v1265, %v1536
    %v1745 = vsel %vm1554, %v1744, %v1537
    %v1746 = vrot.slane %v1745, 1
    %v1747 = vsel %vm400, %v1265, %v1536
    %v1748 = vsel %vm1558, %v1747, %v1537
    %v1749 = vrot.slane %v1748, 2
    %v1750 = vsel %vm404, %v1265, %v1536
    %v1751 = vsel %vm1562, %v1750, %v1537
    %v1752 = vrot.slane %v1751, 3
    %v1753 = vsel %vm408, %v1265, %v1536
    %v1754 = vsel %vm1566, %v1753, %v1537
    %v1755 = vrot.slane %v1754, 4
    %v1756 = vsel %vm412, %v1265, %v1536
    %v1757 = vsel %vm1570, %v1756, %v1537
    %v1758 = vrot.slane %v1757, 5
    %v1759 = vsel %vm416, %v1265, %v1536
    %v1760 = vsel %vm1574, %v1537, %v1759
    %v1761 = vrot.slane %v1760, 6
    %v1762 = vsel %vm420, %v1536, %v1265
    %v1763 = vsel %vm1578, %v1537, %v1762
    %v1764 = vrot.slane %v1763, 7
    %v1765 = vsel %vm392, %v1267, %v1538
    %v1766 = vsel %vm1551, %v1765, %v1539
    %v1767 = vsel %vm396, %v1267, %v1538
    %v1768 = vsel %vm1554, %v1767, %v1539
    %v1769 = vrot.slane %v1768, 1
    %v1770 = vsel %vm400, %v1267, %v1538
    %v1771 = vsel %vm1558, %v1770, %v1539
    %v1772 = vrot.slane %v1771, 2
    %v1773 = vsel %vm404, %v1267, %v1538
    %v1774 = vsel %vm1562, %v1773, %v1539
    %v1775 = vrot.slane %v1774, 3
    %v1776 = vsel %vm408, %v1267, %v1538
    %v1777 = vsel %vm1566, %v1776, %v1539
    %v1778 = vrot.slane %v1777, 4
    %v1779 = vsel %vm412, %v1267, %v1538
    %v1780 = vsel %vm1570, %v1779, %v1539
    %v1781 = vrot.slane %v1780, 5
    %v1782 = vsel %vm416, %v1267, %v1538
    %v1783 = vsel %vm1574, %v1539, %v1782
    %v1784 = vrot.slane %v1783, 6
    %v1785 = vsel %vm420, %v1538, %v1267
    %v1786 = vsel %vm1578, %v1539, %v1785
    %v1787 = vrot.slane %v1786, 7
    %v1788 = vsel %vm392, %v1270, %v1540
    %v1789 = vsel %vm1551, %v1788, %v1541
    %v1790 = vsel %vm396, %v1270, %v1540
    %v1791 = vsel %vm1554, %v1790, %v1541
    %v1792 = vrot.slane %v1791, 1
    %v1793 = vsel %vm400, %v1270, %v1540
    %v1794 = vsel %vm1558, %v1793, %v1541
    %v1795 = vrot.slane %v1794, 2
    %v1796 = vsel %vm404, %v1270, %v1540
    %v1797 = vsel %vm1562, %v1796, %v1541
    %v1798 = vrot.slane %v1797, 3
    %v1799 = vsel %vm408, %v1270, %v1540
    %v1800 = vsel %vm1566, %v1799, %v1541
    %v1801 = vrot.slane %v1800, 4
    %v1802 = vsel %vm412, %v1270, %v1540
    %v1803 = vsel %vm1570, %v1802, %v1541
    %v1804 = vrot.slane %v1803, 5
    %v1805 = vsel %vm416, %v1270, %v1540
    %v1806 = vsel %vm1574, %v1541, %v1805
    %v1807 = vrot.slane %v1806, 6
    %v1808 = vsel %vm420, %v1540, %v1270
    %v1809 = vsel %vm1578, %v1541, %v1808
    %v1810 = vrot.slane %v1809, 7
    %v1811 = vsel %vm392, %v1272, %v1542
    %v1812 = vsel %vm1551, %v1811, %v1543
    %v1813 = vsel %vm396, %v1272, %v1542
    %v1814 = vsel %vm1554, %v1813, %v1543
    %v1815 = vrot.slane %v1814, 1
    %v1816 = vsel %vm400, %v1272, %v1542
    %v1817 = vsel %vm1558, %v1816, %v1543
    %v1818 = vrot.slane %v1817, 2
    %v1819 = vsel %vm404, %v1272, %v1542
    %v1820 = vsel %vm1562, %v1819, %v1543
    %v1821 = vrot.slane %v1820, 3
    %v1822 = vsel %vm408, %v1272, %v1542
    %v1823 = vsel %vm1566, %v1822, %v1543
    %v1824 = vrot.slane %v1823, 4
    %v1825 = vsel %vm412, %v1272, %v1542
    %v1826 = vsel %vm1570, %v1825, %v1543
    %v1827 = vrot.slane %v1826, 5
    %v1828 = vsel %vm416, %v1272, %v1542
    %v1829 = vsel %vm1574, %v1543, %v1828
    %v1830 = vrot.slane %v1829, 6
    %v1831 = vsel %vm420, %v1542, %v1272
    %v1832 = vsel %vm1578, %v1543, %v1831
    %v1833 = vrot.slane %v1832, 7
    %v1834 = vsel %vm392, %v1275, %v1544
    %v1835 = vsel %vm1551, %v1834, %v1545
    %v1836 = vsel %vm396, %v1275, %v1544
    %v1837 = vsel %vm1554, %v1836, %v1545
    %v1838 = vrot.slane %v1837, 1
    %v1839 = vsel %vm400, %v1275, %v1544
    %v1840 = vsel %vm1558, %v1839, %v1545
    %v1841 = vrot.slane %v1840, 2
    %v1842 = vsel %vm404, %v1275, %v1544
    %v1843 = vsel %vm1562, %v1842, %v1545
    %v1844 = vrot.slane %v1843, 3
    %v1845 = vsel %vm408, %v1275, %v1544
    %v1846 = vsel %vm1566, %v1845, %v1545
    %v1847 = vrot.slane %v1846, 4
    %v1848 = vsel %vm412, %v1275, %v1544
    %v1849 = vsel %vm1570, %v1848, %v1545
    %v1850 = vrot.slane %v1849, 5
    %v1851 = vsel %vm416, %v1275, %v1544
    %v1852 = vsel %vm1574, %v1545, %v1851
    %v1853 = vrot.slane %v1852, 6
    %v1854 = vsel %vm420, %v1544, %v1275
    %v1855 = vsel %vm1578, %v1545, %v1854
    %v1856 = vrot.slane %v1855, 7
    %v1857 = vsel %vm392, %v1277, %v1546
    %v1858 = vsel %vm1551, %v1857, %v1547
    %v1859 = vsel %vm396, %v1277, %v1546
    %v1860 = vsel %vm1554, %v1859, %v1547
    %v1861 = vrot.slane %v1860, 1
    %v1862 = vsel %vm400, %v1277, %v1546
    %v1863 = vsel %vm1558, %v1862, %v1547
    %v1864 = vrot.slane %v1863, 2
    %v1865 = vsel %vm404, %v1277, %v1546
    %v1866 = vsel %vm1562, %v1865, %v1547
    %v1867 = vrot.slane %v1866, 3
    %v1868 = vsel %vm408, %v1277, %v1546
    %v1869 = vsel %vm1566, %v1868, %v1547
    %v1870 = vrot.slane %v1869, 4
    %v1871 = vsel %vm412, %v1277, %v1546
    %v1872 = vsel %vm1570, %v1871, %v1547
    %v1873 = vrot.slane %v1872, 5
    %v1874 = vsel %vm416, %v1277, %v1546
    %v1875 = vsel %vm1574, %v1547, %v1874
    %v1876 = vrot.slane %v1875, 6
    %v1877 = vsel %vm420, %v1546, %v1277
    %v1878 = vsel %vm1578, %v1547, %v1877
    %v1879 = vrot.slane %v1878, 7
    %v1880 = vsel %vm392, %v1280, %v1548
    %v1881 = vsel %vm1551, %v1880, %v1549
    %v1882 = vsel %vm396, %v1280, %v1548
    %v1883 = vsel %vm1554, %v1882, %v1549
    %v1884 = vrot.slane %v1883, 1
    %v1885 = vsel %vm400, %v1280, %v1548
    %v1886 = vsel %vm1558, %v1885, %v1549
    %v1887 = vrot.slane %v1886, 2
    %v1888 = vsel %vm404, %v1280, %v1548
    %v1889 = vsel %vm1562, %v1888, %v1549
    %v1890 = vrot.slane %v1889, 3
    %v1891 = vsel %vm408, %v1280, %v1548
    %v1892 = vsel %vm1566, %v1891, %v1549
    %v1893 = vrot.slane %v1892, 4
    %v1894 = vsel %vm412, %v1280, %v1548
    %v1895 = vsel %vm1570, %v1894, %v1549
    %v1896 = vrot.slane %v1895, 5
    %v1897 = vsel %vm416, %v1280, %v1548
    %v1898 = vsel %vm1574, %v1549, %v1897
    %v1899 = vrot.slane %v1898, 6
    %v1900 = vsel %vm420, %v1548, %v1280
    %v1901 = vsel %vm1578, %v1549, %v1900
    %v1902 = vrot.slane %v1901, 7
    %v1903 = vld [vmem:[#allocation2 + $0x184] sm:$0xff]
    %v1904 = vld [vmem:[#allocation2 + $0x190] sm:$0xff]
    %v1905 = vld [vmem:[#allocation2 + $0x19c] sm:$0xff]
    %v1906 = vld [vmem:[#allocation2 + $0x1a8] sm:$0xff]
    %v1907 = vld [vmem:[#allocation2 + $0x1b4] sm:$0xff]
    %v1908 = vld [vmem:[#allocation2 + $0x1c0] sm:$0xff]
    %v1909 = vld [vmem:[#allocation2 + $0x1cc] sm:$0xff]
    %v1910 = vld [vmem:[#allocation2 + $0x1d8] sm:$0xff]
    %v1911 = vld [vmem:[#allocation2 + $0x1e4] sm:$0xff]
    %v1912 = vld [vmem:[#allocation2 + $0x1f0] sm:$0xff]
    %v1913 = vld [vmem:[#allocation2 + $0x1fc] sm:$0xff]
    %v1914 = vld [vmem:[#allocation2 + $0x208] sm:$0xff]
    %v1915 = vld [vmem:[#allocation2 + $0x214] sm:$0xff]
    %v1916 = vld [vmem:[#allocation2 + $0x220] sm:$0xff]
    %v1917 = vld [vmem:[#allocation2 + $0x22c] sm:$0xff]
    %v1918 = vld [vmem:[#allocation2 + $0x238] sm:$0xff]
    %v1919 = vld [vmem:[#allocation2 + $0x244] sm:$0xff]
    %v1920 = vld [vmem:[#allocation2 + $0x250] sm:$0xff]
    %v1921 = vld [vmem:[#allocation2 + $0x25c] sm:$0xff]
    %v1922 = vld [vmem:[#allocation2 + $0x268] sm:$0xff]
    %v1923 = vld [vmem:[#allocation2 + $0x274] sm:$0xff]
    %v1924 = vld [vmem:[#allocation2 + $0x280] sm:$0xff]
    %v1925 = vld [vmem:[#allocation2 + $0x28c] sm:$0xff]
    %v1926 = vld [vmem:[#allocation2 + $0x298] sm:$0xff]
    %v1927 = vld [vmem:[#allocation2 + $0x2a4] sm:$0xff]
    %v1928 = vld [vmem:[#allocation2 + $0x2b0] sm:$0xff]
    %v1929 = vld [vmem:[#allocation2 + $0x2bc] sm:$0xff]
    %v1930 = vld [vmem:[#allocation2 + $0x2c8] sm:$0xff]
    %v1931 = vld [vmem:[#allocation2 + $0x2d4] sm:$0xff]
    %v1932 = vld [vmem:[#allocation2 + $0x2e0] sm:$0xff]
    %v1933 = vld [vmem:[#allocation2 + $0x2ec] sm:$0xff]
    %v1934 = vld [vmem:[#allocation2 + $0x2f8] sm:$0xff]
    %1935 = vst [vmem:[#allocation1] sm:$0xff] %v191
    %1937 = vst [vmem:[#allocation1 + $0x9] sm:$0xff] %v219
    %s1938 = scalar_lea.vmem [#allocation1], 1
    %v1939 = vld [vmem:[%s1938] ss:$9 sm:$0xff]
    %s1941 = scalar_lea.vmem [#allocation1], 2
    %v1942 = vld [vmem:[%s1941] ss:$9 sm:$0xff]
    %s1944 = scalar_lea.vmem [#allocation1], 3
    %v1945 = vld [vmem:[%s1944] ss:$9 sm:$0xff]
    %s1947 = scalar_lea.vmem [#allocation1], 4
    %v1948 = vld [vmem:[%s1947] ss:$9 sm:$0xff]
    %s1950 = scalar_lea.vmem [#allocation1], 5
    %v1951 = vld [vmem:[%s1950] ss:$9 sm:$0xff]
    %s1953 = scalar_lea.vmem [#allocation1], 6
    %v1954 = vld [vmem:[%s1953] ss:$9 sm:$0xff]
    %s1956 = scalar_lea.vmem [#allocation1], 7
    %v1957 = vld [vmem:[%s1956] ss:$9 sm:$0xff]
    %1959 = vst [vmem:[#allocation1] sm:$0xff] %v192
    %1961 = vst [vmem:[#allocation1 + $0x9] sm:$0xff] %v220
    %v1962 = vld [vmem:[#allocation1] ss:$9 sm:$0xff]
    %1964 = vst [vmem:[#allocation1] sm:$0xff] %v193
    %1966 = vst [vmem:[#allocation1 + $0x9] sm:$0xff] %v233
    %v1967 = vld [vmem:[%s1938] ss:$9 sm:$0xff]
    %v1969 = vld [vmem:[%s1941] ss:$9 sm:$0xff]
    %v1971 = vld [vmem:[%s1944] ss:$9 sm:$0xff]
    %v1973 = vld [vmem:[%s1947] ss:$9 sm:$0xff]
    %v1975 = vld [vmem:[%s1950] ss:$9 sm:$0xff]
    %v1977 = vld [vmem:[%s1953] ss:$9 sm:$0xff]
    %v1979 = vld [vmem:[%s1956] ss:$9 sm:$0xff]
    %1981 = vst [vmem:[#allocation1] sm:$0xff] %v194
    %1983 = vst [vmem:[#allocation1 + $0x9] sm:$0xff] %v234
    %v1984 = vld [vmem:[#allocation1] ss:$9 sm:$0xff]
    %1986 = vst [vmem:[#allocation1] sm:$0xff] %v195
    %1988 = vst [vmem:[#allocation1 + $0x9] sm:$0xff] %v247
    %v1989 = vld [vmem:[%s1938] ss:$9 sm:$0xff]
    %v1991 = vld [vmem:[%s1941] ss:$9 sm:$0xff]
    %v1993 = vld [vmem:[%s1944] ss:$9 sm:$0xff]
    %v1995 = vld [vmem:[%s1947] ss:$9 sm:$0xff]
    %v1997 = vld [vmem:[%s1950] ss:$9 sm:$0xff]
    %v1999 = vld [vmem:[%s1953] ss:$9 sm:$0xff]
    %v2001 = vld [vmem:[%s1956] ss:$9 sm:$0xff]
    %2003 = vst [vmem:[#allocation1] sm:$0xff] %v196
    %2005 = vst [vmem:[#allocation1 + $0x9] sm:$0xff] %v248
    %v2006 = vld [vmem:[#allocation1] ss:$9 sm:$0xff]
    %2008 = vst [vmem:[#allocation1] sm:$0xff] %v197
    %2010 = vst [vmem:[#allocation1 + $0x9] sm:$0xff] %v261
    %v2011 = vld [vmem:[%s1938] ss:$9 sm:$0xff]
    %v2013 = vld [vmem:[%s1941] ss:$9 sm:$0xff]
    %v2015 = vld [vmem:[%s1944] ss:$9 sm:$0xff]
    %v2017 = vld [vmem:[%s1947] ss:$9 sm:$0xff]
    %v2019 = vld [vmem:[%s1950] ss:$9 sm:$0xff]
    %v2021 = vld [vmem:[%s1953] ss:$9 sm:$0xff]
    %v2023 = vld [vmem:[%s1956] ss:$9 sm:$0xff]
    %2025 = vst [vmem:[#allocation1] sm:$0xff] %v198
    %2027 = vst [vmem:[#allocation1 + $0x9] sm:$0xff] %v262
    %v2028 = vld [vmem:[#allocation1] ss:$9 sm:$0xff]
    %2030 = vst [vmem:[#allocation1] sm:$0xff] %v199
    %2032 = vst [vmem:[#allocation1 + $0x9] sm:$0xff] %v275
    %v2033 = vld [vmem:[%s1938] ss:$9 sm:$0xff]
    %v2035 = vld [vmem:[%s1941] ss:$9 sm:$0xff]
    %v2037 = vld [vmem:[%s1944] ss:$9 sm:$0xff]
    %v2039 = vld [vmem:[%s1947] ss:$9 sm:$0xff]
    %v2041 = vld [vmem:[%s1950] ss:$9 sm:$0xff]
    %v2043 = vld [vmem:[%s1953] ss:$9 sm:$0xff]
    %v2045 = vld [vmem:[%s1956] ss:$9 sm:$0xff]
    %2047 = vst [vmem:[#allocation1] sm:$0xff] %v200
    %2049 = vst [vmem:[#allocation1 + $0x9] sm:$0xff] %v276
    %v2050 = vld [vmem:[#allocation1] ss:$9 sm:$0xff]
    %2052 = vst [vmem:[#allocation1] sm:$0xff] %v201
    %2054 = vst [vmem:[#allocation1 + $0x9] sm:$0xff] %v289
    %v2055 = vld [vmem:[%s1938] ss:$9 sm:$0xff]
    %v2057 = vld [vmem:[%s1941] ss:$9 sm:$0xff]
    %v2059 = vld [vmem:[%s1944] ss:$9 sm:$0xff]
    %v2061 = vld [vmem:[%s1947] ss:$9 sm:$0xff]
    %v2063 = vld [vmem:[%s1950] ss:$9 sm:$0xff]
    %v2065 = vld [vmem:[%s1953] ss:$9 sm:$0xff]
    %v2067 = vld [vmem:[%s1956] ss:$9 sm:$0xff]
    %2069 = vst [vmem:[#allocation1] sm:$0xff] %v202
    %2071 = vst [vmem:[#allocation1 + $0x9] sm:$0xff] %v290
    %v2072 = vld [vmem:[#allocation1] ss:$9 sm:$0xff]
    %2074 = vst [vmem:[#allocation1] sm:$0xff] %v203
    %2076 = vst [vmem:[#allocation1 + $0x9] sm:$0xff] %v303
    %v2077 = vld [vmem:[%s1938] ss:$9 sm:$0xff]
    %v2079 = vld [vmem:[%s1941] ss:$9 sm:$0xff]
    %v2081 = vld [vmem:[%s1944] ss:$9 sm:$0xff]
    %v2083 = vld [vmem:[%s1947] ss:$9 sm:$0xff]
    %v2085 = vld [vmem:[%s1950] ss:$9 sm:$0xff]
    %v2087 = vld [vmem:[%s1953] ss:$9 sm:$0xff]
    %v2089 = vld [vmem:[%s1956] ss:$9 sm:$0xff]
    %2091 = vst [vmem:[#allocation1] sm:$0xff] %v204
    %2093 = vst [vmem:[#allocation1 + $0x9] sm:$0xff] %v304
    %v2094 = vld [vmem:[#allocation1] ss:$9 sm:$0xff]
    %2096 = vst [vmem:[#allocation1] sm:$0xff] %v205
    %2098 = vst [vmem:[#allocation1 + $0x9] sm:$0xff] %v317
    %v2099 = vld [vmem:[%s1938] ss:$9 sm:$0xff]
    %v2101 = vld [vmem:[%s1941] ss:$9 sm:$0xff]
    %v2103 = vld [vmem:[%s1944] ss:$9 sm:$0xff]
    %v2105 = vld [vmem:[%s1947] ss:$9 sm:$0xff]
    %v2107 = vld [vmem:[%s1950] ss:$9 sm:$0xff]
    %v2109 = vld [vmem:[%s1953] ss:$9 sm:$0xff]
    %v2111 = vld [vmem:[%s1956] ss:$9 sm:$0xff]
    %2113 = vst [vmem:[#allocation1] sm:$0xff] %v206
    %2115 = vst [vmem:[#allocation1 + $0x9] sm:$0xff] %v318
    %v2116 = vld [vmem:[#allocation1] ss:$9 sm:$0xff]
    %v2118 = vunpack.i.l.s16 %v1939
    %v2119 = vunpack.i.h.s16 %v1939
    %v2120 = vunpack.i.l.s16 %v1942
    %v2121 = vunpack.i.h.s16 %v1942
    %v2122 = vunpack.i.l.s16 %v1945
    %v2123 = vunpack.i.h.s16 %v1945
    %v2124 = vunpack.i.l.s16 %v1948
    %v2125 = vunpack.i.h.s16 %v1948
    %v2126 = vunpack.i.l.s16 %v1951
    %v2127 = vunpack.i.h.s16 %v1951
    %v2128 = vunpack.i.l.s16 %v1954
    %v2129 = vunpack.i.h.s16 %v1954
    %v2130 = vunpack.i.l.s16 %v1957
    %v2131 = vunpack.i.h.s16 %v1957
    %v2132 = vunpack.i.l.s16 %v1962
    %v2133 = vunpack.i.l.s16 %v1967
    %v2134 = vunpack.i.h.s16 %v1967
    %v2135 = vunpack.i.l.s16 %v1969
    %v2136 = vunpack.i.h.s16 %v1969
    %v2137 = vunpack.i.l.s16 %v1971
    %v2138 = vunpack.i.h.s16 %v1971
    %v2139 = vunpack.i.l.s16 %v1973
    %v2140 = vunpack.i.h.s16 %v1973
    %v2141 = vunpack.i.l.s16 %v1975
    %v2142 = vunpack.i.h.s16 %v1975
    %v2143 = vunpack.i.l.s16 %v1977
    %v2144 = vunpack.i.h.s16 %v1977
    %v2145 = vunpack.i.l.s16 %v1979
    %v2146 = vunpack.i.h.s16 %v1979
    %v2147 = vunpack.i.l.s16 %v1984
    %v2148 = vunpack.i.l.s16 %v1989
    %v2149 = vunpack.i.h.s16 %v1989
    %v2150 = vunpack.i.l.s16 %v1991
    %v2151 = vunpack.i.h.s16 %v1991
    %v2152 = vunpack.i.l.s16 %v1993
    %v2153 = vunpack.i.h.s16 %v1993
    %v2154 = vunpack.i.l.s16 %v1995
    %v2155 = vunpack.i.h.s16 %v1995
    %v2156 = vunpack.i.l.s16 %v1997
    %v2157 = vunpack.i.h.s16 %v1997
    %v2158 = vunpack.i.l.s16 %v1999
    %v2159 = vunpack.i.h.s16 %v1999
    %v2160 = vunpack.i.l.s16 %v2001
    %v2161 = vunpack.i.h.s16 %v2001
    %v2162 = vunpack.i.l.s16 %v2006
    %v2163 = vunpack.i.l.s16 %v2011
    %v2164 = vunpack.i.h.s16 %v2011
    %v2165 = vunpack.i.l.s16 %v2013
    %v2166 = vunpack.i.h.s16 %v2013
    %v2167 = vunpack.i.l.s16 %v2015
    %v2168 = vunpack.i.h.s16 %v2015
    %v2169 = vunpack.i.l.s16 %v2017
    %v2170 = vunpack.i.h.s16 %v2017
    %v2171 = vunpack.i.l.s16 %v2019
    %v2172 = vunpack.i.h.s16 %v2019
    %v2173 = vunpack.i.l.s16 %v2021
    %v2174 = vunpack.i.h.s16 %v2021
    %v2175 = vunpack.i.l.s16 %v2023
    %v2176 = vunpack.i.h.s16 %v2023
    %v2177 = vunpack.i.l.s16 %v2028
    %v2178 = vunpack.i.l.s16 %v2033
    %v2179 = vunpack.i.h.s16 %v2033
    %v2180 = vunpack.i.l.s16 %v2035
    %v2181 = vunpack.i.h.s16 %v2035
    %v2182 = vunpack.i.l.s16 %v2037
    %v2183 = vunpack.i.h.s16 %v2037
    %v2184 = vunpack.i.l.s16 %v2039
    %v2185 = vunpack.i.h.s16 %v2039
    %v2186 = vunpack.i.l.s16 %v2041
    %v2187 = vunpack.i.h.s16 %v2041
    %v2188 = vunpack.i.l.s16 %v2043
    %v2189 = vunpack.i.h.s16 %v2043
    %v2190 = vunpack.i.l.s16 %v2045
    %v2191 = vunpack.i.h.s16 %v2045
    %v2192 = vunpack.i.l.s16 %v2050
    %v2193 = vunpack.i.l.s16 %v2055
    %v2194 = vunpack.i.h.s16 %v2055
    %v2195 = vunpack.i.l.s16 %v2057
    %v2196 = vunpack.i.h.s16 %v2057
    %v2197 = vunpack.i.l.s16 %v2059
    %v2198 = vunpack.i.h.s16 %v2059
    %v2199 = vunpack.i.l.s16 %v2061
    %v2200 = vunpack.i.h.s16 %v2061
    %v2201 = vunpack.i.l.s16 %v2063
    %v2202 = vunpack.i.h.s16 %v2063
    %v2203 = vunpack.i.l.s16 %v2065
    %v2204 = vunpack.i.h.s16 %v2065
    %v2205 = vunpack.i.l.s16 %v2067
    %v2206 = vunpack.i.h.s16 %v2067
    %v2207 = vunpack.i.l.s16 %v2072
    %v2208 = vunpack.i.l.s16 %v2077
    %v2209 = vunpack.i.h.s16 %v2077
    %v2210 = vunpack.i.l.s16 %v2079
    %v2211 = vunpack.i.h.s16 %v2079
    %v2212 = vunpack.i.l.s16 %v2081
    %v2213 = vunpack.i.h.s16 %v2081
    %v2214 = vunpack.i.l.s16 %v2083
    %v2215 = vunpack.i.h.s16 %v2083
    %v2216 = vunpack.i.l.s16 %v2085
    %v2217 = vunpack.i.h.s16 %v2085
    %v2218 = vunpack.i.l.s16 %v2087
    %v2219 = vunpack.i.h.s16 %v2087
    %v2220 = vunpack.i.l.s16 %v2089
    %v2221 = vunpack.i.h.s16 %v2089
    %v2222 = vunpack.i.l.s16 %v2094
    %v2223 = vunpack.i.l.s16 %v2099
    %v2224 = vunpack.i.h.s16 %v2099
    %v2225 = vunpack.i.l.s16 %v2101
    %v2226 = vunpack.i.h.s16 %v2101
    %v2227 = vunpack.i.l.s16 %v2103
    %v2228 = vunpack.i.h.s16 %v2103
    %v2229 = vunpack.i.l.s16 %v2105
    %v2230 = vunpack.i.h.s16 %v2105
    %v2231 = vunpack.i.l.s16 %v2107
    %v2232 = vunpack.i.h.s16 %v2107
    %v2233 = vunpack.i.l.s16 %v2109
    %v2234 = vunpack.i.h.s16 %v2109
    %v2235 = vunpack.i.l.s16 %v2111
    %v2236 = vunpack.i.h.s16 %v2111
    %v2237 = vunpack.i.l.s16 %v2116
    %v2238 = vpack.i.b16 %v2119, %v2118
    %v2239 = vpack.i.b16 %v2121, %v2120
    %v2240 = vpack.i.b16 %v2123, %v2122
    %v2241 = vpack.i.b16 %v2125, %v2124
    %v2242 = vpack.i.b16 %v2127, %v2126
    %v2243 = vpack.i.b16 %v2129, %v2128
    %v2244 = vpack.i.b16 %v2131, %v2130
    %v2245 = vpack.i.b16 %v2133, %v2132
    %v2246 = vpack.i.b16 %v2135, %v2134
    %v2247 = vpack.i.b16 %v2137, %v2136
    %v2248 = vpack.i.b16 %v2139, %v2138
    %v2249 = vpack.i.b16 %v2141, %v2140
    %v2250 = vpack.i.b16 %v2143, %v2142
    %v2251 = vpack.i.b16 %v2145, %v2144
    %v2252 = vpack.i.b16 %v2147, %v2146
    %v2253 = vpack.i.b16 %v2149, %v2148
    %v2254 = vpack.i.b16 %v2151, %v2150
    %v2255 = vpack.i.b16 %v2153, %v2152
    %v2256 = vpack.i.b16 %v2155, %v2154
    %v2257 = vpack.i.b16 %v2157, %v2156
    %v2258 = vpack.i.b16 %v2159, %v2158
    %v2259 = vpack.i.b16 %v2161, %v2160
    %v2260 = vpack.i.b16 %v2163, %v2162
    %v2261 = vpack.i.b16 %v2165, %v2164
    %v2262 = vpack.i.b16 %v2167, %v2166
    %v2263 = vpack.i.b16 %v2169, %v2168
    %v2264 = vpack.i.b16 %v2171, %v2170
    %v2265 = vpack.i.b16 %v2173, %v2172
    %v2266 = vpack.i.b16 %v2175, %v2174
    %v2267 = vpack.i.b16 %v2177, %v2176
    %v2268 = vpack.i.b16 %v2179, %v2178
    %v2269 = vpack.i.b16 %v2181, %v2180
    %v2270 = vpack.i.b16 %v2183, %v2182
    %v2271 = vpack.i.b16 %v2185, %v2184
    %v2272 = vpack.i.b16 %v2187, %v2186
    %v2273 = vpack.i.b16 %v2189, %v2188
    %v2274 = vpack.i.b16 %v2191, %v2190
    %v2275 = vpack.i.b16 %v2193, %v2192
    %v2276 = vpack.i.b16 %v2195, %v2194
    %v2277 = vpack.i.b16 %v2197, %v2196
    %v2278 = vpack.i.b16 %v2199, %v2198
    %v2279 = vpack.i.b16 %v2201, %v2200
    %v2280 = vpack.i.b16 %v2203, %v2202
    %v2281 = vpack.i.b16 %v2205, %v2204
    %v2282 = vpack.i.b16 %v2207, %v2206
    %v2283 = vpack.i.b16 %v2209, %v2208
    %v2284 = vpack.i.b16 %v2211, %v2210
    %v2285 = vpack.i.b16 %v2213, %v2212
    %v2286 = vpack.i.b16 %v2215, %v2214
    %v2287 = vpack.i.b16 %v2217, %v2216
    %v2288 = vpack.i.b16 %v2219, %v2218
    %v2289 = vpack.i.b16 %v2221, %v2220
    %v2290 = vpack.i.b16 %v2223, %v2222
    %v2291 = vpack.i.b16 %v2225, %v2224
    %v2292 = vpack.i.b16 %v2227, %v2226
    %v2293 = vpack.i.b16 %v2229, %v2228
    %v2294 = vpack.i.b16 %v2231, %v2230
    %v2295 = vpack.i.b16 %v2233, %v2232
    %v2296 = vpack.i.b16 %v2235, %v2234
    %v2297 = vpack.i.b16 %v2237, %v2236
    %2299 = vst [vmem:[#allocation1] ss:$9 sm:$0xff] %v2238
    %s2301 = scalar_lea.vmem [#allocation1], 1
    %2302 = vst [vmem:[%s2301] ss:$9 sm:$0xff] %v2239
    %s2304 = scalar_lea.vmem [#allocation1], 2
    %2305 = vst [vmem:[%s2304] ss:$9 sm:$0xff] %v2240
    %s2307 = scalar_lea.vmem [#allocation1], 3
    %2308 = vst [vmem:[%s2307] ss:$9 sm:$0xff] %v2241
    %s2310 = scalar_lea.vmem [#allocation1], 4
    %2311 = vst [vmem:[%s2310] ss:$9 sm:$0xff] %v2242
    %s2313 = scalar_lea.vmem [#allocation1], 5
    %2314 = vst [vmem:[%s2313] ss:$9 sm:$0xff] %v2243
    %s2316 = scalar_lea.vmem [#allocation1], 6
    %2317 = vst [vmem:[%s2316] ss:$9 sm:$0xff] %v2244
    %s2319 = scalar_lea.vmem [#allocation1], 7
    %2320 = vst [vmem:[%s2319] ss:$9 sm:$0xff] %v2245
    %v2321 = vld [vmem:[#allocation1] sm:$0xff]
    %v2322 = vld [vmem:[#allocation1 + $0x9] sm:$0xff]
    %2324 = vst [vmem:[#allocation1] ss:$9 sm:$0xff] %v2246
    %2326 = vst [vmem:[%s2301] ss:$9 sm:$0xff] %v2247
    %2328 = vst [vmem:[%s2304] ss:$9 sm:$0xff] %v2248
    %2330 = vst [vmem:[%s2307] ss:$9 sm:$0xff] %v2249
    %2332 = vst [vmem:[%s2310] ss:$9 sm:$0xff] %v2250
    %2334 = vst [vmem:[%s2313] ss:$9 sm:$0xff] %v2251
    %2336 = vst [vmem:[%s2316] ss:$9 sm:$0xff] %v2252
    %2338 = vst [vmem:[%s2319] ss:$9 sm:$0xff] %v2253
    %v2339 = vld [vmem:[#allocation1] sm:$0xff]
    %v2340 = vld [vmem:[#allocation1 + $0x9] sm:$0xff]
    %2342 = vst [vmem:[#allocation1] ss:$9 sm:$0xff] %v2254
    %2344 = vst [vmem:[%s2301] ss:$9 sm:$0xff] %v2255
    %2346 = vst [vmem:[%s2304] ss:$9 sm:$0xff] %v2256
    %2348 = vst [vmem:[%s2307] ss:$9 sm:$0xff] %v2257
    %2350 = vst [vmem:[%s2310] ss:$9 sm:$0xff] %v2258
    %2352 = vst [vmem:[%s2313] ss:$9 sm:$0xff] %v2259
    %2354 = vst [vmem:[%s2316] ss:$9 sm:$0xff] %v2260
    %2356 = vst [vmem:[%s2319] ss:$9 sm:$0xff] %v2261
    %v2357 = vld [vmem:[#allocation1] sm:$0xff]
    %v2358 = vld [vmem:[#allocation1 + $0x9] sm:$0xff]
    %2360 = vst [vmem:[#allocation1] ss:$9 sm:$0xff] %v2262
    %2362 = vst [vmem:[%s2301] ss:$9 sm:$0xff] %v2263
    %2364 = vst [vmem:[%s2304] ss:$9 sm:$0xff] %v2264
    %2366 = vst [vmem:[%s2307] ss:$9 sm:$0xff] %v2265
    %2368 = vst [vmem:[%s2310] ss:$9 sm:$0xff] %v2266
    %2370 = vst [vmem:[%s2313] ss:$9 sm:$0xff] %v2267
    %2372 = vst [vmem:[%s2316] ss:$9 sm:$0xff] %v2268
    %2374 = vst [vmem:[%s2319] ss:$9 sm:$0xff] %v2269
    %v2375 = vld [vmem:[#allocation1] sm:$0xff]
    %v2376 = vld [vmem:[#allocation1 + $0x9] sm:$0xff]
    %2378 = vst [vmem:[#allocation1] ss:$9 sm:$0xff] %v2270
    %2380 = vst [vmem:[%s2301] ss:$9 sm:$0xff] %v2271
    %2382 = vst [vmem:[%s2304] ss:$9 sm:$0xff] %v2272
    %2384 = vst [vmem:[%s2307] ss:$9 sm:$0xff] %v2273
    %2386 = vst [vmem:[%s2310] ss:$9 sm:$0xff] %v2274
    %2388 = vst [vmem:[%s2313] ss:$9 sm:$0xff] %v2275
    %2390 = vst [vmem:[%s2316] ss:$9 sm:$0xff] %v2276
    %2392 = vst [vmem:[%s2319] ss:$9 sm:$0xff] %v2277
    %v2393 = vld [vmem:[#allocation1] sm:$0xff]
    %v2394 = vld [vmem:[#allocation1 + $0x9] sm:$0xff]
    %2396 = vst [vmem:[#allocation1] ss:$9 sm:$0xff] %v2278
    %2398 = vst [vmem:[%s2301] ss:$9 sm:$0xff] %v2279
    %2400 = vst [vmem:[%s2304] ss:$9 sm:$0xff] %v2280
    %2402 = vst [vmem:[%s2307] ss:$9 sm:$0xff] %v2281
    %2404 = vst [vmem:[%s2310] ss:$9 sm:$0xff] %v2282
    %2406 = vst [vmem:[%s2313] ss:$9 sm:$0xff] %v2283
    %2408 = vst [vmem:[%s2316] ss:$9 sm:$0xff] %v2284
    %2410 = vst [vmem:[%s2319] ss:$9 sm:$0xff] %v2285
    %v2411 = vld [vmem:[#allocation1] sm:$0xff]
    %v2412 = vld [vmem:[#allocation1 + $0x9] sm:$0xff]
    %2414 = vst [vmem:[#allocation1] ss:$9 sm:$0xff] %v2286
    %2416 = vst [vmem:[%s2301] ss:$9 sm:$0xff] %v2287
    %2418 = vst [vmem:[%s2304] ss:$9 sm:$0xff] %v2288
    %2420 = vst [vmem:[%s2307] ss:$9 sm:$0xff] %v2289
    %2422 = vst [vmem:[%s2310] ss:$9 sm:$0xff] %v2290
    %2424 = vst [vmem:[%s2313] ss:$9 sm:$0xff] %v2291
    %2426 = vst [vmem:[%s2316] ss:$9 sm:$0xff] %v2292
    %2428 = vst [vmem:[%s2319] ss:$9 sm:$0xff] %v2293
    %v2429 = vld [vmem:[#allocation1] sm:$0xff]
    %v2430 = vld [vmem:[#allocation1 + $0x9] sm:$0xff]
    %2432 = vst [vmem:[#allocation1] ss:$9 sm:$0xff] %v2294
    %2434 = vst [vmem:[%s2301] ss:$9 sm:$0xff] %v2295
    %2436 = vst [vmem:[%s2304] ss:$9 sm:$0xff] %v2296
    %2438 = vst [vmem:[%s2307] ss:$9 sm:$0xff] %v2297
    %v2439 = vld [vmem:[#allocation1] sm:$0xff]
    %v2440 = vld [vmem:[#allocation1 + $0x9] sm:$0xff]
    %v2489 = vunpack.c.l.b16 %v1903
    %v2490 = vunpack.c.h.b16 %v1903
    %v2491 = vunpack.c.l.b16 %v1904
    %v2492 = vunpack.c.h.b16 %v1904
    %v2493 = vunpack.c.l.b16 %v1905
    %v2494 = vunpack.c.h.b16 %v1905
    %v2495 = vunpack.c.l.b16 %v1906
    %v2496 = vunpack.c.h.b16 %v1906
    %v2497 = vunpack.c.l.b16 %v1907
    %v2498 = vunpack.c.h.b16 %v1907
    %v2499 = vunpack.c.l.b16 %v1908
    %v2500 = vunpack.c.h.b16 %v1908
    %v2501 = vunpack.c.l.b16 %v1909
    %v2502 = vunpack.c.h.b16 %v1909
    %v2503 = vunpack.c.l.b16 %v1910
    %v2504 = vunpack.c.h.b16 %v1910
    %v2505 = vunpack.c.l.b16 %v1911
    %v2506 = vunpack.c.h.b16 %v1911
    %v2507 = vunpack.c.l.b16 %v1912
    %v2508 = vunpack.c.h.b16 %v1912
    %v2509 = vunpack.c.l.b16 %v1913
    %v2510 = vunpack.c.h.b16 %v1913
    %v2511 = vunpack.c.l.b16 %v1914
    %v2512 = vunpack.c.h.b16 %v1914
    %v2513 = vunpack.c.l.b16 %v1915
    %v2514 = vunpack.c.h.b16 %v1915
    %v2515 = vunpack.c.l.b16 %v1916
    %v2516 = vunpack.c.h.b16 %v1916
    %v2517 = vunpack.c.l.b16 %v1917
    %v2518 = vunpack.c.h.b16 %v1917
    %v2519 = vunpack.c.l.b16 %v1918
    %v2520 = vunpack.c.h.b16 %v1918
    %v2521 = vunpack.c.l.b16 %v1919
    %v2522 = vunpack.c.h.b16 %v1919
    %v2523 = vunpack.c.l.b16 %v1920
    %v2524 = vunpack.c.h.b16 %v1920
    %v2525 = vunpack.c.l.b16 %v1921
    %v2526 = vunpack.c.h.b16 %v1921
    %v2527 = vunpack.c.l.b16 %v1922
    %v2528 = vunpack.c.h.b16 %v1922
    %v2529 = vunpack.c.l.b16 %v1923
    %v2530 = vunpack.c.h.b16 %v1923
    %v2531 = vunpack.c.l.b16 %v1924
    %v2532 = vunpack.c.h.b16 %v1924
    %v2533 = vunpack.c.l.b16 %v1925
    %v2534 = vunpack.c.h.b16 %v1925
    %v2535 = vunpack.c.l.b16 %v1926
    %v2536 = vunpack.c.h.b16 %v1926
    %v2537 = vunpack.c.l.b16 %v1927
    %v2538 = vunpack.c.h.b16 %v1927
    %v2539 = vunpack.c.l.b16 %v1928
    %v2540 = vunpack.c.h.b16 %v1928
    %v2541 = vunpack.c.l.b16 %v1929
    %v2542 = vunpack.c.h.b16 %v1929
    %v2543 = vunpack.c.l.b16 %v1930
    %v2544 = vunpack.c.h.b16 %v1930
    %v2545 = vunpack.c.l.b16 %v1931
    %v2546 = vunpack.c.h.b16 %v1931
    %v2547 = vunpack.c.l.b16 %v1932
    %v2548 = vunpack.c.h.b16 %v1932
    %v2549 = vunpack.c.l.b16 %v1933
    %v2550 = vunpack.c.h.b16 %v1933
    %v2551 = vunpack.c.l.b16 %v1934
    %v2552 = vunpack.c.h.b16 %v1934
    %v2553 = vpack.c.b16 %v2491, %v2489
    %v2554 = vpack.c.b16 %v2492, %v2490
    %v2555 = vpack.c.b16 %v2495, %v2493
    %v2556 = vpack.c.b16 %v2496, %v2494
    %v2557 = vpack.c.b16 %v2499, %v2497
    %v2558 = vpack.c.b16 %v2500, %v2498
    %v2559 = vpack.c.b16 %v2503, %v2501
    %v2560 = vpack.c.b16 %v2504, %v2502
    %v2561 = vpack.c.b16 %v2507, %v2505
    %v2562 = vpack.c.b16 %v2508, %v2506
    %v2563 = vpack.c.b16 %v2511, %v2509
    %v2564 = vpack.c.b16 %v2512, %v2510
    %v2565 = vpack.c.b16 %v2515, %v2513
    %v2566 = vpack.c.b16 %v2516, %v2514
    %v2567 = vpack.c.b16 %v2519, %v2517
    %v2568 = vpack.c.b16 %v2520, %v2518
    %v2569 = vpack.c.b16 %v2523, %v2521
    %v2570 = vpack.c.b16 %v2524, %v2522
    %v2571 = vpack.c.b16 %v2527, %v2525
    %v2572 = vpack.c.b16 %v2528, %v2526
    %v2573 = vpack.c.b16 %v2531, %v2529
    %v2574 = vpack.c.b16 %v2532, %v2530
    %v2575 = vpack.c.b16 %v2535, %v2533
    %v2576 = vpack.c.b16 %v2536, %v2534
    %v2577 = vpack.c.b16 %v2539, %v2537
    %v2578 = vpack.c.b16 %v2540, %v2538
    %v2579 = vpack.c.b16 %v2543, %v2541
    %v2580 = vpack.c.b16 %v2544, %v2542
    %v2581 = vpack.c.b16 %v2547, %v2545
    %v2582 = vpack.c.b16 %v2548, %v2546
    %v2583 = vpack.c.b16 %v2551, %v2549
    %v2584 = vpack.c.b16 %v2552, %v2550
    %2617 = vmatpush.bf16.msra.mxu0 %v2567
    %2618 = vmatpush.bf16.msra.mxu0 %v2565
    %2619 = vmatpush.bf16.msra.mxu0 %v2563
    %2620 = vmatpush.bf16.msra.mxu0 %v2561
    %2621 = vmatpush.bf16.msra.mxu0 %v2559
    %2622 = vmatpush.bf16.msra.mxu0 %v2557
    %2623 = vmatpush.bf16.msra.mxu0 %v2555
    %2624 = vmatpush.bf16.msra.mxu0 %v2553
    %2625 = vmatmul.bf16.gmra.mxu0 %v2321
    %v2626 = vpop.f32.mrf.mxu0
    %v2627 = vadd.f32 0.0, %v2626
    %v2628 = vpop.f32.mrf.mxu0
    %v2629 = vadd.f32 0.0, %v2628
    %2630 = vmatmul.bf16.gmra.mxu0 %v2339
    %v2631 = vpop.f32.mrf.mxu0
    %v2632 = vadd.f32 0.0, %v2631
    %v2633 = vpop.f32.mrf.mxu0
    %v2634 = vadd.f32 0.0, %v2633
    %2635 = vmatmul.bf16.gmra.mxu0 %v2357
    %v2636 = vpop.f32.mrf.mxu0
    %v2637 = vadd.f32 0.0, %v2636
    %v2638 = vpop.f32.mrf.mxu0
    %v2639 = vadd.f32 0.0, %v2638
    %2640 = vmatmul.bf16.gmra.mxu0 %v2375
    %v2641 = vpop.f32.mrf.mxu0
    %v2642 = vadd.f32 0.0, %v2641
    %v2643 = vpop.f32.mrf.mxu0
    %v2644 = vadd.f32 0.0, %v2643
    %2645 = vmatmul.bf16.gmra.mxu0 %v2393
    %v2646 = vpop.f32.mrf.mxu0
    %v2647 = vadd.f32 0.0, %v2646
    %v2648 = vpop.f32.mrf.mxu0
    %v2649 = vadd.f32 0.0, %v2648
    %2650 = vmatmul.bf16.gmra.mxu0 %v2411
    %v2651 = vpop.f32.mrf.mxu0
    %v2652 = vadd.f32 0.0, %v2651
    %v2653 = vpop.f32.mrf.mxu0
    %v2654 = vadd.f32 0.0, %v2653
    %2655 = vmatmul.bf16.gmra.mxu0 %v2429
    %v2656 = vpop.f32.mrf.mxu0
    %v2657 = vadd.f32 0.0, %v2656
    %v2658 = vpop.f32.mrf.mxu0
    %v2659 = vadd.f32 0.0, %v2658
    %2660 = vmatmul.bf16.gmra.mxu0 %v2439
    %v2661 = vpop.f32.mrf.mxu0
    %v2662 = vadd.f32 0.0, %v2661
    %v2663 = vpop.f32.mrf.mxu0
    %2664 = vdwg.mxu0
    %2665 = vmatpush.bf16.msra.mxu0 %v2583
    %2666 = vmatpush.bf16.msra.mxu0 %v2581
    %2667 = vmatpush.bf16.msra.mxu0 %v2579
    %2668 = vmatpush.bf16.msra.mxu0 %v2577
    %2669 = vmatpush.bf16.msra.mxu0 %v2575
    %2670 = vmatpush.bf16.msra.mxu0 %v2573
    %2671 = vmatpush.bf16.msra.mxu0 %v2571
    %2672 = vmatpush.bf16.msra.mxu0 %v2569
    %2673 = vmatmul.bf16.gmra.mxu0 %v2322
    %v2674 = vpop.f32.mrf.mxu0
    %v2675 = vadd.f32 %v2627, %v2674
    %v2676 = vpop.f32.mrf.mxu0
    %v2677 = vadd.f32 %v2629, %v2676
    %2678 = vmatmul.bf16.gmra.mxu0 %v2340
    %v2679 = vpop.f32.mrf.mxu0
    %v2680 = vadd.f32 %v2632, %v2679
    %v2681 = vpop.f32.mrf.mxu0
    %v2682 = vadd.f32 %v2634, %v2681
    %2683 = vmatmul.bf16.gmra.mxu0 %v2358
    %v2684 = vpop.f32.mrf.mxu0
    %v2685 = vadd.f32 %v2637, %v2684
    %v2686 = vpop.f32.mrf.mxu0
    %v2687 = vadd.f32 %v2639, %v2686
    %2688 = vmatmul.bf16.gmra.mxu0 %v2376
    %v2689 = vpop.f32.mrf.mxu0
    %v2690 = vadd.f32 %v2642, %v2689
    %v2691 = vpop.f32.mrf.mxu0
    %v2692 = vadd.f32 %v2644, %v2691
    %2693 = vmatmul.bf16.gmra.mxu0 %v2394
    %v2694 = vpop.f32.mrf.mxu0
    %v2695 = vadd.f32 %v2647, %v2694
    %v2696 = vpop.f32.mrf.mxu0
    %v2697 = vadd.f32 %v2649, %v2696
    %2698 = vmatmul.bf16.gmra.mxu0 %v2412
    %v2699 = vpop.f32.mrf.mxu0
    %v2700 = vadd.f32 %v2652, %v2699
    %v2701 = vpop.f32.mrf.mxu0
    %v2702 = vadd.f32 %v2654, %v2701
    %2703 = vmatmul.bf16.gmra.mxu0 %v2430
    %v2704 = vpop.f32.mrf.mxu0
    %v2705 = vadd.f32 %v2657, %v2704
    %v2706 = vpop.f32.mrf.mxu0
    %v2707 = vadd.f32 %v2659, %v2706
    %2708 = vmatmul.bf16.gmra.mxu0 %v2440
    %v2709 = vpop.f32.mrf.mxu0
    %v2710 = vadd.f32 %v2662, %v2709
    %v2711 = vpop.f32.mrf.mxu0
    %2712 = vdwg.mxu0
    %2713 = vmatpush.bf16.msra.mxu0 %v2568
    %2714 = vmatpush.bf16.msra.mxu0 %v2566
    %2715 = vmatpush.bf16.msra.mxu0 %v2564
    %2716 = vmatpush.bf16.msra.mxu0 %v2562
    %2717 = vmatpush.bf16.msra.mxu0 %v2560
    %2718 = vmatpush.bf16.msra.mxu0 %v2558
    %2719 = vmatpush.bf16.msra.mxu0 %v2556
    %2720 = vmatpush.bf16.msra.mxu0 %v2554
    %2721 = vmatmul.bf16.gmra.mxu0 %v2321
    %v2722 = vpop.f32.mrf.mxu0
    %v2723 = vadd.f32 0.0, %v2722
    %v2724 = vpop.f32.mrf.mxu0
    %v2725 = vadd.f32 0.0, %v2724
    %2726 = vmatmul.bf16.gmra.mxu0 %v2339
    %v2727 = vpop.f32.mrf.mxu0
    %v2728 = vadd.f32 0.0, %v2727
    %v2729 = vpop.f32.mrf.mxu0
    %v2730 = vadd.f32 0.0, %v2729
    %2731 = vmatmul.bf16.gmra.mxu0 %v2357
    %v2732 = vpop.f32.mrf.mxu0
    %v2733 = vadd.f32 0.0, %v2732
    %v2734 = vpop.f32.mrf.mxu0
    %v2735 = vadd.f32 0.0, %v2734
    %2736 = vmatmul.bf16.gmra.mxu0 %v2375
    %v2737 = vpop.f32.mrf.mxu0
    %v2738 = vadd.f32 0.0, %v2737
    %v2739 = vpop.f32.mrf.mxu0
    %v2740 = vadd.f32 0.0, %v2739
    %2741 = vmatmul.bf16.gmra.mxu0 %v2393
    %v2742 = vpop.f32.mrf.mxu0
    %v2743 = vadd.f32 0.0, %v2742
    %v2744 = vpop.f32.mrf.mxu0
    %v2745 = vadd.f32 0.0, %v2744
    %2746 = vmatmul.bf16.gmra.mxu0 %v2411
    %v2747 = vpop.f32.mrf.mxu0
    %v2748 = vadd.f32 0.0, %v2747
    %v2749 = vpop.f32.mrf.mxu0
    %v2750 = vadd.f32 0.0, %v2749
    %2751 = vmatmul.bf16.gmra.mxu0 %v2429
    %v2752 = vpop.f32.mrf.mxu0
    %v2753 = vadd.f32 0.0, %v2752
    %v2754 = vpop.f32.mrf.mxu0
    %v2755 = vadd.f32 0.0, %v2754
    %2756 = vmatmul.bf16.gmra.mxu0 %v2439
    %v2757 = vpop.f32.mrf.mxu0
    %v2758 = vadd.f32 0.0, %v2757
    %v2759 = vpop.f32.mrf.mxu0
    %2760 = vdwg.mxu0
    %2761 = vmatpush.bf16.msra.mxu0 %v2584
    %2762 = vmatpush.bf16.msra.mxu0 %v2582
    %2763 = vmatpush.bf16.msra.mxu0 %v2580
    %2764 = vmatpush.bf16.msra.mxu0 %v2578
    %2765 = vmatpush.bf16.msra.mxu0 %v2576
    %2766 = vmatpush.bf16.msra.mxu0 %v2574
    %2767 = vmatpush.bf16.msra.mxu0 %v2572
    %2768 = vmatpush.bf16.msra.mxu0 %v2570
    %2769 = vmatmul.bf16.gmra.mxu0 %v2322
    %v2770 = vpop.f32.mrf.mxu0
    %v2771 = vadd.f32 %v2723, %v2770
    %v2772 = vpop.f32.mrf.mxu0
    %v2773 = vadd.f32 %v2725, %v2772
    %2774 = vmatmul.bf16.gmra.mxu0 %v2340
    %v2775 = vpop.f32.mrf.mxu0
    %v2776 = vadd.f32 %v2728, %v2775
    %v2777 = vpop.f32.mrf.mxu0
    %v2778 = vadd.f32 %v2730, %v2777
    %2779 = vmatmul.bf16.gmra.mxu0 %v2358
    %v2780 = vpop.f32.mrf.mxu0
    %v2781 = vadd.f32 %v2733, %v2780
    %v2782 = vpop.f32.mrf.mxu0
    %v2783 = vadd.f32 %v2735, %v2782
    %2784 = vmatmul.bf16.gmra.mxu0 %v2376
    %v2785 = vpop.f32.mrf.mxu0
    %v2786 = vadd.f32 %v2738, %v2785
    %v2787 = vpop.f32.mrf.mxu0
    %v2788 = vadd.f32 %v2740, %v2787
    %2789 = vmatmul.bf16.gmra.mxu0 %v2394
    %v2790 = vpop.f32.mrf.mxu0
    %v2791 = vadd.f32 %v2743, %v2790
    %v2792 = vpop.f32.mrf.mxu0
    %v2793 = vadd.f32 %v2745, %v2792
    %2794 = vmatmul.bf16.gmra.mxu0 %v2412
    %v2795 = vpop.f32.mrf.mxu0
    %v2796 = vadd.f32 %v2748, %v2795
    %v2797 = vpop.f32.mrf.mxu0
    %v2798 = vadd.f32 %v2750, %v2797
    %2799 = vmatmul.bf16.gmra.mxu0 %v2430
    %v2800 = vpop.f32.mrf.mxu0
    %v2801 = vadd.f32 %v2753, %v2800
    %v2802 = vpop.f32.mrf.mxu0
    %v2803 = vadd.f32 %v2755, %v2802
    %2804 = vmatmul.bf16.gmra.mxu0 %v2440
    %v2805 = vpop.f32.mrf.mxu0
    %v2806 = vadd.f32 %v2758, %v2805
    %v2807 = vpop.f32.mrf.mxu0
    %2808 = vdwg.mxu0
    %v2839 = vrot.slane %v2771, 7
    %v2840 = vrot.slane %v2773, 7
    %v2841 = vrot.slane %v2776, 7
    %v2842 = vrot.slane %v2778, 7
    %v2843 = vrot.slane %v2781, 7
    %v2844 = vrot.slane %v2783, 7
    %v2845 = vrot.slane %v2786, 7
    %v2846 = vrot.slane %v2788, 7
    %v2847 = vrot.slane %v2791, 7
    %v2848 = vrot.slane %v2793, 7
    %v2849 = vrot.slane %v2796, 7
    %v2850 = vrot.slane %v2798, 7
    %v2851 = vrot.slane %v2801, 7
    %v2852 = vrot.slane %v2803, 7
    %v2853 = vrot.slane %v2806, 7
    %v2854 = vsel %vm392, %v2675, %v2839
    %v2855 = vsel %vm396, %v2675, %v2839
    %v2856 = vrot.slane %v2855, 1
    %v2857 = vsel %vm400, %v2675, %v2839
    %v2858 = vrot.slane %v2857, 2
    %v2859 = vsel %vm404, %v2675, %v2839
    %v2860 = vrot.slane %v2859, 3
    %v2861 = vsel %vm408, %v2675, %v2839
    %v2862 = vrot.slane %v2861, 4
    %v2863 = vsel %vm412, %v2675, %v2839
    %v2864 = vrot.slane %v2863, 5
    %v2865 = vsel %vm416, %v2675, %v2839
    %v2866 = vrot.slane %v2865, 6
    %v2867 = vsel %vm420, %v2839, %v2675
    %v2868 = vrot.slane %v2867, 7
    %v2869 = vsel %vm392, %v2677, %v2840
    %v2870 = vsel %vm396, %v2677, %v2840
    %v2871 = vrot.slane %v2870, 1
    %v2872 = vsel %vm400, %v2677, %v2840
    %v2873 = vrot.slane %v2872, 2
    %v2874 = vsel %vm404, %v2677, %v2840
    %v2875 = vrot.slane %v2874, 3
    %v2876 = vsel %vm408, %v2677, %v2840
    %v2877 = vrot.slane %v2876, 4
    %v2878 = vsel %vm412, %v2677, %v2840
    %v2879 = vrot.slane %v2878, 5
    %v2880 = vsel %vm420, %v2840, %v2677
    %v2881 = vrot.slane %v2880, 7
    %v2882 = vsel %vm392, %v2680, %v2841
    %v2883 = vsel %vm396, %v2680, %v2841
    %v2884 = vrot.slane %v2883, 1
    %v2885 = vsel %vm400, %v2680, %v2841
    %v2886 = vrot.slane %v2885, 2
    %v2887 = vsel %vm404, %v2680, %v2841
    %v2888 = vrot.slane %v2887, 3
    %v2889 = vsel %vm408, %v2680, %v2841
    %v2890 = vrot.slane %v2889, 4
    %v2891 = vsel %vm412, %v2680, %v2841
    %v2892 = vrot.slane %v2891, 5
    %v2893 = vsel %vm416, %v2680, %v2841
    %v2894 = vrot.slane %v2893, 6
    %v2895 = vsel %vm420, %v2841, %v2680
    %v2896 = vrot.slane %v2895, 7
    %v2897 = vsel %vm392, %v2682, %v2842
    %v2898 = vsel %vm396, %v2682, %v2842
    %v2899 = vrot.slane %v2898, 1
    %v2900 = vsel %vm400, %v2682, %v2842
    %v2901 = vrot.slane %v2900, 2
    %v2902 = vsel %vm404, %v2682, %v2842
    %v2903 = vrot.slane %v2902, 3
    %v2904 = vsel %vm408, %v2682, %v2842
    %v2905 = vrot.slane %v2904, 4
    %v2906 = vsel %vm416, %v2682, %v2842
    %v2907 = vrot.slane %v2906, 6
    %v2908 = vsel %vm420, %v2842, %v2682
    %v2909 = vrot.slane %v2908, 7
    %v2910 = vsel %vm392, %v2685, %v2843
    %v2911 = vsel %vm396, %v2685, %v2843
    %v2912 = vrot.slane %v2911, 1
    %v2913 = vsel %vm400, %v2685, %v2843
    %v2914 = vrot.slane %v2913, 2
    %v2915 = vsel %vm404, %v2685, %v2843
    %v2916 = vrot.slane %v2915, 3
    %v2917 = vsel %vm408, %v2685, %v2843
    %v2918 = vrot.slane %v2917, 4
    %v2919 = vsel %vm412, %v2685, %v2843
    %v2920 = vrot.slane %v2919, 5
    %v2921 = vsel %vm416, %v2685, %v2843
    %v2922 = vrot.slane %v2921, 6
    %v2923 = vsel %vm420, %v2843, %v2685
    %v2924 = vrot.slane %v2923, 7
    %v2925 = vsel %vm392, %v2687, %v2844
    %v2926 = vsel %vm396, %v2687, %v2844
    %v2927 = vrot.slane %v2926, 1
    %v2928 = vsel %vm400, %v2687, %v2844
    %v2929 = vrot.slane %v2928, 2
    %v2930 = vsel %vm404, %v2687, %v2844
    %v2931 = vrot.slane %v2930, 3
    %v2932 = vsel %vm412, %v2687, %v2844
    %v2933 = vrot.slane %v2932, 5
    %v2934 = vsel %vm416, %v2687, %v2844
    %v2935 = vrot.slane %v2934, 6
    %v2936 = vsel %vm420, %v2844, %v2687
    %v2937 = vrot.slane %v2936, 7
    %v2938 = vsel %vm392, %v2690, %v2845
    %v2939 = vsel %vm396, %v2690, %v2845
    %v2940 = vrot.slane %v2939, 1
    %v2941 = vsel %vm400, %v2690, %v2845
    %v2942 = vrot.slane %v2941, 2
    %v2943 = vsel %vm404, %v2690, %v2845
    %v2944 = vrot.slane %v2943, 3
    %v2945 = vsel %vm408, %v2690, %v2845
    %v2946 = vrot.slane %v2945, 4
    %v2947 = vsel %vm412, %v2690, %v2845
    %v2948 = vrot.slane %v2947, 5
    %v2949 = vsel %vm416, %v2690, %v2845
    %v2950 = vrot.slane %v2949, 6
    %v2951 = vsel %vm420, %v2845, %v2690
    %v2952 = vrot.slane %v2951, 7
    %v2953 = vsel %vm392, %v2692, %v2846
    %v2954 = vsel %vm396, %v2692, %v2846
    %v2955 = vrot.slane %v2954, 1
    %v2956 = vsel %vm400, %v2692, %v2846
    %v2957 = vrot.slane %v2956, 2
    %v2958 = vsel %vm408, %v2692, %v2846
    %v2959 = vrot.slane %v2958, 4
    %v2960 = vsel %vm412, %v2692, %v2846
    %v2961 = vrot.slane %v2960, 5
    %v2962 = vsel %vm416, %v2692, %v2846
    %v2963 = vrot.slane %v2962, 6
    %v2964 = vsel %vm420, %v2846, %v2692
    %v2965 = vrot.slane %v2964, 7
    %v2966 = vsel %vm392, %v2695, %v2847
    %v2967 = vsel %vm396, %v2695, %v2847
    %v2968 = vrot.slane %v2967, 1
    %v2969 = vsel %vm400, %v2695, %v2847
    %v2970 = vrot.slane %v2969, 2
    %v2971 = vsel %vm404, %v2695, %v2847
    %v2972 = vrot.slane %v2971, 3
    %v2973 = vsel %vm408, %v2695, %v2847
    %v2974 = vrot.slane %v2973, 4
    %v2975 = vsel %vm412, %v2695, %v2847
    %v2976 = vrot.slane %v2975, 5
    %v2977 = vsel %vm416, %v2695, %v2847
    %v2978 = vrot.slane %v2977, 6
    %v2979 = vsel %vm420, %v2847, %v2695
    %v2980 = vrot.slane %v2979, 7
    %v2981 = vsel %vm392, %v2697, %v2848
    %v2982 = vsel %vm396, %v2697, %v2848
    %v2983 = vrot.slane %v2982, 1
    %v2984 = vsel %vm404, %v2697, %v2848
    %v2985 = vrot.slane %v2984, 3
    %v2986 = vsel %vm408, %v2697, %v2848
    %v2987 = vrot.slane %v2986, 4
    %v2988 = vsel %vm412, %v2697, %v2848
    %v2989 = vrot.slane %v2988, 5
    %v2990 = vsel %vm416, %v2697, %v2848
    %v2991 = vrot.slane %v2990, 6
    %v2992 = vsel %vm420, %v2848, %v2697
    %v2993 = vrot.slane %v2992, 7
    %v2994 = vsel %vm392, %v2700, %v2849
    %v2995 = vsel %vm396, %v2700, %v2849
    %v2996 = vrot.slane %v2995, 1
    %v2997 = vsel %vm400, %v2700, %v2849
    %v2998 = vrot.slane %v2997, 2
    %v2999 = vsel %vm404, %v2700, %v2849
    %v3000 = vrot.slane %v2999, 3
    %v3001 = vsel %vm408, %v2700, %v2849
    %v3002 = vrot.slane %v3001, 4
    %v3003 = vsel %vm412, %v2700, %v2849
    %v3004 = vrot.slane %v3003, 5
    %v3005 = vsel %vm416, %v2700, %v2849
    %v3006 = vrot.slane %v3005, 6
    %v3007 = vsel %vm420, %v2849, %v2700
    %v3008 = vrot.slane %v3007, 7
    %v3009 = vsel %vm392, %v2702, %v2850
    %v3010 = vsel %vm400, %v2702, %v2850
    %v3011 = vrot.slane %v3010, 2
    %v3012 = vsel %vm404, %v2702, %v2850
    %v3013 = vrot.slane %v3012, 3
    %v3014 = vsel %vm408, %v2702, %v2850
    %v3015 = vrot.slane %v3014, 4
    %v3016 = vsel %vm412, %v2702, %v2850
    %v3017 = vrot.slane %v3016, 5
    %v3018 = vsel %vm416, %v2702, %v2850
    %v3019 = vrot.slane %v3018, 6
    %v3020 = vsel %vm420, %v2850, %v2702
    %v3021 = vrot.slane %v3020, 7
    %v3022 = vsel %vm392, %v2705, %v2851
    %v3023 = vsel %vm396, %v2705, %v2851
    %v3024 = vrot.slane %v3023, 1
    %v3025 = vsel %vm400, %v2705, %v2851
    %v3026 = vrot.slane %v3025, 2
    %v3027 = vsel %vm404, %v2705, %v2851
    %v3028 = vrot.slane %v3027, 3
    %v3029 = vsel %vm408, %v2705, %v2851
    %v3030 = vrot.slane %v3029, 4
    %v3031 = vsel %vm412, %v2705, %v2851
    %v3032 = vrot.slane %v3031, 5
    %v3033 = vsel %vm416, %v2705, %v2851
    %v3034 = vrot.slane %v3033, 6
    %v3035 = vsel %vm420, %v2851, %v2705
    %v3036 = vrot.slane %v3035, 7
    %v3037 = vsel %vm396, %v2707, %v2852
    %v3038 = vrot.slane %v3037, 1
    %v3039 = vsel %vm400, %v2707, %v2852
    %v3040 = vrot.slane %v3039, 2
    %v3041 = vsel %vm404, %v2707, %v2852
    %v3042 = vrot.slane %v3041, 3
    %v3043 = vsel %vm408, %v2707, %v2852
    %v3044 = vrot.slane %v3043, 4
    %v3045 = vsel %vm412, %v2707, %v2852
    %v3046 = vrot.slane %v3045, 5
    %v3047 = vsel %vm416, %v2707, %v2852
    %v3048 = vrot.slane %v3047, 6
    %v3049 = vsel %vm420, %v2852, %v2707
    %v3050 = vrot.slane %v3049, 7
    %v3051 = vsel %vm392, %v2710, %v2853
    %v3052 = vsel %vm396, %v2710, %v2853
    %v3053 = vrot.slane %v3052, 1
    %v3054 = vsel %vm400, %v2710, %v2853
    %v3055 = vrot.slane %v3054, 2
    %v3056 = vsel %vm404, %v2710, %v2853
    %v3057 = vrot.slane %v3056, 3
    %v3058 = vsel %vm408, %v2710, %v2853
    %v3059 = vrot.slane %v3058, 4
    %v3060 = vsel %vm412, %v2710, %v2853
    %v3061 = vrot.slane %v3060, 5
    %v3062 = vsel %vm416, %v2710, %v2853
    %v3063 = vrot.slane %v3062, 6
    %v3176 = vrot.slane %v1552, 1
    %v3177 = vrot.slane %v1556, 1
    %v3178 = vrot.slane %v1560, 1
    %v3179 = vrot.slane %v1564, 1
    %v3180 = vrot.slane %v1568, 1
    %v3181 = vrot.slane %v1572, 1
    %v3182 = vrot.slane %v1576, 1
    %v3183 = vrot.slane %v1580, 1
    %v3184 = vrot.slane %v1582, 1
    %v3185 = vrot.slane %v1585, 1
    %v3186 = vrot.slane %v1588, 1
    %v3187 = vrot.slane %v1591, 1
    %v3188 = vrot.slane %v1594, 1
    %v3189 = vrot.slane %v1597, 1
    %v3190 = vrot.slane %v1603, 1
    %v3191 = vrot.slane %v1605, 1
    %v3192 = vrot.slane %v1608, 1
    %v3193 = vrot.slane %v1611, 1
    %v3194 = vrot.slane %v1614, 1
    %v3195 = vrot.slane %v1617, 1
    %v3196 = vrot.slane %v1620, 1
    %v3197 = vrot.slane %v1623, 1
    %v3198 = vrot.slane %v1626, 1
    %v3199 = vrot.slane %v1628, 1
    %v3200 = vrot.slane %v1631, 1
    %v3201 = vrot.slane %v1634, 1
    %v3202 = vrot.slane %v1637, 1
    %v3203 = vrot.slane %v1640, 1
    %v3204 = vrot.slane %v1646, 1
    %v3205 = vrot.slane %v1649, 1
    %v3206 = vrot.slane %v1651, 1
    %v3207 = vrot.slane %v1654, 1
    %v3208 = vrot.slane %v1657, 1
    %v3209 = vrot.slane %v1660, 1
    %v3210 = vrot.slane %v1663, 1
    %v3211 = vrot.slane %v1666, 1
    %v3212 = vrot.slane %v1669, 1
    %v3213 = vrot.slane %v1672, 1
    %v3214 = vrot.slane %v1674, 1
    %v3215 = vrot.slane %v1677, 1
    %v3216 = vrot.slane %v1680, 1
    %v3217 = vrot.slane %v1683, 1
    %v3218 = vrot.slane %v1689, 1
    %v3219 = vrot.slane %v1692, 1
    %v3220 = vrot.slane %v1695, 1
    %v3221 = vrot.slane %v1697, 1
    %v3222 = vrot.slane %v1700, 1
    %v3223 = vrot.slane %v1703, 1
    %v3224 = vrot.slane %v1706, 1
    %v3225 = vrot.slane %v1709, 1
    %v3226 = vrot.slane %v1712, 1
    %v3227 = vrot.slane %v1715, 1
    %v3228 = vrot.slane %v1718, 1
    %v3229 = vrot.slane %v1720, 1
    %v3230 = vrot.slane %v1723, 1
    %v3231 = vrot.slane %v1726, 1
    %v3232 = vrot.slane %v1732, 1
    %v3233 = vrot.slane %v1735, 1
    %v3234 = vrot.slane %v1738, 1
    %v3235 = vrot.slane %v1741, 1
    %v3236 = vrot.slane %v1743, 1
    %v3237 = vrot.slane %v1746, 1
    %v3238 = vrot.slane %v1749, 1
    %v3239 = vrot.slane %v1752, 1
    %v3240 = vrot.slane %v1755, 1
    %v3241 = vrot.slane %v1758, 1
    %v3242 = vrot.slane %v1761, 1
    %v3243 = vrot.slane %v1764, 1
    %v3244 = vrot.slane %v1766, 1
    %v3245 = vrot.slane %v1769, 1
    %v3246 = vrot.slane %v1775, 1
    %v3247 = vrot.slane %v1778, 1
    %v3248 = vrot.slane %v1781, 1
    %v3249 = vrot.slane %v1784, 1
    %v3250 = vrot.slane %v1787, 1
    %v3251 = vrot.slane %v1789, 1
    %v3252 = vrot.slane %v1792, 1
    %v3253 = vrot.slane %v1795, 1
    %v3254 = vrot.slane %v1798, 1
    %v3255 = vrot.slane %v1801, 1
    %v3256 = vrot.slane %v1804, 1
    %v3257 = vrot.slane %v1807, 1
    %v3258 = vrot.slane %v1810, 1
    %v3259 = vrot.slane %v1812, 1
    %v3260 = vrot.slane %v1818, 1
    %v3261 = vrot.slane %v1821, 1
    %v3262 = vrot.slane %v1824, 1
    %v3263 = vrot.slane %v1827, 1
    %v3264 = vrot.slane %v1830, 1
    %v3265 = vrot.slane %v1833, 1
    %v3266 = vrot.slane %v1835, 1
    %v3267 = vrot.slane %v1838, 1
    %v3268 = vrot.slane %v1841, 1
    %v3269 = vrot.slane %v1844, 1
    %v3270 = vrot.slane %v1847, 1
    %v3271 = vrot.slane %v1850, 1
    %v3272 = vrot.slane %v1853, 1
    %v3273 = vrot.slane %v1856, 1
    %v3274 = vrot.slane %v1861, 1
    %v3275 = vrot.slane %v1864, 1
    %v3276 = vrot.slane %v1867, 1
    %v3277 = vrot.slane %v1870, 1
    %v3278 = vrot.slane %v1873, 1
    %v3279 = vrot.slane %v1876, 1
    %v3280 = vrot.slane %v1879, 1
    %v3281 = vrot.slane %v1881, 1
    %v3282 = vrot.slane %v1884, 1
    %v3283 = vrot.slane %v1887, 1
    %v3284 = vrot.slane %v1890, 1
    %v3285 = vrot.slane %v1893, 1
    %v3286 = vrot.slane %v1896, 1
    %v3287 = vrot.slane %v1899, 1
    %v3400 = vadd.f32 %v3176, %v2854
    %v3401 = vadd.f32 %v3177, %v2856
    %v3402 = vadd.f32 %v3178, %v2858
    %v3403 = vadd.f32 %v3179, %v2860
    %v3404 = vadd.f32 %v3180, %v2862
    %v3405 = vadd.f32 %v3181, %v2864
    %v3406 = vadd.f32 %v3182, %v2866
    %v3407 = vadd.f32 %v3183, %v2868
    %v3408 = vadd.f32 %v3184, %v2869
    %v3409 = vadd.f32 %v3185, %v2871
    %v3410 = vadd.f32 %v3186, %v2873
    %v3411 = vadd.f32 %v3187, %v2875
    %v3412 = vadd.f32 %v3188, %v2877
    %v3413 = vadd.f32 %v3189, %v2879
    %v3414 = vadd.f32 %v3190, %v2881
    %v3415 = vadd.f32 %v3191, %v2882
    %v3416 = vadd.f32 %v3192, %v2884
    %v3417 = vadd.f32 %v3193, %v2886
    %v3418 = vadd.f32 %v3194, %v2888
    %v3419 = vadd.f32 %v3195, %v2890
    %v3420 = vadd.f32 %v3196, %v2892
    %v3421 = vadd.f32 %v3197, %v2894
    %v3422 = vadd.f32 %v3198, %v2896
    %v3423 = vadd.f32 %v3199, %v2897
    %v3424 = vadd.f32 %v3200, %v2899
    %v3425 = vadd.f32 %v3201, %v2901
    %v3426 = vadd.f32 %v3202, %v2903
    %v3427 = vadd.f32 %v3203, %v2905
    %v3428 = vadd.f32 %v3204, %v2907
    %v3429 = vadd.f32 %v3205, %v2909
    %v3430 = vadd.f32 %v3206, %v2910
    %v3431 = vadd.f32 %v3207, %v2912
    %v3432 = vadd.f32 %v3208, %v2914
    %v3433 = vadd.f32 %v3209, %v2916
    %v3434 = vadd.f32 %v3210, %v2918
    %v3435 = vadd.f32 %v3211, %v2920
    %v3436 = vadd.f32 %v3212, %v2922
    %v3437 = vadd.f32 %v3213, %v2924
    %v3438 = vadd.f32 %v3214, %v2925
    %v3439 = vadd.f32 %v3215, %v2927
    %v3440 = vadd.f32 %v3216, %v2929
    %v3441 = vadd.f32 %v3217, %v2931
    %v3442 = vadd.f32 %v3218, %v2933
    %v3443 = vadd.f32 %v3219, %v2935
    %v3444 = vadd.f32 %v3220, %v2937
    %v3445 = vadd.f32 %v3221, %v2938
    %v3446 = vadd.f32 %v3222, %v2940
    %v3447 = vadd.f32 %v3223, %v2942
    %v3448 = vadd.f32 %v3224, %v2944
    %v3449 = vadd.f32 %v3225, %v2946
    %v3450 = vadd.f32 %v3226, %v2948
    %v3451 = vadd.f32 %v3227, %v2950
    %v3452 = vadd.f32 %v3228, %v2952
    %v3453 = vadd.f32 %v3229, %v2953
    %v3454 = vadd.f32 %v3230, %v2955
    %v3455 = vadd.f32 %v3231, %v2957
    %v3456 = vadd.f32 %v3232, %v2959
    %v3457 = vadd.f32 %v3233, %v2961
    %v3458 = vadd.f32 %v3234, %v2963
    %v3459 = vadd.f32 %v3235, %v2965
    %v3460 = vadd.f32 %v3236, %v2966
    %v3461 = vadd.f32 %v3237, %v2968
    %v3462 = vadd.f32 %v3238, %v2970
    %v3463 = vadd.f32 %v3239, %v2972
    %v3464 = vadd.f32 %v3240, %v2974
    %v3465 = vadd.f32 %v3241, %v2976
    %v3466 = vadd.f32 %v3242, %v2978
    %v3467 = vadd.f32 %v3243, %v2980
    %v3468 = vadd.f32 %v3244, %v2981
    %v3469 = vadd.f32 %v3245, %v2983
    %v3470 = vadd.f32 %v3246, %v2985
    %v3471 = vadd.f32 %v3247, %v2987
    %v3472 = vadd.f32 %v3248, %v2989
    %v3473 = vadd.f32 %v3249, %v2991
    %v3474 = vadd.f32 %v3250, %v2993
    %v3475 = vadd.f32 %v3251, %v2994
    %v3476 = vadd.f32 %v3252, %v2996
    %v3477 = vadd.f32 %v3253, %v2998
    %v3478 = vadd.f32 %v3254, %v3000
    %v3479 = vadd.f32 %v3255, %v3002
    %v3480 = vadd.f32 %v3256, %v3004
    %v3481 = vadd.f32 %v3257, %v3006
    %v3482 = vadd.f32 %v3258, %v3008
    %v3483 = vadd.f32 %v3259, %v3009
    %v3484 = vadd.f32 %v3260, %v3011
    %v3485 = vadd.f32 %v3261, %v3013
    %v3486 = vadd.f32 %v3262, %v3015
    %v3487 = vadd.f32 %v3263, %v3017
    %v3488 = vadd.f32 %v3264, %v3019
    %v3489 = vadd.f32 %v3265, %v3021
    %v3490 = vadd.f32 %v3266, %v3022
    %v3491 = vadd.f32 %v3267, %v3024
    %v3492 = vadd.f32 %v3268, %v3026
    %v3493 = vadd.f32 %v3269, %v3028
    %v3494 = vadd.f32 %v3270, %v3030
    %v3495 = vadd.f32 %v3271, %v3032
    %v3496 = vadd.f32 %v3272, %v3034
    %v3497 = vadd.f32 %v3273, %v3036
    %v3498 = vadd.f32 %v3274, %v3038
    %v3499 = vadd.f32 %v3275, %v3040
    %v3500 = vadd.f32 %v3276, %v3042
    %v3501 = vadd.f32 %v3277, %v3044
    %v3502 = vadd.f32 %v3278, %v3046
    %v3503 = vadd.f32 %v3279, %v3048
    %v3504 = vadd.f32 %v3280, %v3050
    %v3505 = vadd.f32 %v3281, %v3051
    %v3506 = vadd.f32 %v3282, %v3053
    %v3507 = vadd.f32 %v3283, %v3055
    %v3508 = vadd.f32 %v3284, %v3057
    %v3509 = vadd.f32 %v3285, %v3059
    %v3510 = vadd.f32 %v3286, %v3061
    %v3511 = vadd.f32 %v3287, %v3063
    %v3512 = vrot.slane %v1552, 2
    %v3513 = vrot.slane %v1556, 2
    %v3514 = vrot.slane %v1560, 2
    %v3515 = vrot.slane %v1564, 2
    %v3516 = vrot.slane %v1568, 2
    %v3517 = vrot.slane %v1572, 2
    %v3518 = vrot.slane %v1576, 2
    %v3519 = vrot.slane %v1580, 2
    %v3520 = vrot.slane %v1582, 2
    %v3521 = vrot.slane %v1585, 2
    %v3522 = vrot.slane %v1588, 2
    %v3523 = vrot.slane %v1591, 2
    %v3524 = vrot.slane %v1594, 2
    %v3525 = vrot.slane %v1603, 2
    %v3526 = vrot.slane %v1605, 2
    %v3527 = vrot.slane %v1608, 2
    %v3528 = vrot.slane %v1611, 2
    %v3529 = vrot.slane %v1614, 2
    %v3530 = vrot.slane %v1617, 2
    %v3531 = vrot.slane %v1620, 2
    %v3532 = vrot.slane %v1623, 2
    %v3533 = vrot.slane %v1626, 2
    %v3534 = vrot.slane %v1628, 2
    %v3535 = vrot.slane %v1631, 2
    %v3536 = vrot.slane %v1634, 2
    %v3537 = vrot.slane %v1637, 2
    %v3538 = vrot.slane %v1646, 2
    %v3539 = vrot.slane %v1649, 2
    %v3540 = vrot.slane %v1651, 2
    %v3541 = vrot.slane %v1654, 2
    %v3542 = vrot.slane %v1657, 2
    %v3543 = vrot.slane %v1660, 2
    %v3544 = vrot.slane %v1663, 2
    %v3545 = vrot.slane %v1666, 2
    %v3546 = vrot.slane %v1669, 2
    %v3547 = vrot.slane %v1672, 2
    %v3548 = vrot.slane %v1674, 2
    %v3549 = vrot.slane %v1677, 2
    %v3550 = vrot.slane %v1680, 2
    %v3551 = vrot.slane %v1689, 2
    %v3552 = vrot.slane %v1692, 2
    %v3553 = vrot.slane %v1695, 2
    %v3554 = vrot.slane %v1697, 2
    %v3555 = vrot.slane %v1700, 2
    %v3556 = vrot.slane %v1703, 2
    %v3557 = vrot.slane %v1706, 2
    %v3558 = vrot.slane %v1709, 2
    %v3559 = vrot.slane %v1712, 2
    %v3560 = vrot.slane %v1715, 2
    %v3561 = vrot.slane %v1718, 2
    %v3562 = vrot.slane %v1720, 2
    %v3563 = vrot.slane %v1723, 2
    %v3564 = vrot.slane %v1732, 2
    %v3565 = vrot.slane %v1735, 2
    %v3566 = vrot.slane %v1738, 2
    %v3567 = vrot.slane %v1741, 2
    %v3568 = vrot.slane %v1743, 2
    %v3569 = vrot.slane %v1746, 2
    %v3570 = vrot.slane %v1749, 2
    %v3571 = vrot.slane %v1752, 2
    %v3572 = vrot.slane %v1755, 2
    %v3573 = vrot.slane %v1758, 2
    %v3574 = vrot.slane %v1761, 2
    %v3575 = vrot.slane %v1764, 2
    %v3576 = vrot.slane %v1766, 2
    %v3577 = vrot.slane %v1775, 2
    %v3578 = vrot.slane %v1778, 2
    %v3579 = vrot.slane %v1781, 2
    %v3580 = vrot.slane %v1784, 2
    %v3581 = vrot.slane %v1787, 2
    %v3582 = vrot.slane %v1789, 2
    %v3583 = vrot.slane %v1792, 2
    %v3584 = vrot.slane %v1795, 2
    %v3585 = vrot.slane %v1798, 2
    %v3586 = vrot.slane %v1801, 2
    %v3587 = vrot.slane %v1804, 2
    %v3588 = vrot.slane %v1807, 2
    %v3589 = vrot.slane %v1810, 2
    %v3590 = vrot.slane %v1818, 2
    %v3591 = vrot.slane %v1821, 2
    %v3592 = vrot.slane %v1824, 2
    %v3593 = vrot.slane %v1827, 2
    %v3594 = vrot.slane %v1830, 2
    %v3595 = vrot.slane %v1833, 2
    %v3596 = vrot.slane %v1835, 2
    %v3597 = vrot.slane %v1838, 2
    %v3598 = vrot.slane %v1841, 2
    %v3599 = vrot.slane %v1844, 2
    %v3600 = vrot.slane %v1847, 2
    %v3601 = vrot.slane %v1850, 2
    %v3602 = vrot.slane %v1853, 2
    %v3603 = vrot.slane %v1861, 2
    %v3604 = vrot.slane %v1864, 2
    %v3605 = vrot.slane %v1867, 2
    %v3606 = vrot.slane %v1870, 2
    %v3607 = vrot.slane %v1873, 2
    %v3608 = vrot.slane %v1876, 2
    %v3609 = vrot.slane %v1879, 2
    %v3610 = vrot.slane %v1881, 2
    %v3611 = vrot.slane %v1884, 2
    %v3612 = vrot.slane %v1887, 2
    %v3613 = vrot.slane %v1890, 2
    %v3614 = vrot.slane %v1893, 2
    %v3615 = vrot.slane %v1896, 2
    %v3720 = vrot.slane %v2854, 1
    %v3721 = vrot.slane %v2856, 1
    %v3722 = vrot.slane %v2858, 1
    %v3723 = vrot.slane %v2860, 1
    %v3724 = vrot.slane %v2862, 1
    %v3725 = vrot.slane %v2864, 1
    %v3726 = vrot.slane %v2866, 1
    %v3727 = vrot.slane %v2868, 1
    %v3728 = vrot.slane %v2869, 1
    %v3729 = vrot.slane %v2871, 1
    %v3730 = vrot.slane %v2873, 1
    %v3731 = vrot.slane %v2875, 1
    %v3732 = vrot.slane %v2877, 1
    %v3733 = vrot.slane %v2881, 1
    %v3734 = vrot.slane %v2882, 1
    %v3735 = vrot.slane %v2884, 1
    %v3736 = vrot.slane %v2886, 1
    %v3737 = vrot.slane %v2888, 1
    %v3738 = vrot.slane %v2890, 1
    %v3739 = vrot.slane %v2892, 1
    %v3740 = vrot.slane %v2894, 1
    %v3741 = vrot.slane %v2896, 1
    %v3742 = vrot.slane %v2897, 1
    %v3743 = vrot.slane %v2899, 1
    %v3744 = vrot.slane %v2901, 1
    %v3745 = vrot.slane %v2903, 1
    %v3746 = vrot.slane %v2907, 1
    %v3747 = vrot.slane %v2909, 1
    %v3748 = vrot.slane %v2910, 1
    %v3749 = vrot.slane %v2912, 1
    %v3750 = vrot.slane %v2914, 1
    %v3751 = vrot.slane %v2916, 1
    %v3752 = vrot.slane %v2918, 1
    %v3753 = vrot.slane %v2920, 1
    %v3754 = vrot.slane %v2922, 1
    %v3755 = vrot.slane %v2924, 1
    %v3756 = vrot.slane %v2925, 1
    %v3757 = vrot.slane %v2927, 1
    %v3758 = vrot.slane %v2929, 1
    %v3759 = vrot.slane %v2933, 1
    %v3760 = vrot.slane %v2935, 1
    %v3761 = vrot.slane %v2937, 1
    %v3762 = vrot.slane %v2938, 1
    %v3763 = vrot.slane %v2940, 1
    %v3764 = vrot.slane %v2942, 1
    %v3765 = vrot.slane %v2944, 1
    %v3766 = vrot.slane %v2946, 1
    %v3767 = vrot.slane %v2948, 1
    %v3768 = vrot.slane %v2950, 1
    %v3769 = vrot.slane %v2952, 1
    %v3770 = vrot.slane %v2953, 1
    %v3771 = vrot.slane %v2955, 1
    %v3772 = vrot.slane %v2959, 1
    %v3773 = vrot.slane %v2961, 1
    %v3774 = vrot.slane %v2963, 1
    %v3775 = vrot.slane %v2965, 1
    %v3776 = vrot.slane %v2966, 1
    %v3777 = vrot.slane %v2968, 1
    %v3778 = vrot.slane %v2970, 1
    %v3779 = vrot.slane %v2972, 1
    %v3780 = vrot.slane %v2974, 1
    %v3781 = vrot.slane %v2976, 1
    %v3782 = vrot.slane %v2978, 1
    %v3783 = vrot.slane %v2980, 1
    %v3784 = vrot.slane %v2981, 1
    %v3785 = vrot.slane %v2985, 1
    %v3786 = vrot.slane %v2987, 1
    %v3787 = vrot.slane %v2989, 1
    %v3788 = vrot.slane %v2991, 1
    %v3789 = vrot.slane %v2993, 1
    %v3790 = vrot.slane %v2994, 1
    %v3791 = vrot.slane %v2996, 1
    %v3792 = vrot.slane %v2998, 1
    %v3793 = vrot.slane %v3000, 1
    %v3794 = vrot.slane %v3002, 1
    %v3795 = vrot.slane %v3004, 1
    %v3796 = vrot.slane %v3006, 1
    %v3797 = vrot.slane %v3008, 1
    %v3798 = vrot.slane %v3011, 1
    %v3799 = vrot.slane %v3013, 1
    %v3800 = vrot.slane %v3015, 1
    %v3801 = vrot.slane %v3017, 1
    %v3802 = vrot.slane %v3019, 1
    %v3803 = vrot.slane %v3021, 1
    %v3804 = vrot.slane %v3022, 1
    %v3805 = vrot.slane %v3024, 1
    %v3806 = vrot.slane %v3026, 1
    %v3807 = vrot.slane %v3028, 1
    %v3808 = vrot.slane %v3030, 1
    %v3809 = vrot.slane %v3032, 1
    %v3810 = vrot.slane %v3034, 1
    %v3811 = vrot.slane %v3038, 1
    %v3812 = vrot.slane %v3040, 1
    %v3813 = vrot.slane %v3042, 1
    %v3814 = vrot.slane %v3044, 1
    %v3815 = vrot.slane %v3046, 1
    %v3816 = vrot.slane %v3048, 1
    %v3817 = vrot.slane %v3050, 1
    %v3818 = vrot.slane %v3051, 1
    %v3819 = vrot.slane %v3053, 1
    %v3820 = vrot.slane %v3055, 1
    %v3821 = vrot.slane %v3057, 1
    %v3822 = vrot.slane %v3059, 1
    %v3823 = vrot.slane %v3061, 1
    %v3928 = vadd.f32 %v3512, %v3720
    %v3929 = vadd.f32 %v3513, %v3721
    %v3930 = vadd.f32 %v3514, %v3722
    %v3931 = vadd.f32 %v3515, %v3723
    %v3932 = vadd.f32 %v3516, %v3724
    %v3933 = vadd.f32 %v3517, %v3725
    %v3934 = vadd.f32 %v3518, %v3726
    %v3935 = vadd.f32 %v3519, %v3727
    %v3936 = vadd.f32 %v3520, %v3728
    %v3937 = vadd.f32 %v3521, %v3729
    %v3938 = vadd.f32 %v3522, %v3730
    %v3939 = vadd.f32 %v3523, %v3731
    %v3940 = vadd.f32 %v3524, %v3732
    %v3941 = vadd.f32 %v3525, %v3733
    %v3942 = vadd.f32 %v3526, %v3734
    %v3943 = vadd.f32 %v3527, %v3735
    %v3944 = vadd.f32 %v3528, %v3736
    %v3945 = vadd.f32 %v3529, %v3737
    %v3946 = vadd.f32 %v3530, %v3738
    %v3947 = vadd.f32 %v3531, %v3739
    %v3948 = vadd.f32 %v3532, %v3740
    %v3949 = vadd.f32 %v3533, %v3741
    %v3950 = vadd.f32 %v3534, %v3742
    %v3951 = vadd.f32 %v3535, %v3743
    %v3952 = vadd.f32 %v3536, %v3744
    %v3953 = vadd.f32 %v3537, %v3745
    %v3954 = vadd.f32 %v3538, %v3746
    %v3955 = vadd.f32 %v3539, %v3747
    %v3956 = vadd.f32 %v3540, %v3748
    %v3957 = vadd.f32 %v3541, %v3749
    %v3958 = vadd.f32 %v3542, %v3750
    %v3959 = vadd.f32 %v3543, %v3751
    %v3960 = vadd.f32 %v3544, %v3752
    %v3961 = vadd.f32 %v3545, %v3753
    %v3962 = vadd.f32 %v3546, %v3754
    %v3963 = vadd.f32 %v3547, %v3755
    %v3964 = vadd.f32 %v3548, %v3756
    %v3965 = vadd.f32 %v3549, %v3757
    %v3966 = vadd.f32 %v3550, %v3758
    %v3967 = vadd.f32 %v3551, %v3759
    %v3968 = vadd.f32 %v3552, %v3760
    %v3969 = vadd.f32 %v3553, %v3761
    %v3970 = vadd.f32 %v3554, %v3762
    %v3971 = vadd.f32 %v3555, %v3763
    %v3972 = vadd.f32 %v3556, %v3764
    %v3973 = vadd.f32 %v3557, %v3765
    %v3974 = vadd.f32 %v3558, %v3766
    %v3975 = vadd.f32 %v3559, %v3767
    %v3976 = vadd.f32 %v3560, %v3768
    %v3977 = vadd.f32 %v3561, %v3769
    %v3978 = vadd.f32 %v3562, %v3770
    %v3979 = vadd.f32 %v3563, %v3771
    %v3980 = vadd.f32 %v3564, %v3772
    %v3981 = vadd.f32 %v3565, %v3773
    %v3982 = vadd.f32 %v3566, %v3774
    %v3983 = vadd.f32 %v3567, %v3775
    %v3984 = vadd.f32 %v3568, %v3776
    %v3985 = vadd.f32 %v3569, %v3777
    %v3986 = vadd.f32 %v3570, %v3778
    %v3987 = vadd.f32 %v3571, %v3779
    %v3988 = vadd.f32 %v3572, %v3780
    %v3989 = vadd.f32 %v3573, %v3781
    %v3990 = vadd.f32 %v3574, %v3782
    %v3991 = vadd.f32 %v3575, %v3783
    %v3992 = vadd.f32 %v3576, %v3784
    %v3993 = vadd.f32 %v3577, %v3785
    %v3994 = vadd.f32 %v3578, %v3786
    %v3995 = vadd.f32 %v3579, %v3787
    %v3996 = vadd.f32 %v3580, %v3788
    %v3997 = vadd.f32 %v3581, %v3789
    %v3998 = vadd.f32 %v3582, %v3790
    %v3999 = vadd.f32 %v3583, %v3791
    %v4000 = vadd.f32 %v3584, %v3792
    %v4001 = vadd.f32 %v3585, %v3793
    %v4002 = vadd.f32 %v3586, %v3794
    %v4003 = vadd.f32 %v3587, %v3795
    %v4004 = vadd.f32 %v3588, %v3796
    %v4005 = vadd.f32 %v3589, %v3797
    %v4006 = vadd.f32 %v3590, %v3798
    %v4007 = vadd.f32 %v3591, %v3799
    %v4008 = vadd.f32 %v3592, %v3800
    %v4009 = vadd.f32 %v3593, %v3801
    %v4010 = vadd.f32 %v3594, %v3802
    %v4011 = vadd.f32 %v3595, %v3803
    %v4012 = vadd.f32 %v3596, %v3804
    %v4013 = vadd.f32 %v3597, %v3805
    %v4014 = vadd.f32 %v3598, %v3806
    %v4015 = vadd.f32 %v3599, %v3807
    %v4016 = vadd.f32 %v3600, %v3808
    %v4017 = vadd.f32 %v3601, %v3809
    %v4018 = vadd.f32 %v3602, %v3810
    %v4019 = vadd.f32 %v3603, %v3811
    %v4020 = vadd.f32 %v3604, %v3812
    %v4021 = vadd.f32 %v3605, %v3813
    %v4022 = vadd.f32 %v3606, %v3814
    %v4023 = vadd.f32 %v3607, %v3815
    %v4024 = vadd.f32 %v3608, %v3816
    %v4025 = vadd.f32 %v3609, %v3817
    %v4026 = vadd.f32 %v3610, %v3818
    %v4027 = vadd.f32 %v3611, %v3819
    %v4028 = vadd.f32 %v3612, %v3820
    %v4029 = vadd.f32 %v3613, %v3821
    %v4030 = vadd.f32 %v3614, %v3822
    %v4031 = vadd.f32 %v3615, %v3823
    %4032 = vst [vmem:[#allocation1] ss:$9 sm:$0xff] %v1552
    %s4033 = scalar_lea.vmem [#allocation1], 1
    %4034 = vst [vmem:[%s4033] ss:$9 sm:$0xff] %v1556
    %s4035 = scalar_lea.vmem [#allocation1], 2
    %4036 = vst [vmem:[%s4035] ss:$9 sm:$0xff] %v1560
    %s4037 = scalar_lea.vmem [#allocation1], 3
    %4038 = vst [vmem:[%s4037] ss:$9 sm:$0xff] %v1564
    %s4039 = scalar_lea.vmem [#allocation1], 4
    %4040 = vst [vmem:[%s4039] ss:$9 sm:$0xff] %v1568
    %s4041 = scalar_lea.vmem [#allocation1], 5
    %4042 = vst [vmem:[%s4041] ss:$9 sm:$0xff] %v1572
    %s4043 = scalar_lea.vmem [#allocation1], 6
    %4044 = vst [vmem:[%s4043] ss:$9 sm:$0xff] %v1576
    %s4045 = scalar_lea.vmem [#allocation1], 7
    %4046 = vst [vmem:[%s4045] ss:$9 sm:$0xff] %v1580
    %v4047 = vld [vmem:[#allocation1] sm:$0xff]
    %4048 = vst [vmem:[#allocation1] ss:$9 sm:$0xff] %v1582
    %4049 = vst [vmem:[%s4033] ss:$9 sm:$0xff] %v1585
    %4050 = vst [vmem:[%s4035] ss:$9 sm:$0xff] %v1588
    %4051 = vst [vmem:[%s4037] ss:$9 sm:$0xff] %v1591
    %4052 = vst [vmem:[%s4039] ss:$9 sm:$0xff] %v1594
    %4053 = vst [vmem:[%s4041] ss:$9 sm:$0xff] %v1597
    %4054 = vst [vmem:[%s4043] ss:$9 sm:$0xff] %v1600
    %v4055 = vld [vmem:[#allocation1] sm:$0xff]
    %4056 = vst [vmem:[#allocation1] ss:$9 sm:$0xff] %v1603
    %4057 = vst [vmem:[%s4033] ss:$9 sm:$0xff] %v1605
    %4058 = vst [vmem:[%s4035] ss:$9 sm:$0xff] %v1608
    %4059 = vst [vmem:[%s4037] ss:$9 sm:$0xff] %v1611
    %4060 = vst [vmem:[%s4039] ss:$9 sm:$0xff] %v1614
    %4061 = vst [vmem:[%s4041] ss:$9 sm:$0xff] %v1617
    %4062 = vst [vmem:[%s4043] ss:$9 sm:$0xff] %v1620
    %4063 = vst [vmem:[%s4045] ss:$9 sm:$0xff] %v1623
    %v4064 = vld [vmem:[#allocation1] sm:$0xff]
    %4065 = vst [vmem:[#allocation1] ss:$9 sm:$0xff] %v1626
    %4066 = vst [vmem:[%s4033] ss:$9 sm:$0xff] %v1628
    %4067 = vst [vmem:[%s4035] ss:$9 sm:$0xff] %v1631
    %4068 = vst [vmem:[%s4037] ss:$9 sm:$0xff] %v1634
    %4069 = vst [vmem:[%s4039] ss:$9 sm:$0xff] %v1637
    %4070 = vst [vmem:[%s4041] ss:$9 sm:$0xff] %v1640
    %4071 = vst [vmem:[%s4043] ss:$9 sm:$0xff] %v1643
    %v4072 = vld [vmem:[#allocation1] sm:$0xff]
    %4073 = vst [vmem:[#allocation1] ss:$9 sm:$0xff] %v1646
    %4074 = vst [vmem:[%s4033] ss:$9 sm:$0xff] %v1649
    %4075 = vst [vmem:[%s4035] ss:$9 sm:$0xff] %v1651
    %4076 = vst [vmem:[%s4037] ss:$9 sm:$0xff] %v1654
    %4077 = vst [vmem:[%s4039] ss:$9 sm:$0xff] %v1657
    %4078 = vst [vmem:[%s4041] ss:$9 sm:$0xff] %v1660
    %4079 = vst [vmem:[%s4043] ss:$9 sm:$0xff] %v1663
    %4080 = vst [vmem:[%s4045] ss:$9 sm:$0xff] %v1666
    %v4081 = vld [vmem:[#allocation1] sm:$0xff]
    %4082 = vst [vmem:[#allocation1] ss:$9 sm:$0xff] %v1669
    %4083 = vst [vmem:[%s4033] ss:$9 sm:$0xff] %v1672
    %4084 = vst [vmem:[%s4035] ss:$9 sm:$0xff] %v1674
    %4085 = vst [vmem:[%s4037] ss:$9 sm:$0xff] %v1677
    %4086 = vst [vmem:[%s4039] ss:$9 sm:$0xff] %v1680
    %4087 = vst [vmem:[%s4041] ss:$9 sm:$0xff] %v1683
    %4088 = vst [vmem:[%s4043] ss:$9 sm:$0xff] %v1686
    %v4089 = vld [vmem:[#allocation1] sm:$0xff]
    %4090 = vst [vmem:[#allocation1] ss:$9 sm:$0xff] %v1689
    %4091 = vst [vmem:[%s4033] ss:$9 sm:$0xff] %v1692
    %4092 = vst [vmem:[%s4035] ss:$9 sm:$0xff] %v1695
    %4093 = vst [vmem:[%s4037] ss:$9 sm:$0xff] %v1697
    %4094 = vst [vmem:[%s4039] ss:$9 sm:$0xff] %v1700
    %4095 = vst [vmem:[%s4041] ss:$9 sm:$0xff] %v1703
    %4096 = vst [vmem:[%s4043] ss:$9 sm:$0xff] %v1706
    %4097 = vst [vmem:[%s4045] ss:$9 sm:$0xff] %v1709
    %v4098 = vld [vmem:[#allocation1] sm:$0xff]
    %4099 = vst [vmem:[#allocation1] ss:$9 sm:$0xff] %v1712
    %4100 = vst [vmem:[%s4033] ss:$9 sm:$0xff] %v1715
    %4101 = vst [vmem:[%s4035] ss:$9 sm:$0xff] %v1718
    %4102 = vst [vmem:[%s4037] ss:$9 sm:$0xff] %v1720
    %4103 = vst [vmem:[%s4039] ss:$9 sm:$0xff] %v1723
    %4104 = vst [vmem:[%s4041] ss:$9 sm:$0xff] %v1726
    %4105 = vst [vmem:[%s4043] ss:$9 sm:$0xff] %v1729
    %v4106 = vld [vmem:[#allocation1] sm:$0xff]
    %4107 = vst [vmem:[#allocation1] ss:$9 sm:$0xff] %v1732
    %4108 = vst [vmem:[%s4033] ss:$9 sm:$0xff] %v1735
    %4109 = vst [vmem:[%s4035] ss:$9 sm:$0xff] %v1738
    %4110 = vst [vmem:[%s4037] ss:$9 sm:$0xff] %v1741
    %4111 = vst [vmem:[%s4039] ss:$9 sm:$0xff] %v1743
    %4112 = vst [vmem:[%s4041] ss:$9 sm:$0xff] %v1746
    %4113 = vst [vmem:[%s4043] ss:$9 sm:$0xff] %v1749
    %4114 = vst [vmem:[%s4045] ss:$9 sm:$0xff] %v1752
    %v4115 = vld [vmem:[#allocation1] sm:$0xff]
    %4116 = vst [vmem:[#allocation1] ss:$9 sm:$0xff] %v1755
    %4117 = vst [vmem:[%s4033] ss:$9 sm:$0xff] %v1758
    %4118 = vst [vmem:[%s4035] ss:$9 sm:$0xff] %v1761
    %4119 = vst [vmem:[%s4037] ss:$9 sm:$0xff] %v1764
    %4120 = vst [vmem:[%s4039] ss:$9 sm:$0xff] %v1766
    %4121 = vst [vmem:[%s4041] ss:$9 sm:$0xff] %v1769
    %4122 = vst [vmem:[%s4043] ss:$9 sm:$0xff] %v1772
    %v4123 = vld [vmem:[#allocation1] sm:$0xff]
    %4124 = vst [vmem:[#allocation1] ss:$9 sm:$0xff] %v1775
    %4125 = vst [vmem:[%s4033] ss:$9 sm:$0xff] %v1778
    %4126 = vst [vmem:[%s4035] ss:$9 sm:$0xff] %v1781
    %4127 = vst [vmem:[%s4037] ss:$9 sm:$0xff] %v1784
    %4128 = vst [vmem:[%s4039] ss:$9 sm:$0xff] %v1787
    %4129 = vst [vmem:[%s4041] ss:$9 sm:$0xff] %v1789
    %4130 = vst [vmem:[%s4043] ss:$9 sm:$0xff] %v1792
    %4131 = vst [vmem:[%s4045] ss:$9 sm:$0xff] %v1795
    %v4132 = vld [vmem:[#allocation1] sm:$0xff]
    %4133 = vst [vmem:[#allocation1] ss:$9 sm:$0xff] %v1798
    %4134 = vst [vmem:[%s4033] ss:$9 sm:$0xff] %v1801
    %4135 = vst [vmem:[%s4035] ss:$9 sm:$0xff] %v1804
    %4136 = vst [vmem:[%s4037] ss:$9 sm:$0xff] %v1807
    %4137 = vst [vmem:[%s4039] ss:$9 sm:$0xff] %v1810
    %4138 = vst [vmem:[%s4041] ss:$9 sm:$0xff] %v1812
    %4139 = vst [vmem:[%s4043] ss:$9 sm:$0xff] %v1815
    %v4140 = vld [vmem:[#allocation1] sm:$0xff]
    %4141 = vst [vmem:[#allocation1] ss:$9 sm:$0xff] %v1818
    %4142 = vst [vmem:[%s4033] ss:$9 sm:$0xff] %v1821
    %4143 = vst [vmem:[%s4035] ss:$9 sm:$0xff] %v1824
    %4144 = vst [vmem:[%s4037] ss:$9 sm:$0xff] %v1827
    %4145 = vst [vmem:[%s4039] ss:$9 sm:$0xff] %v1830
    %4146 = vst [vmem:[%s4041] ss:$9 sm:$0xff] %v1833
    %4147 = vst [vmem:[%s4043] ss:$9 sm:$0xff] %v1835
    %4148 = vst [vmem:[%s4045] ss:$9 sm:$0xff] %v1838
    %v4149 = vld [vmem:[#allocation1] sm:$0xff]
    %4150 = vst [vmem:[#allocation1] ss:$9 sm:$0xff] %v1841
    %4151 = vst [vmem:[%s4033] ss:$9 sm:$0xff] %v1844
    %4152 = vst [vmem:[%s4035] ss:$9 sm:$0xff] %v1847
    %4153 = vst [vmem:[%s4037] ss:$9 sm:$0xff] %v1850
    %4154 = vst [vmem:[%s4039] ss:$9 sm:$0xff] %v1853
    %4155 = vst [vmem:[%s4041] ss:$9 sm:$0xff] %v1856
    %4156 = vst [vmem:[%s4043] ss:$9 sm:$0xff] %v1858
    %v4157 = vld [vmem:[#allocation1] sm:$0xff]
    %4158 = vst [vmem:[#allocation1] ss:$9 sm:$0xff] %v1861
    %4159 = vst [vmem:[%s4033] ss:$9 sm:$0xff] %v1864
    %4160 = vst [vmem:[%s4035] ss:$9 sm:$0xff] %v1867
    %4161 = vst [vmem:[%s4037] ss:$9 sm:$0xff] %v1870
    %4162 = vst [vmem:[%s4039] ss:$9 sm:$0xff] %v1873
    %4163 = vst [vmem:[%s4041] ss:$9 sm:$0xff] %v1876
    %4164 = vst [vmem:[%s4043] ss:$9 sm:$0xff] %v1879
    %4165 = vst [vmem:[%s4045] ss:$9 sm:$0xff] %v1881
    %v4166 = vld [vmem:[#allocation1] sm:$0xff]
    %4167 = vst [vmem:[#allocation1] ss:$9 sm:$0xff] %v1884
    %4168 = vst [vmem:[%s4033] ss:$9 sm:$0xff] %v1887
    %4169 = vst [vmem:[%s4035] ss:$9 sm:$0xff] %v1890
    %4170 = vst [vmem:[%s4037] ss:$9 sm:$0xff] %v1893
    %4171 = vst [vmem:[%s4039] ss:$9 sm:$0xff] %v1896
    %4172 = vst [vmem:[%s4041] ss:$9 sm:$0xff] %v1899
    %4173 = vst [vmem:[%s4043] ss:$9 sm:$0xff] %v1902
    %v4174 = vld [vmem:[#allocation1] sm:$0xff]
    %v4191 = vsel %vm420, %v4055, -inf
    %v4192 = vmax.f32 %v4047, %v4191
    %v4193 = vrot.slane %v4192, 4
    %v4194 = vmax.f32 %v4192, %v4193
    %v4195 = vrot.slane %v4194, 2
    %v4196 = vmax.f32 %v4194, %v4195
    %v4197 = vrot.slane %v4196, 1
    %v4198 = vmax.f32 %v4196, %v4197
    %v4199 = vsel %vm420, %v4072, -inf
    %v4200 = vmax.f32 %v4064, %v4199
    %v4201 = vrot.slane %v4200, 4
    %v4202 = vmax.f32 %v4200, %v4201
    %v4203 = vrot.slane %v4202, 2
    %v4204 = vmax.f32 %v4202, %v4203
    %v4205 = vrot.slane %v4204, 1
    %v4206 = vmax.f32 %v4204, %v4205
    %v4207 = vsel %vm420, %v4089, -inf
    %v4208 = vmax.f32 %v4081, %v4207
    %v4209 = vrot.slane %v4208, 4
    %v4210 = vmax.f32 %v4208, %v4209
    %v4211 = vrot.slane %v4210, 2
    %v4212 = vmax.f32 %v4210, %v4211
    %v4213 = vrot.slane %v4212, 1
    %v4214 = vmax.f32 %v4212, %v4213
    %v4215 = vsel %vm420, %v4106, -inf
    %v4216 = vmax.f32 %v4098, %v4215
    %v4217 = vrot.slane %v4216, 4
    %v4218 = vmax.f32 %v4216, %v4217
    %v4219 = vrot.slane %v4218, 2
    %v4220 = vmax.f32 %v4218, %v4219
    %v4221 = vrot.slane %v4220, 1
    %v4222 = vmax.f32 %v4220, %v4221
    %v4223 = vsel %vm420, %v4123, -inf
    %v4224 = vmax.f32 %v4115, %v4223
    %v4225 = vrot.slane %v4224, 4
    %v4226 = vmax.f32 %v4224, %v4225
    %v4227 = vrot.slane %v4226, 2
    %v4228 = vmax.f32 %v4226, %v4227
    %v4229 = vrot.slane %v4228, 1
    %v4230 = vmax.f32 %v4228, %v4229
    %v4231 = vsel %vm420, %v4140, -inf
    %v4232 = vmax.f32 %v4132, %v4231
    %v4233 = vrot.slane %v4232, 4
    %v4234 = vmax.f32 %v4232, %v4233
    %v4235 = vrot.slane %v4234, 2
    %v4236 = vmax.f32 %v4234, %v4235
    %v4237 = vrot.slane %v4236, 1
    %v4238 = vmax.f32 %v4236, %v4237
    %v4239 = vsel %vm420, %v4157, -inf
    %v4240 = vmax.f32 %v4149, %v4239
    %v4241 = vrot.slane %v4240, 4
    %v4242 = vmax.f32 %v4240, %v4241
    %v4243 = vrot.slane %v4242, 2
    %v4244 = vmax.f32 %v4242, %v4243
    %v4245 = vrot.slane %v4244, 1
    %v4246 = vmax.f32 %v4244, %v4245
    %v4247 = vsel %vm420, %v4174, -inf
    %v4248 = vmax.f32 %v4166, %v4247
    %v4249 = vrot.slane %v4248, 4
    %v4250 = vmax.f32 %v4248, %v4249
    %v4251 = vrot.slane %v4250, 2
    %v4252 = vmax.f32 %v4250, %v4251
    %v4253 = vrot.slane %v4252, 1
    %v4254 = vmax.f32 %v4252, %v4253
    %4367 = vst [vmem:[#allocation1] ss:$9 sm:$0xff] %v3400
    %s4368 = scalar_lea.vmem [#allocation1], 1
    %4369 = vst [vmem:[%s4368] ss:$9 sm:$0xff] %v3401
    %s4370 = scalar_lea.vmem [#allocation1], 2
    %4371 = vst [vmem:[%s4370] ss:$9 sm:$0xff] %v3402
    %s4372 = scalar_lea.vmem [#allocation1], 3
    %4373 = vst [vmem:[%s4372] ss:$9 sm:$0xff] %v3403
    %s4374 = scalar_lea.vmem [#allocation1], 4
    %4375 = vst [vmem:[%s4374] ss:$9 sm:$0xff] %v3404
    %s4376 = scalar_lea.vmem [#allocation1], 5
    %4377 = vst [vmem:[%s4376] ss:$9 sm:$0xff] %v3405
    %s4378 = scalar_lea.vmem [#allocation1], 6
    %4379 = vst [vmem:[%s4378] ss:$9 sm:$0xff] %v3406
    %s4380 = scalar_lea.vmem [#allocation1], 7
    %4381 = vst [vmem:[%s4380] ss:$9 sm:$0xff] %v3407
    %v4382 = vld [vmem:[#allocation1] sm:$0xff]
    %4383 = vst [vmem:[#allocation1] ss:$9 sm:$0xff] %v3408
    %4384 = vst [vmem:[%s4368] ss:$9 sm:$0xff] %v3409
    %4385 = vst [vmem:[%s4370] ss:$9 sm:$0xff] %v3410
    %4386 = vst [vmem:[%s4372] ss:$9 sm:$0xff] %v3411
    %4387 = vst [vmem:[%s4374] ss:$9 sm:$0xff] %v3412
    %4388 = vst [vmem:[%s4376] ss:$9 sm:$0xff] %v3413
    %v4389 = vld [vmem:[#allocation1] sm:$0xff]
    %4390 = vst [vmem:[#allocation1] ss:$9 sm:$0xff] %v3414
    %4391 = vst [vmem:[%s4368] ss:$9 sm:$0xff] %v3415
    %4392 = vst [vmem:[%s4370] ss:$9 sm:$0xff] %v3416
    %4393 = vst [vmem:[%s4372] ss:$9 sm:$0xff] %v3417
    %4394 = vst [vmem:[%s4374] ss:$9 sm:$0xff] %v3418
    %4395 = vst [vmem:[%s4376] ss:$9 sm:$0xff] %v3419
    %4396 = vst [vmem:[%s4378] ss:$9 sm:$0xff] %v3420
    %4397 = vst [vmem:[%s4380] ss:$9 sm:$0xff] %v3421
    %v4398 = vld [vmem:[#allocation1] sm:$0xff]
    %4399 = vst [vmem:[#allocation1] ss:$9 sm:$0xff] %v3422
    %4400 = vst [vmem:[%s4368] ss:$9 sm:$0xff] %v3423
    %4401 = vst [vmem:[%s4370] ss:$9 sm:$0xff] %v3424
    %4402 = vst [vmem:[%s4372] ss:$9 sm:$0xff] %v3425
    %4403 = vst [vmem:[%s4374] ss:$9 sm:$0xff] %v3426
    %4404 = vst [vmem:[%s4376] ss:$9 sm:$0xff] %v3427
    %v4405 = vld [vmem:[#allocation1] sm:$0xff]
    %4406 = vst [vmem:[#allocation1] ss:$9 sm:$0xff] %v3428
    %4407 = vst [vmem:[%s4368] ss:$9 sm:$0xff] %v3429
    %4408 = vst [vmem:[%s4370] ss:$9 sm:$0xff] %v3430
    %4409 = vst [vmem:[%s4372] ss:$9 sm:$0xff] %v3431
    %4410 = vst [vmem:[%s4374] ss:$9 sm:$0xff] %v3432
    %4411 = vst [vmem:[%s4376] ss:$9 sm:$0xff] %v3433
    %4412 = vst [vmem:[%s4378] ss:$9 sm:$0xff] %v3434
    %4413 = vst [vmem:[%s4380] ss:$9 sm:$0xff] %v3435
    %v4414 = vld [vmem:[#allocation1] sm:$0xff]
    %4415 = vst [vmem:[#allocation1] ss:$9 sm:$0xff] %v3436
    %4416 = vst [vmem:[%s4368] ss:$9 sm:$0xff] %v3437
    %4417 = vst [vmem:[%s4370] ss:$9 sm:$0xff] %v3438
    %4418 = vst [vmem:[%s4372] ss:$9 sm:$0xff] %v3439
    %4419 = vst [vmem:[%s4374] ss:$9 sm:$0xff] %v3440
    %4420 = vst [vmem:[%s4376] ss:$9 sm:$0xff] %v3441
    %v4421 = vld [vmem:[#allocation1] sm:$0xff]
    %4422 = vst [vmem:[#allocation1] ss:$9 sm:$0xff] %v3442
    %4423 = vst [vmem:[%s4368] ss:$9 sm:$0xff] %v3443
    %4424 = vst [vmem:[%s4370] ss:$9 sm:$0xff] %v3444
    %4425 = vst [vmem:[%s4372] ss:$9 sm:$0xff] %v3445
    %4426 = vst [vmem:[%s4374] ss:$9 sm:$0xff] %v3446
    %4427 = vst [vmem:[%s4376] ss:$9 sm:$0xff] %v3447
    %4428 = vst [vmem:[%s4378] ss:$9 sm:$0xff] %v3448
    %4429 = vst [vmem:[%s4380] ss:$9 sm:$0xff] %v3449
    %v4430 = vld [vmem:[#allocation1] sm:$0xff]
    %4431 = vst [vmem:[#allocation1] ss:$9 sm:$0xff] %v3450
    %4432 = vst [vmem:[%s4368] ss:$9 sm:$0xff] %v3451
    %4433 = vst [vmem:[%s4370] ss:$9 sm:$0xff] %v3452
    %4434 = vst [vmem:[%s4372] ss:$9 sm:$0xff] %v3453
    %4435 = vst [vmem:[%s4374] ss:$9 sm:$0xff] %v3454
    %4436 = vst [vmem:[%s4376] ss:$9 sm:$0xff] %v3455
    %v4437 = vld [vmem:[#allocation1] sm:$0xff]
    %4438 = vst [vmem:[#allocation1] ss:$9 sm:$0xff] %v3456
    %4439 = vst [vmem:[%s4368] ss:$9 sm:$0xff] %v3457
    %4440 = vst [vmem:[%s4370] ss:$9 sm:$0xff] %v3458
    %4441 = vst [vmem:[%s4372] ss:$9 sm:$0xff] %v3459
    %4442 = vst [vmem:[%s4374] ss:$9 sm:$0xff] %v3460
    %4443 = vst [vmem:[%s4376] ss:$9 sm:$0xff] %v3461
    %4444 = vst [vmem:[%s4378] ss:$9 sm:$0xff] %v3462
    %4445 = vst [vmem:[%s4380] ss:$9 sm:$0xff] %v3463
    %v4446 = vld [vmem:[#allocation1] sm:$0xff]
    %4447 = vst [vmem:[#allocation1] ss:$9 sm:$0xff] %v3464
    %4448 = vst [vmem:[%s4368] ss:$9 sm:$0xff] %v3465
    %4449 = vst [vmem:[%s4370] ss:$9 sm:$0xff] %v3466
    %4450 = vst [vmem:[%s4372] ss:$9 sm:$0xff] %v3467
    %4451 = vst [vmem:[%s4374] ss:$9 sm:$0xff] %v3468
    %4452 = vst [vmem:[%s4376] ss:$9 sm:$0xff] %v3469
    %v4453 = vld [vmem:[#allocation1] sm:$0xff]
    %4454 = vst [vmem:[#allocation1] ss:$9 sm:$0xff] %v3470
    %4455 = vst [vmem:[%s4368] ss:$9 sm:$0xff] %v3471
    %4456 = vst [vmem:[%s4370] ss:$9 sm:$0xff] %v3472
    %4457 = vst [vmem:[%s4372] ss:$9 sm:$0xff] %v3473
    %4458 = vst [vmem:[%s4374] ss:$9 sm:$0xff] %v3474
    %4459 = vst [vmem:[%s4376] ss:$9 sm:$0xff] %v3475
    %4460 = vst [vmem:[%s4378] ss:$9 sm:$0xff] %v3476
    %4461 = vst [vmem:[%s4380] ss:$9 sm:$0xff] %v3477
    %v4462 = vld [vmem:[#allocation1] sm:$0xff]
    %4463 = vst [vmem:[#allocation1] ss:$9 sm:$0xff] %v3478
    %4464 = vst [vmem:[%s4368] ss:$9 sm:$0xff] %v3479
    %4465 = vst [vmem:[%s4370] ss:$9 sm:$0xff] %v3480
    %4466 = vst [vmem:[%s4372] ss:$9 sm:$0xff] %v3481
    %4467 = vst [vmem:[%s4374] ss:$9 sm:$0xff] %v3482
    %4468 = vst [vmem:[%s4376] ss:$9 sm:$0xff] %v3483
    %v4469 = vld [vmem:[#allocation1] sm:$0xff]
    %4470 = vst [vmem:[#allocation1] ss:$9 sm:$0xff] %v3484
    %4471 = vst [vmem:[%s4368] ss:$9 sm:$0xff] %v3485
    %4472 = vst [vmem:[%s4370] ss:$9 sm:$0xff] %v3486
    %4473 = vst [vmem:[%s4372] ss:$9 sm:$0xff] %v3487
    %4474 = vst [vmem:[%s4374] ss:$9 sm:$0xff] %v3488
    %4475 = vst [vmem:[%s4376] ss:$9 sm:$0xff] %v3489
    %4476 = vst [vmem:[%s4378] ss:$9 sm:$0xff] %v3490
    %4477 = vst [vmem:[%s4380] ss:$9 sm:$0xff] %v3491
    %v4478 = vld [vmem:[#allocation1] sm:$0xff]
    %4479 = vst [vmem:[#allocation1] ss:$9 sm:$0xff] %v3492
    %4480 = vst [vmem:[%s4368] ss:$9 sm:$0xff] %v3493
    %4481 = vst [vmem:[%s4370] ss:$9 sm:$0xff] %v3494
    %4482 = vst [vmem:[%s4372] ss:$9 sm:$0xff] %v3495
    %4483 = vst [vmem:[%s4374] ss:$9 sm:$0xff] %v3496
    %4484 = vst [vmem:[%s4376] ss:$9 sm:$0xff] %v3497
    %v4485 = vld [vmem:[#allocation1] sm:$0xff]
    %4486 = vst [vmem:[#allocation1] ss:$9 sm:$0xff] %v3498
    %4487 = vst [vmem:[%s4368] ss:$9 sm:$0xff] %v3499
    %4488 = vst [vmem:[%s4370] ss:$9 sm:$0xff] %v3500
    %4489 = vst [vmem:[%s4372] ss:$9 sm:$0xff] %v3501
    %4490 = vst [vmem:[%s4374] ss:$9 sm:$0xff] %v3502
    %4491 = vst [vmem:[%s4376] ss:$9 sm:$0xff] %v3503
    %4492 = vst [vmem:[%s4378] ss:$9 sm:$0xff] %v3504
    %4493 = vst [vmem:[%s4380] ss:$9 sm:$0xff] %v3505
    %v4494 = vld [vmem:[#allocation1] sm:$0xff]
    %4495 = vst [vmem:[#allocation1] ss:$9 sm:$0xff] %v3506
    %4496 = vst [vmem:[%s4368] ss:$9 sm:$0xff] %v3507
    %4497 = vst [vmem:[%s4370] ss:$9 sm:$0xff] %v3508
    %4498 = vst [vmem:[%s4372] ss:$9 sm:$0xff] %v3509
    %4499 = vst [vmem:[%s4374] ss:$9 sm:$0xff] %v3510
    %4500 = vst [vmem:[%s4376] ss:$9 sm:$0xff] %v3511
    %v4501 = vld [vmem:[#allocation1] sm:$0xff]
    %v4518 = vsel %vm1574, %v4389, -inf
    %v4519 = vmax.f32 %v4382, %v4518
    %v4520 = vrot.slane %v4519, 4
    %v4521 = vmax.f32 %v4519, %v4520
    %v4522 = vrot.slane %v4521, 2
    %v4523 = vmax.f32 %v4521, %v4522
    %v4524 = vrot.slane %v4523, 1
    %v4525 = vmax.f32 %v4523, %v4524
    %v4526 = vsel %vm1574, %v4405, -inf
    %v4527 = vmax.f32 %v4398, %v4526
    %v4528 = vrot.slane %v4527, 4
    %v4529 = vmax.f32 %v4527, %v4528
    %v4530 = vrot.slane %v4529, 2
    %v4531 = vmax.f32 %v4529, %v4530
    %v4532 = vrot.slane %v4531, 1
    %v4533 = vmax.f32 %v4531, %v4532
    %v4534 = vsel %vm1574, %v4421, -inf
    %v4535 = vmax.f32 %v4414, %v4534
    %v4536 = vrot.slane %v4535, 4
    %v4537 = vmax.f32 %v4535, %v4536
    %v4538 = vrot.slane %v4537, 2
    %v4539 = vmax.f32 %v4537, %v4538
    %v4540 = vrot.slane %v4539, 1
    %v4541 = vmax.f32 %v4539, %v4540
    %v4542 = vsel %vm1574, %v4437, -inf
    %v4543 = vmax.f32 %v4430, %v4542
    %v4544 = vrot.slane %v4543, 4
    %v4545 = vmax.f32 %v4543, %v4544
    %v4546 = vrot.slane %v4545, 2
    %v4547 = vmax.f32 %v4545, %v4546
    %v4548 = vrot.slane %v4547, 1
    %v4549 = vmax.f32 %v4547, %v4548
    %v4550 = vsel %vm1574, %v4453, -inf
    %v4551 = vmax.f32 %v4446, %v4550
    %v4552 = vrot.slane %v4551, 4
    %v4553 = vmax.f32 %v4551, %v4552
    %v4554 = vrot.slane %v4553, 2
    %v4555 = vmax.f32 %v4553, %v4554
    %v4556 = vrot.slane %v4555, 1
    %v4557 = vmax.f32 %v4555, %v4556
    %v4558 = vsel %vm1574, %v4469, -inf
    %v4559 = vmax.f32 %v4462, %v4558
    %v4560 = vrot.slane %v4559, 4
    %v4561 = vmax.f32 %v4559, %v4560
    %v4562 = vrot.slane %v4561, 2
    %v4563 = vmax.f32 %v4561, %v4562
    %v4564 = vrot.slane %v4563, 1
    %v4565 = vmax.f32 %v4563, %v4564
    %v4566 = vsel %vm1574, %v4485, -inf
    %v4567 = vmax.f32 %v4478, %v4566
    %v4568 = vrot.slane %v4567, 4
    %v4569 = vmax.f32 %v4567, %v4568
    %v4570 = vrot.slane %v4569, 2
    %v4571 = vmax.f32 %v4569, %v4570
    %v4572 = vrot.slane %v4571, 1
    %v4573 = vmax.f32 %v4571, %v4572
    %v4574 = vsel %vm1574, %v4501, -inf
    %v4575 = vmax.f32 %v4494, %v4574
    %v4576 = vrot.slane %v4575, 4
    %v4577 = vmax.f32 %v4575, %v4576
    %v4578 = vrot.slane %v4577, 2
    %v4579 = vmax.f32 %v4577, %v4578
    %v4580 = vrot.slane %v4579, 1
    %v4581 = vmax.f32 %v4579, %v4580
    %4686 = vst [vmem:[#allocation1] ss:$9 sm:$0xff] %v3928
    %s4687 = scalar_lea.vmem [#allocation1], 1
    %4688 = vst [vmem:[%s4687] ss:$9 sm:$0xff] %v3929
    %s4689 = scalar_lea.vmem [#allocation1], 2
    %4690 = vst [vmem:[%s4689] ss:$9 sm:$0xff] %v3930
    %s4691 = scalar_lea.vmem [#allocation1], 3
    %4692 = vst [vmem:[%s4691] ss:$9 sm:$0xff] %v3931
    %s4693 = scalar_lea.vmem [#allocation1], 4
    %4694 = vst [vmem:[%s4693] ss:$9 sm:$0xff] %v3932
    %s4695 = scalar_lea.vmem [#allocation1], 5
    %4696 = vst [vmem:[%s4695] ss:$9 sm:$0xff] %v3933
    %s4697 = scalar_lea.vmem [#allocation1], 6
    %4698 = vst [vmem:[%s4697] ss:$9 sm:$0xff] %v3934
    %s4699 = scalar_lea.vmem [#allocation1], 7
    %4700 = vst [vmem:[%s4699] ss:$9 sm:$0xff] %v3935
    %v4701 = vld [vmem:[#allocation1] sm:$0xff]
    %4702 = vst [vmem:[#allocation1] ss:$9 sm:$0xff] %v3936
    %4703 = vst [vmem:[%s4687] ss:$9 sm:$0xff] %v3937
    %4704 = vst [vmem:[%s4689] ss:$9 sm:$0xff] %v3938
    %4705 = vst [vmem:[%s4691] ss:$9 sm:$0xff] %v3939
    %4706 = vst [vmem:[%s4693] ss:$9 sm:$0xff] %v3940
    %v4707 = vld [vmem:[#allocation1] sm:$0xff]
    %4708 = vst [vmem:[#allocation1] ss:$9 sm:$0xff] %v3941
    %4709 = vst [vmem:[%s4687] ss:$9 sm:$0xff] %v3942
    %4710 = vst [vmem:[%s4689] ss:$9 sm:$0xff] %v3943
    %4711 = vst [vmem:[%s4691] ss:$9 sm:$0xff] %v3944
    %4712 = vst [vmem:[%s4693] ss:$9 sm:$0xff] %v3945
    %4713 = vst [vmem:[%s4695] ss:$9 sm:$0xff] %v3946
    %4714 = vst [vmem:[%s4697] ss:$9 sm:$0xff] %v3947
    %4715 = vst [vmem:[%s4699] ss:$9 sm:$0xff] %v3948
    %v4716 = vld [vmem:[#allocation1] sm:$0xff]
    %4717 = vst [vmem:[#allocation1] ss:$9 sm:$0xff] %v3949
    %4718 = vst [vmem:[%s4687] ss:$9 sm:$0xff] %v3950
    %4719 = vst [vmem:[%s4689] ss:$9 sm:$0xff] %v3951
    %4720 = vst [vmem:[%s4691] ss:$9 sm:$0xff] %v3952
    %4721 = vst [vmem:[%s4693] ss:$9 sm:$0xff] %v3953
    %v4722 = vld [vmem:[#allocation1] sm:$0xff]
    %4723 = vst [vmem:[#allocation1] ss:$9 sm:$0xff] %v3954
    %4724 = vst [vmem:[%s4687] ss:$9 sm:$0xff] %v3955
    %4725 = vst [vmem:[%s4689] ss:$9 sm:$0xff] %v3956
    %4726 = vst [vmem:[%s4691] ss:$9 sm:$0xff] %v3957
    %4727 = vst [vmem:[%s4693] ss:$9 sm:$0xff] %v3958
    %4728 = vst [vmem:[%s4695] ss:$9 sm:$0xff] %v3959
    %4729 = vst [vmem:[%s4697] ss:$9 sm:$0xff] %v3960
    %4730 = vst [vmem:[%s4699] ss:$9 sm:$0xff] %v3961
    %v4731 = vld [vmem:[#allocation1] sm:$0xff]
    %4732 = vst [vmem:[#allocation1] ss:$9 sm:$0xff] %v3962
    %4733 = vst [vmem:[%s4687] ss:$9 sm:$0xff] %v3963
    %4734 = vst [vmem:[%s4689] ss:$9 sm:$0xff] %v3964
    %4735 = vst [vmem:[%s4691] ss:$9 sm:$0xff] %v3965
    %4736 = vst [vmem:[%s4693] ss:$9 sm:$0xff] %v3966
    %v4737 = vld [vmem:[#allocation1] sm:$0xff]
    %4738 = vst [vmem:[#allocation1] ss:$9 sm:$0xff] %v3967
    %4739 = vst [vmem:[%s4687] ss:$9 sm:$0xff] %v3968
    %4740 = vst [vmem:[%s4689] ss:$9 sm:$0xff] %v3969
    %4741 = vst [vmem:[%s4691] ss:$9 sm:$0xff] %v3970
    %4742 = vst [vmem:[%s4693] ss:$9 sm:$0xff] %v3971
    %4743 = vst [vmem:[%s4695] ss:$9 sm:$0xff] %v3972
    %4744 = vst [vmem:[%s4697] ss:$9 sm:$0xff] %v3973
    %4745 = vst [vmem:[%s4699] ss:$9 sm:$0xff] %v3974
    %v4746 = vld [vmem:[#allocation1] sm:$0xff]
    %4747 = vst [vmem:[#allocation1] ss:$9 sm:$0xff] %v3975
    %4748 = vst [vmem:[%s4687] ss:$9 sm:$0xff] %v3976
    %4749 = vst [vmem:[%s4689] ss:$9 sm:$0xff] %v3977
    %4750 = vst [vmem:[%s4691] ss:$9 sm:$0xff] %v3978
    %4751 = vst [vmem:[%s4693] ss:$9 sm:$0xff] %v3979
    %v4752 = vld [vmem:[#allocation1] sm:$0xff]
    %4753 = vst [vmem:[#allocation1] ss:$9 sm:$0xff] %v3980
    %4754 = vst [vmem:[%s4687] ss:$9 sm:$0xff] %v3981
    %4755 = vst [vmem:[%s4689] ss:$9 sm:$0xff] %v3982
    %4756 = vst [vmem:[%s4691] ss:$9 sm:$0xff] %v3983
    %4757 = vst [vmem:[%s4693] ss:$9 sm:$0xff] %v3984
    %4758 = vst [vmem:[%s4695] ss:$9 sm:$0xff] %v3985
    %4759 = vst [vmem:[%s4697] ss:$9 sm:$0xff] %v3986
    %4760 = vst [vmem:[%s4699] ss:$9 sm:$0xff] %v3987
    %v4761 = vld [vmem:[#allocation1] sm:$0xff]
    %4762 = vst [vmem:[#allocation1] ss:$9 sm:$0xff] %v3988
    %4763 = vst [vmem:[%s4687] ss:$9 sm:$0xff] %v3989
    %4764 = vst [vmem:[%s4689] ss:$9 sm:$0xff] %v3990
    %4765 = vst [vmem:[%s4691] ss:$9 sm:$0xff] %v3991
    %4766 = vst [vmem:[%s4693] ss:$9 sm:$0xff] %v3992
    %v4767 = vld [vmem:[#allocation1] sm:$0xff]
    %4768 = vst [vmem:[#allocation1] ss:$9 sm:$0xff] %v3993
    %4769 = vst [vmem:[%s4687] ss:$9 sm:$0xff] %v3994
    %4770 = vst [vmem:[%s4689] ss:$9 sm:$0xff] %v3995
    %4771 = vst [vmem:[%s4691] ss:$9 sm:$0xff] %v3996
    %4772 = vst [vmem:[%s4693] ss:$9 sm:$0xff] %v3997
    %4773 = vst [vmem:[%s4695] ss:$9 sm:$0xff] %v3998
    %4774 = vst [vmem:[%s4697] ss:$9 sm:$0xff] %v3999
    %4775 = vst [vmem:[%s4699] ss:$9 sm:$0xff] %v4000
    %v4776 = vld [vmem:[#allocation1] sm:$0xff]
    %4777 = vst [vmem:[#allocation1] ss:$9 sm:$0xff] %v4001
    %4778 = vst [vmem:[%s4687] ss:$9 sm:$0xff] %v4002
    %4779 = vst [vmem:[%s4689] ss:$9 sm:$0xff] %v4003
    %4780 = vst [vmem:[%s4691] ss:$9 sm:$0xff] %v4004
    %4781 = vst [vmem:[%s4693] ss:$9 sm:$0xff] %v4005
    %v4782 = vld [vmem:[#allocation1] sm:$0xff]
    %4783 = vst [vmem:[#allocation1] ss:$9 sm:$0xff] %v4006
    %4784 = vst [vmem:[%s4687] ss:$9 sm:$0xff] %v4007
    %4785 = vst [vmem:[%s4689] ss:$9 sm:$0xff] %v4008
    %4786 = vst [vmem:[%s4691] ss:$9 sm:$0xff] %v4009
    %4787 = vst [vmem:[%s4693] ss:$9 sm:$0xff] %v4010
    %4788 = vst [vmem:[%s4695] ss:$9 sm:$0xff] %v4011
    %4789 = vst [vmem:[%s4697] ss:$9 sm:$0xff] %v4012
    %4790 = vst [vmem:[%s4699] ss:$9 sm:$0xff] %v4013
    %v4791 = vld [vmem:[#allocation1] sm:$0xff]
    %4792 = vst [vmem:[#allocation1] ss:$9 sm:$0xff] %v4014
    %4793 = vst [vmem:[%s4687] ss:$9 sm:$0xff] %v4015
    %4794 = vst [vmem:[%s4689] ss:$9 sm:$0xff] %v4016
    %4795 = vst [vmem:[%s4691] ss:$9 sm:$0xff] %v4017
    %4796 = vst [vmem:[%s4693] ss:$9 sm:$0xff] %v4018
    %v4797 = vld [vmem:[#allocation1] sm:$0xff]
    %4798 = vst [vmem:[#allocation1] ss:$9 sm:$0xff] %v4019
    %4799 = vst [vmem:[%s4687] ss:$9 sm:$0xff] %v4020
    %4800 = vst [vmem:[%s4689] ss:$9 sm:$0xff] %v4021
    %4801 = vst [vmem:[%s4691] ss:$9 sm:$0xff] %v4022
    %4802 = vst [vmem:[%s4693] ss:$9 sm:$0xff] %v4023
    %4803 = vst [vmem:[%s4695] ss:$9 sm:$0xff] %v4024
    %4804 = vst [vmem:[%s4697] ss:$9 sm:$0xff] %v4025
    %4805 = vst [vmem:[%s4699] ss:$9 sm:$0xff] %v4026
    %v4806 = vld [vmem:[#allocation1] sm:$0xff]
    %4807 = vst [vmem:[#allocation1] ss:$9 sm:$0xff] %v4027
    %4808 = vst [vmem:[%s4687] ss:$9 sm:$0xff] %v4028
    %4809 = vst [vmem:[%s4689] ss:$9 sm:$0xff] %v4029
    %4810 = vst [vmem:[%s4691] ss:$9 sm:$0xff] %v4030
    %4811 = vst [vmem:[%s4693] ss:$9 sm:$0xff] %v4031
    %v4812 = vld [vmem:[#allocation1] sm:$0xff]
    %vm4829 = vcmask 1044480
    %v4830 = vsel %vm4829, %v4707, -inf
    %v4831 = vmax.f32 %v4701, %v4830
    %v4832 = vrot.slane %v4831, 4
    %v4833 = vmax.f32 %v4831, %v4832
    %v4834 = vrot.slane %v4833, 2
    %v4835 = vmax.f32 %v4833, %v4834
    %v4836 = vrot.slane %v4835, 1
    %v4837 = vmax.f32 %v4835, %v4836
    %v4838 = vsel %vm4829, %v4722, -inf
    %v4839 = vmax.f32 %v4716, %v4838
    %v4840 = vrot.slane %v4839, 4
    %v4841 = vmax.f32 %v4839, %v4840
    %v4842 = vrot.slane %v4841, 2
    %v4843 = vmax.f32 %v4841, %v4842
    %v4844 = vrot.slane %v4843, 1
    %v4845 = vmax.f32 %v4843, %v4844
    %v4846 = vsel %vm4829, %v4737, -inf
    %v4847 = vmax.f32 %v4731, %v4846
    %v4848 = vrot.slane %v4847, 4
    %v4849 = vmax.f32 %v4847, %v4848
    %v4850 = vrot.slane %v4849, 2
    %v4851 = vmax.f32 %v4849, %v4850
    %v4852 = vrot.slane %v4851, 1
    %v4853 = vmax.f32 %v4851, %v4852
    %v4854 = vsel %vm4829, %v4752, -inf
    %v4855 = vmax.f32 %v4746, %v4854
    %v4856 = vrot.slane %v4855, 4
    %v4857 = vmax.f32 %v4855, %v4856
    %v4858 = vrot.slane %v4857, 2
    %v4859 = vmax.f32 %v4857, %v4858
    %v4860 = vrot.slane %v4859, 1
    %v4861 = vmax.f32 %v4859, %v4860
    %v4862 = vsel %vm4829, %v4767, -inf
    %v4863 = vmax.f32 %v4761, %v4862
    %v4864 = vrot.slane %v4863, 4
    %v4865 = vmax.f32 %v4863, %v4864
    %v4866 = vrot.slane %v4865, 2
    %v4867 = vmax.f32 %v4865, %v4866
    %v4868 = vrot.slane %v4867, 1
    %v4869 = vmax.f32 %v4867, %v4868
    %v4870 = vsel %vm4829, %v4782, -inf
    %v4871 = vmax.f32 %v4776, %v4870
    %v4872 = vrot.slane %v4871, 4
    %v4873 = vmax.f32 %v4871, %v4872
    %v4874 = vrot.slane %v4873, 2
    %v4875 = vmax.f32 %v4873, %v4874
    %v4876 = vrot.slane %v4875, 1
    %v4877 = vmax.f32 %v4875, %v4876
    %v4878 = vsel %vm4829, %v4797, -inf
    %v4879 = vmax.f32 %v4791, %v4878
    %v4880 = vrot.slane %v4879, 4
    %v4881 = vmax.f32 %v4879, %v4880
    %v4882 = vrot.slane %v4881, 2
    %v4883 = vmax.f32 %v4881, %v4882
    %v4884 = vrot.slane %v4883, 1
    %v4885 = vmax.f32 %v4883, %v4884
    %v4886 = vsel %vm4829, %v4812, -inf
    %v4887 = vmax.f32 %v4806, %v4886
    %v4888 = vrot.slane %v4887, 4
    %v4889 = vmax.f32 %v4887, %v4888
    %v4890 = vrot.slane %v4889, 2
    %v4891 = vmax.f32 %v4889, %v4890
    %v4892 = vrot.slane %v4891, 1
    %v4893 = vmax.f32 %v4891, %v4892
    %v4902 = vsel %vm396, %v4206, %v4198
    %v4903 = vsel %vm400, %v4214, %v4902
    %v4904 = vsel %vm404, %v4222, %v4903
    %v4905 = vsel %vm408, %v4230, %v4904
    %v4906 = vsel %vm412, %v4238, %v4905
    %v4907 = vsel %vm416, %v4246, %v4906
    %vm4908 = vcmask 1047559
    %v4909 = vsel %vm4908, %v4254, %v4907
    %v4919 = vsel %vm396, %v4533, %v4525
    %v4920 = vsel %vm400, %v4541, %v4919
    %v4921 = vsel %vm404, %v4549, %v4920
    %v4922 = vsel %vm408, %v4557, %v4921
    %v4923 = vsel %vm412, %v4565, %v4922
    %v4924 = vsel %vm416, %v4573, %v4923
    %v4925 = vsel %vm4908, %v4581, %v4924
    %v4935 = vsel %vm396, %v4845, %v4837
    %v4936 = vsel %vm400, %v4853, %v4935
    %v4937 = vsel %vm404, %v4861, %v4936
    %v4938 = vsel %vm408, %v4869, %v4937
    %v4939 = vsel %vm412, %v4877, %v4938
    %v4940 = vsel %vm416, %v4885, %v4939
    %v4941 = vsel %vm4908, %v4893, %v4940
    %v4943 = vld [vmem:[%s2] sm:$0x7]
    %v4945 = vperm.slane %v4943, 0
    %v4946 = vperm.slane %v4943, 1
    %v4947 = vperm.slane %v4943, 2
    %v4951 = vadd.f32 %v4909, %v4945
    %v4952 = vadd.f32 %v4925, %v4946
    %v4953 = vadd.f32 %v4941, %v4947
    %v4954 = vmax.f32 %v4951, 0.0
    %v4955 = vmax.f32 %v4952, 0.0
    %v4956 = vmax.f32 %v4953, 0.0
    %4957 = vst [vmem:[#allocation5] sm:$0xff] %v4954
    %4958 = vst [vmem:[#allocation5 + $0x8] sm:$0xff] %v4955
    %4959 = vst [vmem:[#allocation5 + $0x10] sm:$0xff] %v4956
    // Predicated region
    $region18: #{tpu_custom_call.1} parent=1 // pred_check
      _
    $region19: #{tpu_custom_call.1} parent=1 // pred_check_branch
      %4961 = sbr.rel (0) target = $region21
    $region20: #{tpu_custom_call.1} parent=1 // pred_region
      %4963 = vsyncadd [#allocation4], 0
      %s4965 = sshll.u32 [#allocation5], 4
      %s4966 = int_to_ptr.vmem [resolvable:$true] %s4965
      %s4967 = sshll.u32 %s3, 4
      %s4968 = int_to_ptr.hbm [resolvable:$true] %s4967
      %4970 = dma.vmem_to_hbm [thread:$0]  %s4966, 384, %s4968, [#allocation4]
    $region21: #{tpu_custom_call.1} parent=1 // pred_fallthru
      _
    // Predicated region
    $region22: #{tpu_custom_call.1} parent=1 // pred_check
      _
    $region23: #{tpu_custom_call.1} parent=1 // pred_check_branch
      %4972 = sbr.rel (0) target = $region25
    $region24: #{tpu_custom_call.1} parent=1 // pred_region
      %4974 = dma.done [#allocation4], 384
    $region25: #{tpu_custom_call.1} parent=1 // pred_fallthru
      _
    %4975 = vsyncpa [#allocation3], 1
    %4976 = vsyncpa [#allocation4], 1

</llo_original>
